<compile_context>
chip_gen: v7x
topology: tpu7x:2x2x1
jax: 0.10.0
libtpu: 0.0.40
codegen_flags: <defaults>
</compile_context>

<pallas_src>
import numpy as np

import jax
import jax.numpy as jnp
from jax import lax
from jax.experimental import pallas as pl
from jax.experimental.pallas import tpu as pltpu


# ----------------------------------------------------------------------------
# Model constants (shrinkage_ratio = 1.0)
# ----------------------------------------------------------------------------
SHRINKAGE_RATIO = 1.0
C1 = int(16 * SHRINKAGE_RATIO)      # conv1 out channels
C2 = int(32 * SHRINKAGE_RATIO)      # conv2 out channels
H0 = W0 = 30                        # raw image
HP = WP = 32                        # zero-padded image (pad = 1)
H1 = W1 = 15                        # conv1 output (k3 s2 p1)
H2 = W2 = 8                         # conv2 output (k3 s2 p1)
NCLS = 5                            # logits
NPAD = 128                          # lane-padded logits (lane-dense store)
BT = 8                              # batch tile (images per grid step)
BN_EPS = 1e-5


# ----------------------------------------------------------------------------
# Constant 0/1 selection matrices (numpy, built once at import)
# ----------------------------------------------------------------------------
def _row_select_conv1(bt):
    # SEL1[kh, b*H1 + oh, b*HP + (2*oh + kh)] = 1
    sel = np.zeros((3, bt * H1, bt * HP), np.float32)
    for kh in range(3):
        for b in range(bt):
            for oh in range(H1):
                sel[kh, b * H1 + oh, b * HP + 2 * oh + kh] = 1.0
    return sel


def _row_select_conv2(bt):
    # SEL2[kh, oh2*bt + b, b*H1 + (2*oh2 + kh - 1)] = 1   (rows out of range = pad)
    sel = np.zeros((3, H2 * bt, bt * H1), np.float32)
    for kh in range(3):
        for oh2 in range(H2):
            r = 2 * oh2 + kh - 1
            if 0 <= r < H1:
                for b in range(bt):
                    sel[kh, oh2 * bt + b, b * H1 + r] = 1.0
    return sel


def _col_select(w_in, w_out, pad):
    # sel[w_in, w_out, kw] = 1  iff  w_in == 2*w_out + kw - pad
    sel = np.zeros((w_in, w_out, 3), np.float32)
    for ow in range(w_out):
        for kw in range(3):
            w = 2 * ow + kw - pad
            if 0 <= w < w_in:
                sel[w, ow, kw] = 1.0
    return sel


_SEL1_NP = _row_select_conv1(BT)          # (3, BT*15, BT*32)
_SEL2_NP = _row_select_conv2(BT)          # (3, 8*BT, BT*15)
_SELW1_NP = _col_select(WP, W1, 0)        # (32, 15, 3) width pad done on host
_SELW2_NP = _col_select(W1, W2, 1)        # (15,  8, 3) width pad via zeros here


# ----------------------------------------------------------------------------
# Pallas kernel: whole network for one batch tile (BT images)
# Layouts:
#   x2   : (BT*32, 32)   rows = (b, h_padded),  lanes = w_padded
#   h1   : (BT*15, 240)  rows = (b, oh1),       lanes = (ow1, c1)
#   h2   : (8*BT, 256)   rows = (oh2, b),       lanes = (ow2, c2)
#   out  : (BT, 128)     rows = b,              lanes = class (padded to 128)
# ----------------------------------------------------------------------------
def _harbox_kernel(x_ref, sel1_ref, g1_ref, b1_ref, sel2_ref, g2_ref, b2_ref,
                   v_ref, bl_ref, o_ref):
    x2 = x_ref[...]                                              # (BT*32, 32)

    # conv1 (1 -> C1, k3 s2 p1) + folded BN + ReLU
    acc1 = jnp.zeros((BT * H1, W1 * C1), jnp.float32)
    for kh in range(3):
        rows = jnp.dot(sel1_ref[kh], x2,
                       preferred_element_type=jnp.float32)       # (BT*15, 32)
        acc1 = acc1 + jnp.dot(rows, g1_ref[kh],
                              preferred_element_type=jnp.float32)  # (BT*15, 240)
    h1 = jnp.maximum(acc1 + b1_ref[...], 0.0)

    # conv2 (C1 -> C2, k3 s2 p1) + folded BN + ReLU
    acc2 = jnp.zeros((H2 * BT, W2 * C2), jnp.float32)
    for kh in range(3):
        rows2 = jnp.dot(sel2_ref[kh], h1,
                        preferred_element_type=jnp.float32)      # (8*BT, 240)
        acc2 = acc2 + jnp.dot(rows2, g2_ref[kh],
                              preferred_element_type=jnp.float32)  # (8*BT, 256)
    h2 = jnp.maximum(acc2 + b2_ref[...], 0.0)

    # linear (2048 -> 5, weights pre-permuted to the NHWC-like h2 layout)
    acc3 = jnp.zeros((BT, NPAD), jnp.float32)
    for oh2 in range(H2):
        blk = h2[oh2 * BT:(oh2 + 1) * BT, :]                     # (BT, 256)
        acc3 = acc3 + jnp.dot(blk, v_ref[oh2],
                              preferred_element_type=jnp.float32)  # (BT, 128)
    o_ref[...] = acc3 + bl_ref[...]


# ----------------------------------------------------------------------------
# Host-side operand preparation (weight folding / permutation, all tiny)
# ----------------------------------------------------------------------------
def _fold_bn(w, b, gamma, beta, rmean, rvar):
    scale = gamma / jnp.sqrt(rvar + BN_EPS)
    w_f = w * scale.reshape((-1,) + (1,) * (w.ndim - 1))
    b_f = (b - rmean) * scale + beta
    return w_f, b_f


def _build_operands(params):
    w1f, b1f = _fold_bn(params["w1"], params["b1"], params["g1"],
                        params["be1"], params["rm1"], params["rv1"])
    w2f, b2f = _fold_bn(params["w2"], params["b2"], params["g2"],
                        params["be2"], params["rm2"], params["rv2"])
    w1f = w1f[:, 0]                                    # (C1, 3, 3), Cin = 1

    # G1[kh, w, ow*C1 + c] = w1f[c, kh, w - 2*ow]  (0 elsewhere)
    g1 = jnp.einsum("woq,chq->hwoc", jnp.asarray(_SELW1_NP),
                    w1f).reshape(3, WP, W1 * C1)
    # G2[kh, w*C1 + ci, ow*C2 + c2] = w2f[c2, ci, kh, w - 2*ow + 1]
    g2 = jnp.einsum("woq,dchq->hwcod", jnp.asarray(_SELW2_NP),
                    w2f).reshape(3, W1 * C1, W2 * C2)

    b1row = jnp.tile(b1f, W1).reshape(1, W1 * C1)
    b2row = jnp.tile(b2f, W2).reshape(1, W2 * C2)

    # Linear weight permuted to the in-kernel h2 layout (rows oh2, lanes ow2*C2+c2)
    wl = params["wl"].reshape(NCLS, C2, H2, W2)        # [k, c2, oh2, ow2]
    v = jnp.transpose(wl, (2, 3, 1, 0)).reshape(H2, W2 * C2, NCLS)
    v = jnp.pad(v, ((0, 0), (0, 0), (0, NPAD - NCLS)))
    blrow = jnp.pad(params["bl"], (0, NPAD - NCLS)).reshape(1, NPAD)

    sel1 = jnp.asarray(_SEL1_NP)
    sel2 = jnp.asarray(_SEL2_NP)
    return sel1, g1, b1row, sel2, g2, b2row, v, blrow


# ----------------------------------------------------------------------------
# Forward pass
# ----------------------------------------------------------------------------
def harbox_cnn_forward(x, params):
    """x: (B, 900) float32 -> logits (B, 5) float32."""
    B = x.shape[0]
    sel1, g1, b1row, sel2, g2, b2row, v, blrow = _build_operands(params)

    b_pad = ((B + BT - 1) // BT) * BT
    xi = x.reshape(B, H0, W0).astype(jnp.float32)
    xi = jnp.pad(xi, ((0, b_pad - B), (1, 1), (1, 1)))      # batch + spatial pad
    x2 = xi.reshape(b_pad * HP, WP)                         # rows = (b, h)
    n_tiles = b_pad // BT

    out = pl.pallas_call(
        _harbox_kernel,
        out_shape=jax.ShapeDtypeStruct((b_pad, NPAD), jnp.float32),
        grid=(n_tiles,),
        in_specs=[
            pl.BlockSpec((BT * HP, WP), lambda i: (i, 0)),               # x
            pl.BlockSpec((3, BT * H1, BT * HP), lambda i: (0, 0, 0)),    # sel1
            pl.BlockSpec((3, WP, W1 * C1), lambda i: (0, 0, 0)),         # g1
            pl.BlockSpec((1, W1 * C1), lambda i: (0, 0)),                # b1
            pl.BlockSpec((3, H2 * BT, BT * H1), lambda i: (0, 0, 0)),    # sel2
            pl.BlockSpec((3, W1 * C1, W2 * C2), lambda i: (0, 0, 0)),    # g2
            pl.BlockSpec((1, W2 * C2), lambda i: (0, 0)),                # b2
            pl.BlockSpec((H2, W2 * C2, NPAD), lambda i: (0, 0, 0)),      # linear
            pl.BlockSpec((1, NPAD), lambda i: (0, 0)),                   # bias_l
        ],
        out_specs=pl.BlockSpec((BT, NPAD), lambda i: (i, 0)),
        compiler_params=pltpu.CompilerParams(
            dimension_semantics=("parallel",)),
    )(x2, sel1, g1, b1row, sel2, g2, b2row, v, blrow)

    return out[:B, :NCLS]


# ----------------------------------------------------------------------------
# Parameter init (PyTorch-layout weights, eval-mode BN stats)
# ----------------------------------------------------------------------------
def init_params(key):
    ks = jax.random.split(key, 12)
    return {
        "w1": 0.1 * jax.random.normal(ks[0], (C1, 1, 3, 3), jnp.float32),
        "b1": 0.05 * jax.random.normal(ks[1], (C1,), jnp.float32),
        "g1": 1.0 + 0.1 * jax.random.normal(ks[2], (C1,), jnp.float32),
        "be1": 0.1 * jax.random.normal(ks[3], (C1,), jnp.float32),
        "rm1": 0.1 * jax.random.normal(ks[4], (C1,), jnp.float32),
        "rv1": jax.random.uniform(ks[5], (C1,), jnp.float32, 0.5, 1.5),
        "w2": 0.1 * jax.random.normal(ks[6], (C2, C1, 3, 3), jnp.float32),
        "b2": 0.05 * jax.random.normal(ks[7], (C2,), jnp.float32),
        "g2": 1.0 + 0.1 * jax.random.normal(ks[8], (C2,), jnp.float32),
        "be2": 0.1 * jax.random.normal(ks[9], (C2,), jnp.float32),
        "rm2": 0.1 * jax.random.normal(ks[10], (C2,), jnp.float32),
        "rv2": jax.random.uniform(ks[11], (C2,), jnp.float32, 0.5, 1.5),
        "wl": 0.05 * jax.random.normal(ks[0], (NCLS, C2 * H2 * W2), jnp.float32),
        "bl": 0.05 * jax.random.normal(ks[1], (NCLS,), jnp.float32),
    }


# ----------------------------------------------------------------------------
# Pure-JAX reference (exact PyTorch eval-mode semantics) for validation
# ----------------------------------------------------------------------------
def reference_forward(x, params):
    B = x.shape[0]
    xi = x.reshape(B, 1, H0, W0).astype(jnp.float32)

    def conv_bn_relu(inp, w, b, g, be, rm, rv):
        out = lax.conv_general_dilated(
            inp, w, window_strides=(2, 2), padding=((1, 1), (1, 1)),
            dimension_numbers=("NCHW", "OIHW", "NCHW"),
            precision=lax.Precision.HIGHEST)
        out = out + b[None, :, None, None]
        scale = g / jnp.sqrt(rv + BN_EPS)
        out = (out - rm[None, :, None, None]) * scale[None, :, None, None] \
            + be[None, :, None, None]
        return jnp.maximum(out, 0.0)

    h1 = conv_bn_relu(xi, params["w1"], params["b1"], params["g1"],
                      params["be1"], params["rm1"], params["rv1"])
    h2 = conv_bn_relu(h1, params["w2"], params["b2"], params["g2"],
                      params["be2"], params["rm2"], params["rv2"])
    flat = h2.reshape(B, C2 * H2 * W2)
    return jnp.dot(flat, params["wl"].T,
                   precision=lax.Precision.HIGHEST) + params["bl"]


if __name__ == "__main__":
    key = jax.random.PRNGKey(0)
    pkey, xkey = jax.random.split(key)
    params = init_params(pkey)

    batch = 2
    x = jax.random.normal(xkey, (batch, 900), jnp.float32)   # HARBox raw input

    fwd = jax.jit(harbox_cnn_forward)
    out = fwd(x, params)
    jax.block_until_ready(out)
    assert out.shape == (batch, NCLS), out.shape
    assert out.dtype == jnp.float32

    ref = jax.jit(reference_forward)(x, params)
    jax.block_until_ready(ref)
    max_err = float(jnp.max(jnp.abs(out - ref)))
    assert max_err < 2e-2, f"mismatch vs reference, max abs err = {max_err}"

    print("KERNEL_OK")
</pallas_src>

<mosaic_0001>
module attributes {stable_mosaic.version = 11 : i64} {
  func.func @_harbox_kernel(%arg0: i32, %arg1: memref<256x32xf32, #tpu.memory_space<vmem>>, %arg2: memref<3x120x256xf32, #tpu.memory_space<vmem>>, %arg3: memref<3x32x240xf32, #tpu.memory_space<vmem>>, %arg4: memref<1x240xf32, #tpu.memory_space<vmem>>, %arg5: memref<3x64x120xf32, #tpu.memory_space<vmem>>, %arg6: memref<3x240x256xf32, #tpu.memory_space<vmem>>, %arg7: memref<1x256xf32, #tpu.memory_space<vmem>>, %arg8: memref<8x256x128xf32, #tpu.memory_space<vmem>>, %arg9: memref<1x128xf32, #tpu.memory_space<vmem>>, %arg10: memref<8x128xf32, #tpu.memory_space<vmem>>) attributes {dimension_semantics = [#tpu.dimension_semantics<parallel>], iteration_bounds = array<i64: 1>, scalar_prefetch = 0 : i64, scratch_operands = 0 : i64, tpu.core_type = #tpu.core_type<tc>, window_params = [{transform_indices = @transform_0, window_bounds = array<i64: 256, 32>}, {pipeline_mode = #tpu.pipeline_mode<synchronous>, transform_indices = @transform_1, window_bounds = array<i64: 3, 120, 256>}, {pipeline_mode = #tpu.pipeline_mode<synchronous>, transform_indices = @transform_2, window_bounds = array<i64: 3, 32, 240>}, {pipeline_mode = #tpu.pipeline_mode<synchronous>, transform_indices = @transform_3, window_bounds = array<i64: 1, 240>}, {pipeline_mode = #tpu.pipeline_mode<synchronous>, transform_indices = @transform_4, window_bounds = array<i64: 3, 64, 120>}, {pipeline_mode = #tpu.pipeline_mode<synchronous>, transform_indices = @transform_5, window_bounds = array<i64: 3, 240, 256>}, {pipeline_mode = #tpu.pipeline_mode<synchronous>, transform_indices = @transform_6, window_bounds = array<i64: 1, 256>}, {pipeline_mode = #tpu.pipeline_mode<synchronous>, transform_indices = @transform_7, window_bounds = array<i64: 8, 256, 128>}, {pipeline_mode = #tpu.pipeline_mode<synchronous>, transform_indices = @transform_8, window_bounds = array<i64: 1, 128>}, {transform_indices = @transform_9, window_bounds = array<i64: 8, 128>}]} {
    %c0 = arith.constant 0 : index
    %c0_0 = arith.constant 0 : index
    %0 = vector.load %arg1[%c0, %c0_0] : memref<256x32xf32, #tpu.memory_space<vmem>>, vector<256x32xf32>
    %cst = arith.constant 0.000000e+00 : f32
    %1 = vector.broadcast %cst : f32 to vector<120x240xf32>
    %c0_1 = arith.constant 0 : index
    %c0_2 = arith.constant 0 : index
    %c0_3 = arith.constant 0 : index
    %2 = vector.load %arg2[%c0_1, %c0_2, %c0_3] : memref<3x120x256xf32, #tpu.memory_space<vmem>>, vector<1x120x256xf32>
    %3 = vector.shape_cast %2 : vector<1x120x256xf32> to vector<120x256xf32>
    %cst_4 = arith.constant dense<0.000000e+00> : vector<120x32xf32>
    %4 = tpu.matmul %3, %0, %cst_4 {dimension_numbers = #tpu.dot_dimension_numbers<[1], [0], [0], [1], [0, 0, 1, 1], [], []>} : vector<120x256xf32>, vector<256x32xf32>, vector<120x32xf32> -> vector<120x32xf32>
    %c0_5 = arith.constant 0 : index
    %c0_6 = arith.constant 0 : index
    %c0_7 = arith.constant 0 : index
    %5 = vector.load %arg3[%c0_5, %c0_6, %c0_7] : memref<3x32x240xf32, #tpu.memory_space<vmem>>, vector<1x32x240xf32>
    %6 = vector.shape_cast %5 : vector<1x32x240xf32> to vector<32x240xf32>
    %cst_8 = arith.constant dense<0.000000e+00> : vector<120x240xf32>
    %7 = tpu.matmul %4, %6, %cst_8 {dimension_numbers = #tpu.dot_dimension_numbers<[1], [0], [0], [1], [0, 0, 1, 1], [], []>} : vector<120x32xf32>, vector<32x240xf32>, vector<120x240xf32> -> vector<120x240xf32>
    %8 = arith.addf %1, %7 : vector<120x240xf32>
    %c1 = arith.constant 1 : index
    %c0_9 = arith.constant 0 : index
    %c0_10 = arith.constant 0 : index
    %9 = vector.load %arg2[%c1, %c0_9, %c0_10] : memref<3x120x256xf32, #tpu.memory_space<vmem>>, vector<1x120x256xf32>
    %10 = vector.shape_cast %9 : vector<1x120x256xf32> to vector<120x256xf32>
    %cst_11 = arith.constant dense<0.000000e+00> : vector<120x32xf32>
    %11 = tpu.matmul %10, %0, %cst_11 {dimension_numbers = #tpu.dot_dimension_numbers<[1], [0], [0], [1], [0, 0, 1, 1], [], []>} : vector<120x256xf32>, vector<256x32xf32>, vector<120x32xf32> -> vector<120x32xf32>
    %c1_12 = arith.constant 1 : index
    %c0_13 = arith.constant 0 : index
    %c0_14 = arith.constant 0 : index
    %12 = vector.load %arg3[%c1_12, %c0_13, %c0_14] : memref<3x32x240xf32, #tpu.memory_space<vmem>>, vector<1x32x240xf32>
    %13 = vector.shape_cast %12 : vector<1x32x240xf32> to vector<32x240xf32>
    %cst_15 = arith.constant dense<0.000000e+00> : vector<120x240xf32>
    %14 = tpu.matmul %11, %13, %cst_15 {dimension_numbers = #tpu.dot_dimension_numbers<[1], [0], [0], [1], [0, 0, 1, 1], [], []>} : vector<120x32xf32>, vector<32x240xf32>, vector<120x240xf32> -> vector<120x240xf32>
    %15 = arith.addf %8, %14 : vector<120x240xf32>
    %c2 = arith.constant 2 : index
    %c0_16 = arith.constant 0 : index
    %c0_17 = arith.constant 0 : index
    %16 = vector.load %arg2[%c2, %c0_16, %c0_17] : memref<3x120x256xf32, #tpu.memory_space<vmem>>, vector<1x120x256xf32>
    %17 = vector.shape_cast %16 : vector<1x120x256xf32> to vector<120x256xf32>
    %cst_18 = arith.constant dense<0.000000e+00> : vector<120x32xf32>
    %18 = tpu.matmul %17, %0, %cst_18 {dimension_numbers = #tpu.dot_dimension_numbers<[1], [0], [0], [1], [0, 0, 1, 1], [], []>} : vector<120x256xf32>, vector<256x32xf32>, vector<120x32xf32> -> vector<120x32xf32>
    %c2_19 = arith.constant 2 : index
    %c0_20 = arith.constant 0 : index
    %c0_21 = arith.constant 0 : index
    %19 = vector.load %arg3[%c2_19, %c0_20, %c0_21] : memref<3x32x240xf32, #tpu.memory_space<vmem>>, vector<1x32x240xf32>
    %20 = vector.shape_cast %19 : vector<1x32x240xf32> to vector<32x240xf32>
    %cst_22 = arith.constant dense<0.000000e+00> : vector<120x240xf32>
    %21 = tpu.matmul %18, %20, %cst_22 {dimension_numbers = #tpu.dot_dimension_numbers<[1], [0], [0], [1], [0, 0, 1, 1], [], []>} : vector<120x32xf32>, vector<32x240xf32>, vector<120x240xf32> -> vector<120x240xf32>
    %22 = arith.addf %15, %21 : vector<120x240xf32>
    %c0_23 = arith.constant 0 : index
    %c0_24 = arith.constant 0 : index
    %23 = vector.load %arg4[%c0_23, %c0_24] : memref<1x240xf32, #tpu.memory_space<vmem>>, vector<1x240xf32>
    %24 = vector.broadcast %23 : vector<1x240xf32> to vector<120x240xf32>
    %25 = arith.addf %22, %24 : vector<120x240xf32>
    %cst_25 = arith.constant 0.000000e+00 : f32
    %26 = vector.broadcast %cst_25 : f32 to vector<120x240xf32>
    %27 = arith.maximumf %25, %26 : vector<120x240xf32>
    %cst_26 = arith.constant 0.000000e+00 : f32
    %28 = vector.broadcast %cst_26 : f32 to vector<64x256xf32>
    %c0_27 = arith.constant 0 : index
    %c0_28 = arith.constant 0 : index
    %c0_29 = arith.constant 0 : index
    %29 = vector.load %arg5[%c0_27, %c0_28, %c0_29] : memref<3x64x120xf32, #tpu.memory_space<vmem>>, vector<1x64x120xf32>
    %30 = vector.shape_cast %29 : vector<1x64x120xf32> to vector<64x120xf32>
    %cst_30 = arith.constant dense<0.000000e+00> : vector<64x240xf32>
    %31 = tpu.matmul %30, %27, %cst_30 {dimension_numbers = #tpu.dot_dimension_numbers<[1], [0], [0], [1], [0, 0, 1, 1], [], []>} : vector<64x120xf32>, vector<120x240xf32>, vector<64x240xf32> -> vector<64x240xf32>
    %c0_31 = arith.constant 0 : index
    %c0_32 = arith.constant 0 : index
    %c0_33 = arith.constant 0 : index
    %32 = vector.load %arg6[%c0_31, %c0_32, %c0_33] : memref<3x240x256xf32, #tpu.memory_space<vmem>>, vector<1x240x256xf32>
    %33 = vector.shape_cast %32 : vector<1x240x256xf32> to vector<240x256xf32>
    %cst_34 = arith.constant dense<0.000000e+00> : vector<64x256xf32>
    %34 = tpu.matmul %31, %33, %cst_34 {dimension_numbers = #tpu.dot_dimension_numbers<[1], [0], [0], [1], [0, 0, 1, 1], [], []>} : vector<64x240xf32>, vector<240x256xf32>, vector<64x256xf32> -> vector<64x256xf32>
    %35 = arith.addf %28, %34 : vector<64x256xf32>
    %c1_35 = arith.constant 1 : index
    %c0_36 = arith.constant 0 : index
    %c0_37 = arith.constant 0 : index
    %36 = vector.load %arg5[%c1_35, %c0_36, %c0_37] : memref<3x64x120xf32, #tpu.memory_space<vmem>>, vector<1x64x120xf32>
    %37 = vector.shape_cast %36 : vector<1x64x120xf32> to vector<64x120xf32>
    %cst_38 = arith.constant dense<0.000000e+00> : vector<64x240xf32>
    %38 = tpu.matmul %37, %27, %cst_38 {dimension_numbers = #tpu.dot_dimension_numbers<[1], [0], [0], [1], [0, 0, 1, 1], [], []>} : vector<64x120xf32>, vector<120x240xf32>, vector<64x240xf32> -> vector<64x240xf32>
    %c1_39 = arith.constant 1 : index
    %c0_40 = arith.constant 0 : index
    %c0_41 = arith.constant 0 : index
    %39 = vector.load %arg6[%c1_39, %c0_40, %c0_41] : memref<3x240x256xf32, #tpu.memory_space<vmem>>, vector<1x240x256xf32>
    %40 = vector.shape_cast %39 : vector<1x240x256xf32> to vector<240x256xf32>
    %cst_42 = arith.constant dense<0.000000e+00> : vector<64x256xf32>
    %41 = tpu.matmul %38, %40, %cst_42 {dimension_numbers = #tpu.dot_dimension_numbers<[1], [0], [0], [1], [0, 0, 1, 1], [], []>} : vector<64x240xf32>, vector<240x256xf32>, vector<64x256xf32> -> vector<64x256xf32>
    %42 = arith.addf %35, %41 : vector<64x256xf32>
    %c2_43 = arith.constant 2 : index
    %c0_44 = arith.constant 0 : index
    %c0_45 = arith.constant 0 : index
    %43 = vector.load %arg5[%c2_43, %c0_44, %c0_45] : memref<3x64x120xf32, #tpu.memory_space<vmem>>, vector<1x64x120xf32>
    %44 = vector.shape_cast %43 : vector<1x64x120xf32> to vector<64x120xf32>
    %cst_46 = arith.constant dense<0.000000e+00> : vector<64x240xf32>
    %45 = tpu.matmul %44, %27, %cst_46 {dimension_numbers = #tpu.dot_dimension_numbers<[1], [0], [0], [1], [0, 0, 1, 1], [], []>} : vector<64x120xf32>, vector<120x240xf32>, vector<64x240xf32> -> vector<64x240xf32>
    %c2_47 = arith.constant 2 : index
    %c0_48 = arith.constant 0 : index
    %c0_49 = arith.constant 0 : index
    %46 = vector.load %arg6[%c2_47, %c0_48, %c0_49] : memref<3x240x256xf32, #tpu.memory_space<vmem>>, vector<1x240x256xf32>
    %47 = vector.shape_cast %46 : vector<1x240x256xf32> to vector<240x256xf32>
    %cst_50 = arith.constant dense<0.000000e+00> : vector<64x256xf32>
    %48 = tpu.matmul %45, %47, %cst_50 {dimension_numbers = #tpu.dot_dimension_numbers<[1], [0], [0], [1], [0, 0, 1, 1], [], []>} : vector<64x240xf32>, vector<240x256xf32>, vector<64x256xf32> -> vector<64x256xf32>
    %49 = arith.addf %42, %48 : vector<64x256xf32>
    %c0_51 = arith.constant 0 : index
    %c0_52 = arith.constant 0 : index
    %50 = vector.load %arg7[%c0_51, %c0_52] : memref<1x256xf32, #tpu.memory_space<vmem>>, vector<1x256xf32>
    %51 = vector.broadcast %50 : vector<1x256xf32> to vector<64x256xf32>
    %52 = arith.addf %49, %51 : vector<64x256xf32>
    %cst_53 = arith.constant 0.000000e+00 : f32
    %53 = vector.broadcast %cst_53 : f32 to vector<64x256xf32>
    %54 = arith.maximumf %52, %53 : vector<64x256xf32>
    %cst_54 = arith.constant 0.000000e+00 : f32
    %55 = vector.broadcast %cst_54 : f32 to vector<8x128xf32>
    %56 = vector.extract_strided_slice %54 {offsets = [0, 0], sizes = [8, 256], strides = [1, 1]} : vector<64x256xf32> to vector<8x256xf32>
    %c0_55 = arith.constant 0 : index
    %c0_56 = arith.constant 0 : index
    %c0_57 = arith.constant 0 : index
    %57 = vector.load %arg8[%c0_55, %c0_56, %c0_57] : memref<8x256x128xf32, #tpu.memory_space<vmem>>, vector<1x256x128xf32>
    %58 = vector.shape_cast %57 : vector<1x256x128xf32> to vector<256x128xf32>
    %cst_58 = arith.constant dense<0.000000e+00> : vector<8x128xf32>
    %59 = tpu.matmul %56, %58, %cst_58 {dimension_numbers = #tpu.dot_dimension_numbers<[1], [0], [0], [1], [0, 0, 1, 1], [], []>} : vector<8x256xf32>, vector<256x128xf32>, vector<8x128xf32> -> vector<8x128xf32>
    %60 = arith.addf %55, %59 : vector<8x128xf32>
    %61 = vector.extract_strided_slice %54 {offsets = [8, 0], sizes = [8, 256], strides = [1, 1]} : vector<64x256xf32> to vector<8x256xf32>
    %c1_59 = arith.constant 1 : index
    %c0_60 = arith.constant 0 : index
    %c0_61 = arith.constant 0 : index
    %62 = vector.load %arg8[%c1_59, %c0_60, %c0_61] : memref<8x256x128xf32, #tpu.memory_space<vmem>>, vector<1x256x128xf32>
    %63 = vector.shape_cast %62 : vector<1x256x128xf32> to vector<256x128xf32>
    %cst_62 = arith.constant dense<0.000000e+00> : vector<8x128xf32>
    %64 = tpu.matmul %61, %63, %cst_62 {dimension_numbers = #tpu.dot_dimension_numbers<[1], [0], [0], [1], [0, 0, 1, 1], [], []>} : vector<8x256xf32>, vector<256x128xf32>, vector<8x128xf32> -> vector<8x128xf32>
    %65 = arith.addf %60, %64 : vector<8x128xf32>
    %66 = vector.extract_strided_slice %54 {offsets = [16, 0], sizes = [8, 256], strides = [1, 1]} : vector<64x256xf32> to vector<8x256xf32>
    %c2_63 = arith.constant 2 : index
    %c0_64 = arith.constant 0 : index
    %c0_65 = arith.constant 0 : index
    %67 = vector.load %arg8[%c2_63, %c0_64, %c0_65] : memref<8x256x128xf32, #tpu.memory_space<vmem>>, vector<1x256x128xf32>
    %68 = vector.shape_cast %67 : vector<1x256x128xf32> to vector<256x128xf32>
    %cst_66 = arith.constant dense<0.000000e+00> : vector<8x128xf32>
    %69 = tpu.matmul %66, %68, %cst_66 {dimension_numbers = #tpu.dot_dimension_numbers<[1], [0], [0], [1], [0, 0, 1, 1], [], []>} : vector<8x256xf32>, vector<256x128xf32>, vector<8x128xf32> -> vector<8x128xf32>
    %70 = arith.addf %65, %69 : vector<8x128xf32>
    %71 = vector.extract_strided_slice %54 {offsets = [24, 0], sizes = [8, 256], strides = [1, 1]} : vector<64x256xf32> to vector<8x256xf32>
    %c3 = arith.constant 3 : index
    %c0_67 = arith.constant 0 : index
    %c0_68 = arith.constant 0 : index
    %72 = vector.load %arg8[%c3, %c0_67, %c0_68] : memref<8x256x128xf32, #tpu.memory_space<vmem>>, vector<1x256x128xf32>
    %73 = vector.shape_cast %72 : vector<1x256x128xf32> to vector<256x128xf32>
    %cst_69 = arith.constant dense<0.000000e+00> : vector<8x128xf32>
    %74 = tpu.matmul %71, %73, %cst_69 {dimension_numbers = #tpu.dot_dimension_numbers<[1], [0], [0], [1], [0, 0, 1, 1], [], []>} : vector<8x256xf32>, vector<256x128xf32>, vector<8x128xf32> -> vector<8x128xf32>
    %75 = arith.addf %70, %74 : vector<8x128xf32>
    %76 = vector.extract_strided_slice %54 {offsets = [32, 0], sizes = [8, 256], strides = [1, 1]} : vector<64x256xf32> to vector<8x256xf32>
    %c4 = arith.constant 4 : index
    %c0_70 = arith.constant 0 : index
    %c0_71 = arith.constant 0 : index
    %77 = vector.load %arg8[%c4, %c0_70, %c0_71] : memref<8x256x128xf32, #tpu.memory_space<vmem>>, vector<1x256x128xf32>
    %78 = vector.shape_cast %77 : vector<1x256x128xf32> to vector<256x128xf32>
    %cst_72 = arith.constant dense<0.000000e+00> : vector<8x128xf32>
    %79 = tpu.matmul %76, %78, %cst_72 {dimension_numbers = #tpu.dot_dimension_numbers<[1], [0], [0], [1], [0, 0, 1, 1], [], []>} : vector<8x256xf32>, vector<256x128xf32>, vector<8x128xf32> -> vector<8x128xf32>
    %80 = arith.addf %75, %79 : vector<8x128xf32>
    %81 = vector.extract_strided_slice %54 {offsets = [40, 0], sizes = [8, 256], strides = [1, 1]} : vector<64x256xf32> to vector<8x256xf32>
    %c5 = arith.constant 5 : index
    %c0_73 = arith.constant 0 : index
    %c0_74 = arith.constant 0 : index
    %82 = vector.load %arg8[%c5, %c0_73, %c0_74] : memref<8x256x128xf32, #tpu.memory_space<vmem>>, vector<1x256x128xf32>
    %83 = vector.shape_cast %82 : vector<1x256x128xf32> to vector<256x128xf32>
    %cst_75 = arith.constant dense<0.000000e+00> : vector<8x128xf32>
    %84 = tpu.matmul %81, %83, %cst_75 {dimension_numbers = #tpu.dot_dimension_numbers<[1], [0], [0], [1], [0, 0, 1, 1], [], []>} : vector<8x256xf32>, vector<256x128xf32>, vector<8x128xf32> -> vector<8x128xf32>
    %85 = arith.addf %80, %84 : vector<8x128xf32>
    %86 = vector.extract_strided_slice %54 {offsets = [48, 0], sizes = [8, 256], strides = [1, 1]} : vector<64x256xf32> to vector<8x256xf32>
    %c6 = arith.constant 6 : index
    %c0_76 = arith.constant 0 : index
    %c0_77 = arith.constant 0 : index
    %87 = vector.load %arg8[%c6, %c0_76, %c0_77] : memref<8x256x128xf32, #tpu.memory_space<vmem>>, vector<1x256x128xf32>
    %88 = vector.shape_cast %87 : vector<1x256x128xf32> to vector<256x128xf32>
    %cst_78 = arith.constant dense<0.000000e+00> : vector<8x128xf32>
    %89 = tpu.matmul %86, %88, %cst_78 {dimension_numbers = #tpu.dot_dimension_numbers<[1], [0], [0], [1], [0, 0, 1, 1], [], []>} : vector<8x256xf32>, vector<256x128xf32>, vector<8x128xf32> -> vector<8x128xf32>
    %90 = arith.addf %85, %89 : vector<8x128xf32>
    %91 = vector.extract_strided_slice %54 {offsets = [56, 0], sizes = [8, 256], strides = [1, 1]} : vector<64x256xf32> to vector<8x256xf32>
    %c7 = arith.constant 7 : index
    %c0_79 = arith.constant 0 : index
    %c0_80 = arith.constant 0 : index
    %92 = vector.load %arg8[%c7, %c0_79, %c0_80] : memref<8x256x128xf32, #tpu.memory_space<vmem>>, vector<1x256x128xf32>
    %93 = vector.shape_cast %92 : vector<1x256x128xf32> to vector<256x128xf32>
    %cst_81 = arith.constant dense<0.000000e+00> : vector<8x128xf32>
    %94 = tpu.matmul %91, %93, %cst_81 {dimension_numbers = #tpu.dot_dimension_numbers<[1], [0], [0], [1], [0, 0, 1, 1], [], []>} : vector<8x256xf32>, vector<256x128xf32>, vector<8x128xf32> -> vector<8x128xf32>
    %95 = arith.addf %90, %94 : vector<8x128xf32>
    %c0_82 = arith.constant 0 : index
    %c0_83 = arith.constant 0 : index
    %96 = vector.load %arg9[%c0_82, %c0_83] : memref<1x128xf32, #tpu.memory_space<vmem>>, vector<1x128xf32>
    %97 = vector.broadcast %96 : vector<1x128xf32> to vector<8x128xf32>
    %98 = arith.addf %95, %97 : vector<8x128xf32>
    %c0_84 = arith.constant 0 : index
    %c0_85 = arith.constant 0 : index
    %99 = vector.load %arg10[%c0_84, %c0_85] : memref<8x128xf32, #tpu.memory_space<vmem>>, vector<8x128xf32>
    tpu.vector_store %arg10[%c0_84, %c0_85], %98 {strides = array<i32>} : memref<8x128xf32, #tpu.memory_space<vmem>>, vector<8x128xf32>,
    return
  }
  func.func @transform_0(%arg0: i32) -> (i32, i32) {
    %c0_i32 = arith.constant 0 : i32
    %c0_i32_0 = arith.constant 0 : i32
    return %arg0, %c0_i32 : i32, i32
  }
  func.func @transform_1(%arg0: i32) -> (i32, i32, i32) {
    %c0_i32 = arith.constant 0 : i32
    %c0_i32_0 = arith.constant 0 : i32
    %c0_i32_1 = arith.constant 0 : i32
    %c0_i32_2 = arith.constant 0 : i32
    return %c0_i32, %c0_i32_0, %c0_i32_1 : i32, i32, i32
  }
  func.func @transform_2(%arg0: i32) -> (i32, i32, i32) {
    %c0_i32 = arith.constant 0 : i32
    %c0_i32_0 = arith.constant 0 : i32
    %c0_i32_1 = arith.constant 0 : i32
    %c0_i32_2 = arith.constant 0 : i32
    return %c0_i32, %c0_i32_0, %c0_i32_1 : i32, i32, i32
  }
  func.func @transform_3(%arg0: i32) -> (i32, i32) {
    %c0_i32 = arith.constant 0 : i32
    %c0_i32_0 = arith.constant 0 : i32
    %c0_i32_1 = arith.constant 0 : i32
    return %c0_i32, %c0_i32_0 : i32, i32
  }
  func.func @transform_4(%arg0: i32) -> (i32, i32, i32) {
    %c0_i32 = arith.constant 0 : i32
    %c0_i32_0 = arith.constant 0 : i32
    %c0_i32_1 = arith.constant 0 : i32
    %c0_i32_2 = arith.constant 0 : i32
    return %c0_i32, %c0_i32_0, %c0_i32_1 : i32, i32, i32
  }
  func.func @transform_5(%arg0: i32) -> (i32, i32, i32) {
    %c0_i32 = arith.constant 0 : i32
    %c0_i32_0 = arith.constant 0 : i32
    %c0_i32_1 = arith.constant 0 : i32
    %c0_i32_2 = arith.constant 0 : i32
    return %c0_i32, %c0_i32_0, %c0_i32_1 : i32, i32, i32
  }
  func.func @transform_6(%arg0: i32) -> (i32, i32) {
    %c0_i32 = arith.constant 0 : i32
    %c0_i32_0 = arith.constant 0 : i32
    %c0_i32_1 = arith.constant 0 : i32
    return %c0_i32, %c0_i32_0 : i32, i32
  }
  func.func @transform_7(%arg0: i32) -> (i32, i32, i32) {
    %c0_i32 = arith.constant 0 : i32
    %c0_i32_0 = arith.constant 0 : i32
    %c0_i32_1 = arith.constant 0 : i32
    %c0_i32_2 = arith.constant 0 : i32
    return %c0_i32, %c0_i32_0, %c0_i32_1 : i32, i32, i32
  }
  func.func @transform_8(%arg0: i32) -> (i32, i32) {
    %c0_i32 = arith.constant 0 : i32
    %c0_i32_0 = arith.constant 0 : i32
    %c0_i32_1 = arith.constant 0 : i32
    return %c0_i32, %c0_i32_0 : i32, i32
  }
  func.func @transform_9(%arg0: i32) -> (i32, i32) {
    %c0_i32 = arith.constant 0 : i32
    %c0_i32_0 = arith.constant 0 : i32
    return %arg0, %c0_i32 : i32, i32
  }
}

</mosaic_0001>

<llo_original>
// kernel: tile.13
$region0: #{tile.13}
  #allocation0 [shape = 's32[1]{0}', space=sflag, size = 0x4, scoped, tag = 'scoped memory for tile.13']
  %s0 = inlined_call_operand.vmem [shape: f32[16], index: 0, kind: input, shape index: {}]
  %s1 = inlined_call_operand.vmem [shape: f32[15,16], index: 1, kind: output, shape index: {}]
  // Predicated region
  $region2: #{tile.13} parent=0 // pred_check
    _
  $region3: #{tile.13} parent=0 // pred_check_branch
    %3 = sbr.rel (0) target = $region5
  $region4: #{tile.13} parent=0 // pred_region
    _
  $region5: #{tile.13} parent=0 // pred_fallthru
    _
  %v4 = vld [vmem:[%s0] ss:$0 sm:$0xff]
  %5 = vst [vmem:[%s1] sm:$0xff] %v4
  %s6 = scalar_lea.vmem %s1, 8
  %7 = vst [vmem:[%s6] sm:$0xff] %v4

// kernel: tile.14
$region0: #{tile.14}
  %s0 = inlined_call_operand.vmem [shape: f32[15,16], index: 0, kind: input, shape index: {}]
  %s1 = inlined_call_operand.vmem [shape: f32[1,240], index: 1, kind: output, shape index: {}]
  $region1: #{tile.14} parent=0
    #allocation0 [shape = 'u8[8192]{0}', space=vmem, size = 0x2000, scoped, tag = 'scoped mem for output reshape']
    %s2 = smov 3
    %v3 = vld [vmem:[%s0] ss:$8 sm:%s2]
    %vm4 = vcmask 130048
    %5 = vst.msk [vmem:[#allocation0] ss:$8 sm:$0x3] %vm4, %v3
    %s6 = scalar_lea.vmem %s0, 7
    %v7 = vld [vmem:[%s6] sm:$0x1]
    %8 = vrot.lane.b32.xlu0 %v7, 112
    %v9 = vpop.permute.xlu0 %8
    %vm10 = vcmask 1048448
    %11 = vst.msk [vmem:[#allocation0] sm:$0x1] %vm10, %v9
    %s12 = scalar_lea.vmem %s0, 6
    %s13 = smov 3
    %v14 = vld [vmem:[%s12] ss:$8 sm:%s13]
    %15 = vrot.lane.b32.xlu0 %v14, 96
    %v16 = vpop.permute.xlu0 %15
    %vm17 = vcmask 917248
    %18 = vst.msk [vmem:[#allocation0] ss:$8 sm:$0x3] %vm17, %v16
    %s19 = scalar_lea.vmem %s0, 5
    %s20 = smov 3
    %v21 = vld [vmem:[%s19] ss:$8 sm:%s20]
    %22 = vrot.lane.b32.xlu0 %v21, 80
    %v23 = vpop.permute.xlu0 %22
    %vm24 = vcmask 786048
    %25 = vst.msk [vmem:[#allocation0] ss:$8 sm:$0x3] %vm24, %v23
    %s26 = scalar_lea.vmem %s0, 4
    %s27 = smov 3
    %v28 = vld [vmem:[%s26] ss:$8 sm:%s27]
    %29 = vrot.lane.b32.xlu0 %v28, 64
    %v30 = vpop.permute.xlu0 %29
    %vm31 = vcmask 654848
    %32 = vst.msk [vmem:[#allocation0] ss:$8 sm:$0x3] %vm31, %v30
    %s33 = scalar_lea.vmem %s0, 3
    %s34 = smov 3
    %v35 = vld [vmem:[%s33] ss:$8 sm:%s34]
    %36 = vrot.lane.b32.xlu0 %v35, 48
    %v37 = vpop.permute.xlu0 %36
    %vm38 = vcmask 523648
    %39 = vst.msk [vmem:[#allocation0] ss:$8 sm:$0x3] %vm38, %v37
    %s40 = scalar_lea.vmem %s0, 2
    %s41 = smov 3
    %v42 = vld [vmem:[%s40] ss:$8 sm:%s41]
    %43 = vrot.lane.b32.xlu0 %v42, 32
    %v44 = vpop.permute.xlu0 %43
    %vm45 = vcmask 392448
    %46 = vst.msk [vmem:[#allocation0] ss:$8 sm:$0x3] %vm45, %v44
    %s47 = scalar_lea.vmem %s0, 1
    %s48 = smov 3
    %v49 = vld [vmem:[%s47] ss:$8 sm:%s48]
    %50 = vrot.lane.b32.xlu0 %v49, 16
    %v51 = vpop.permute.xlu0 %50
    %vm52 = vcmask 261248
    %53 = vst.msk [vmem:[#allocation0] ss:$8 sm:$0x3] %vm52, %v51
    %s55 = sshllo.u32 0, 1
    %v57 = vld [vmem:[#allocation0] sm:%s55]
    %s58 = sshllo.u32 0, 1
    %59 = vst [vmem:[%s1] sm:%s58] %v57
    %s60 = scalar_lea.vmem [#allocation0], 8
    %v61 = vld [vmem:[%s60] sm:%s55]
    %s62 = sshllo.u32 0, 1
    %s63 = scalar_lea.vmem %s1, 1
    %64 = vst [vmem:[%s63] sm:%s62] %v61

// kernel: tile.18
$region0: #{tile.18}
  #allocation0 [shape = 's32[1]{0}', space=sflag, size = 0x4, scoped, tag = 'scoped memory for tile.18']
  %s0 = inlined_call_operand.vmem [shape: f32[32], index: 0, kind: input, shape index: {}]
  %s1 = inlined_call_operand.vmem [shape: f32[8,32], index: 1, kind: output, shape index: {}]
  // Predicated region
  $region2: #{tile.18} parent=0 // pred_check
    _
  $region3: #{tile.18} parent=0 // pred_check_branch
    %3 = sbr.rel (0) target = $region5
  $region4: #{tile.18} parent=0 // pred_region
    _
  $region5: #{tile.18} parent=0 // pred_fallthru
    _
  %v4 = vld [vmem:[%s0] ss:$0 sm:$0xff]
  %5 = vst [vmem:[%s1] sm:$0xff] %v4

// kernel: tile.19
$region0: #{tile.19}
  %s0 = inlined_call_operand.vmem [shape: f32[8,32], index: 0, kind: input, shape index: {}]
  %s1 = inlined_call_operand.vmem [shape: f32[1,256], index: 1, kind: output, shape index: {}]
  $region1: #{tile.19} parent=0
    #allocation0 [shape = 'u8[8192]{0}', space=vmem, size = 0x2000, scoped, tag = 'scoped mem for output reshape']
    %s2 = smov 3
    %v3 = vld [vmem:[%s0] ss:$4 sm:%s2]
    %vm4 = vcmask 261120
    %5 = vst.msk [vmem:[#allocation0] ss:$8 sm:$0x3] %vm4, %v3
    %s6 = scalar_lea.vmem %s0, 3
    %s7 = smov 3
    %v8 = vld [vmem:[%s6] ss:$4 sm:%s7]
    %9 = vrot.lane.b32.xlu0 %v8, 96
    %v10 = vpop.permute.xlu0 %9
    %vm11 = vcmask 1048320
    %12 = vst.msk [vmem:[#allocation0] ss:$8 sm:$0x3] %vm11, %v10
    %s13 = scalar_lea.vmem %s0, 2
    %s14 = smov 3
    %v15 = vld [vmem:[%s13] ss:$4 sm:%s14]
    %16 = vrot.lane.b32.xlu0 %v15, 64
    %v17 = vpop.permute.xlu0 %16
    %vm18 = vcmask 785920
    %19 = vst.msk [vmem:[#allocation0] ss:$8 sm:$0x3] %vm18, %v17
    %s20 = scalar_lea.vmem %s0, 1
    %s21 = smov 3
    %v22 = vld [vmem:[%s20] ss:$4 sm:%s21]
    %23 = vrot.lane.b32.xlu0 %v22, 32
    %v24 = vpop.permute.xlu0 %23
    %vm25 = vcmask 523520
    %26 = vst.msk [vmem:[#allocation0] ss:$8 sm:$0x3] %vm25, %v24
    %s28 = sshllo.u32 0, 1
    %v30 = vld [vmem:[#allocation0] sm:%s28]
    %s31 = sshllo.u32 0, 1
    %32 = vst [vmem:[%s1] sm:%s31] %v30
    %s33 = scalar_lea.vmem [#allocation0], 8
    %v34 = vld [vmem:[%s33] sm:%s28]
    %s35 = sshllo.u32 0, 1
    %s36 = scalar_lea.vmem %s1, 1
    %37 = vst [vmem:[%s36] sm:%s35] %v34

// kernel: harbox_cnn_forward.1
$region0: #{harbox_cnn_forward.1}
  #allocation0 [shape = 'u32[]', space=smem, size = 0x4, offset = 0x4, fixed_abs, tag = 'smem constant byte address 0x4 - core index']
  #allocation1 [shape = 'u32[144,128]{1,0:T(1,128)}', space=vmem, size = 0x12000, scoped, tag = 'internal scratch']
  %s0 = inlined_call_operand.vmem [shape: f32[256,32], index: 0, kind: input, shape index: {}]
  %s1 = inlined_call_operand.vmem [shape: f32[3,120,256], index: 1, kind: input, shape index: {}]
  %s2 = inlined_call_operand.vmem [shape: f32[3,32,240], index: 2, kind: input, shape index: {}]
  %s3 = inlined_call_operand.vmem [shape: f32[1,240], index: 3, kind: input, shape index: {}]
  %s4 = inlined_call_operand.vmem [shape: f32[3,64,120], index: 4, kind: input, shape index: {}]
  %s5 = inlined_call_operand.vmem [shape: f32[3,240,256], index: 5, kind: input, shape index: {}]
  %s6 = inlined_call_operand.vmem [shape: f32[1,256], index: 6, kind: input, shape index: {}]
  %s7 = inlined_call_operand.vmem [shape: f32[8,256,128], index: 7, kind: input, shape index: {}]
  %s8 = inlined_call_operand.vmem [shape: f32[1,128], index: 8, kind: input, shape index: {}]
  %s9 = inlined_call_operand.vmem [shape: f32[8,128], index: 9, kind: output, shape index: {}]
  %s10 = sld [smem:[#allocation0]]
  $region46: #{harbox_cnn_forward.1} parent=0
    _
  %s12 = ssub.s32 1, %s10
  %s13 = scalar_select 0, %s12, %s10
  // Predicated region
  $region2: #{harbox_cnn_forward.1} parent=0 // pred_check
    _
  $region3: #{harbox_cnn_forward.1} parent=0 // pred_check_branch
    %15 = sbr.rel (0) target = $region5
  $region4: #{harbox_cnn_forward.1} parent=0 // pred_region
    _
  $region5: #{harbox_cnn_forward.1} parent=0 // pred_fallthru
    _
  // Predicated region
  $region6: #{harbox_cnn_forward.1} parent=0 // pred_check
    _
  $region7: #{harbox_cnn_forward.1} parent=0 // pred_check_branch
    %17 = sbr.rel (0) target = $region9
  $region8: #{harbox_cnn_forward.1} parent=0 // pred_region
    _
  $region9: #{harbox_cnn_forward.1} parent=0 // pred_fallthru
    _
  // Predicated region
  $region10: #{harbox_cnn_forward.1} parent=0 // pred_check
    _
  $region11: #{harbox_cnn_forward.1} parent=0 // pred_check_branch
    %19 = sbr.rel (0) target = $region13
  $region12: #{harbox_cnn_forward.1} parent=0 // pred_region
    _
  $region13: #{harbox_cnn_forward.1} parent=0 // pred_fallthru
    _
  // Predicated region
  $region14: #{harbox_cnn_forward.1} parent=0 // pred_check
    _
  $region15: #{harbox_cnn_forward.1} parent=0 // pred_check_branch
    %21 = sbr.rel (0) target = $region17
  $region16: #{harbox_cnn_forward.1} parent=0 // pred_region
    _
  $region17: #{harbox_cnn_forward.1} parent=0 // pred_fallthru
    _
  // Predicated region
  $region18: #{harbox_cnn_forward.1} parent=0 // pred_check
    _
  $region19: #{harbox_cnn_forward.1} parent=0 // pred_check_branch
    %23 = sbr.rel (0) target = $region21
  $region20: #{harbox_cnn_forward.1} parent=0 // pred_region
    _
  $region21: #{harbox_cnn_forward.1} parent=0 // pred_fallthru
    _
  // Predicated region
  $region22: #{harbox_cnn_forward.1} parent=0 // pred_check
    _
  $region23: #{harbox_cnn_forward.1} parent=0 // pred_check_branch
    %25 = sbr.rel (0) target = $region25
  $region24: #{harbox_cnn_forward.1} parent=0 // pred_region
    _
  $region25: #{harbox_cnn_forward.1} parent=0 // pred_fallthru
    _
  // Predicated region
  $region26: #{harbox_cnn_forward.1} parent=0 // pred_check
    _
  $region27: #{harbox_cnn_forward.1} parent=0 // pred_check_branch
    %27 = sbr.rel (0) target = $region29
  $region28: #{harbox_cnn_forward.1} parent=0 // pred_region
    _
  $region29: #{harbox_cnn_forward.1} parent=0 // pred_fallthru
    _
  // Predicated region
  $region30: #{harbox_cnn_forward.1} parent=0 // pred_check
    _
  $region31: #{harbox_cnn_forward.1} parent=0 // pred_check_branch
    %29 = sbr.rel (0) target = $region33
  $region32: #{harbox_cnn_forward.1} parent=0 // pred_region
    _
  $region33: #{harbox_cnn_forward.1} parent=0 // pred_fallthru
    _
  // Predicated region
  $region34: #{harbox_cnn_forward.1} parent=0 // pred_check
    _
  $region35: #{harbox_cnn_forward.1} parent=0 // pred_check_branch
    %31 = sbr.rel (0) target = $region37
  $region36: #{harbox_cnn_forward.1} parent=0 // pred_region
    _
  $region37: #{harbox_cnn_forward.1} parent=0 // pred_fallthru
    _
  %v32 = vld [vmem:[%s0] sm:$0xff]
  %v33 = vld [vmem:[%s0 + $0x8] sm:$0xff]
  %v34 = vld [vmem:[%s0 + $0x10] sm:$0xff]
  %v35 = vld [vmem:[%s0 + $0x18] sm:$0xff]
  %v36 = vld [vmem:[%s0 + $0x20] sm:$0xff]
  %v37 = vld [vmem:[%s0 + $0x28] sm:$0xff]
  %v38 = vld [vmem:[%s0 + $0x30] sm:$0xff]
  %v39 = vld [vmem:[%s0 + $0x38] sm:$0xff]
  %v40 = vld [vmem:[%s0 + $0x40] sm:$0xff]
  %v41 = vld [vmem:[%s0 + $0x48] sm:$0xff]
  %v42 = vld [vmem:[%s0 + $0x50] sm:$0xff]
  %v43 = vld [vmem:[%s0 + $0x58] sm:$0xff]
  %v44 = vld [vmem:[%s0 + $0x60] sm:$0xff]
  %v45 = vld [vmem:[%s0 + $0x68] sm:$0xff]
  %v46 = vld [vmem:[%s0 + $0x70] sm:$0xff]
  %v47 = vld [vmem:[%s0 + $0x78] sm:$0xff]
  %v48 = vld [vmem:[%s0 + $0x80] sm:$0xff]
  %v49 = vld [vmem:[%s0 + $0x88] sm:$0xff]
  %v50 = vld [vmem:[%s0 + $0x90] sm:$0xff]
  %v51 = vld [vmem:[%s0 + $0x98] sm:$0xff]
  %v52 = vld [vmem:[%s0 + $0xa0] sm:$0xff]
  %v53 = vld [vmem:[%s0 + $0xa8] sm:$0xff]
  %v54 = vld [vmem:[%s0 + $0xb0] sm:$0xff]
  %v55 = vld [vmem:[%s0 + $0xb8] sm:$0xff]
  %v56 = vld [vmem:[%s0 + $0xc0] sm:$0xff]
  %v57 = vld [vmem:[%s0 + $0xc8] sm:$0xff]
  %v58 = vld [vmem:[%s0 + $0xd0] sm:$0xff]
  %v59 = vld [vmem:[%s0 + $0xd8] sm:$0xff]
  %v60 = vld [vmem:[%s0 + $0xe0] sm:$0xff]
  %v61 = vld [vmem:[%s0 + $0xe8] sm:$0xff]
  %v62 = vld [vmem:[%s0 + $0xf0] sm:$0xff]
  %v63 = vld [vmem:[%s0 + $0xf8] sm:$0xff]
  %v64 = vld [vmem:[%s1] sm:$0xff]
  %v65 = vld [vmem:[%s1 + $0x8] sm:$0xff]
  %v66 = vld [vmem:[%s1 + $0x10] sm:$0xff]
  %v67 = vld [vmem:[%s1 + $0x18] sm:$0xff]
  %v68 = vld [vmem:[%s1 + $0x20] sm:$0xff]
  %v69 = vld [vmem:[%s1 + $0x28] sm:$0xff]
  %v70 = vld [vmem:[%s1 + $0x30] sm:$0xff]
  %v71 = vld [vmem:[%s1 + $0x38] sm:$0xff]
  %v72 = vld [vmem:[%s1 + $0x40] sm:$0xff]
  %v73 = vld [vmem:[%s1 + $0x48] sm:$0xff]
  %v74 = vld [vmem:[%s1 + $0x50] sm:$0xff]
  %v75 = vld [vmem:[%s1 + $0x58] sm:$0xff]
  %v76 = vld [vmem:[%s1 + $0x60] sm:$0xff]
  %v77 = vld [vmem:[%s1 + $0x68] sm:$0xff]
  %v78 = vld [vmem:[%s1 + $0x70] sm:$0xff]
  %v79 = vld [vmem:[%s1 + $0x78] sm:$0xff]
  %v80 = vld [vmem:[%s1 + $0x80] sm:$0xff]
  %v81 = vld [vmem:[%s1 + $0x88] sm:$0xff]
  %v82 = vld [vmem:[%s1 + $0x90] sm:$0xff]
  %v83 = vld [vmem:[%s1 + $0x98] sm:$0xff]
  %v84 = vld [vmem:[%s1 + $0xa0] sm:$0xff]
  %v85 = vld [vmem:[%s1 + $0xa8] sm:$0xff]
  %v86 = vld [vmem:[%s1 + $0xb0] sm:$0xff]
  %v87 = vld [vmem:[%s1 + $0xb8] sm:$0xff]
  %v88 = vld [vmem:[%s1 + $0xc0] sm:$0xff]
  %v89 = vld [vmem:[%s1 + $0xc8] sm:$0xff]
  %v90 = vld [vmem:[%s1 + $0xd0] sm:$0xff]
  %v91 = vld [vmem:[%s1 + $0xd8] sm:$0xff]
  %v92 = vld [vmem:[%s1 + $0xe0] sm:$0xff]
  %v93 = vld [vmem:[%s1 + $0xe8] sm:$0xff]
  %94 = vmatprep.subr.mxu0 0.0
  %95 = vmatpush1.msra.mxu0 %v32
  %96 = vmatprep.subr.mxu0 0.0
  %97 = vmatpush1.msra.mxu0 %v33
  %98 = vmatprep.subr.mxu0 0.0
  %99 = vmatpush1.msra.mxu0 %v34
  %100 = vmatprep.subr.mxu0 0.0
  %101 = vmatpush1.msra.mxu0 %v35
  %102 = vmatprep.subr.mxu0 0.0
  %103 = vmatpush1.msra.mxu0 %v36
  %104 = vmatprep.subr.mxu0 0.0
  %105 = vmatpush1.msra.mxu0 %v37
  %106 = vmatprep.subr.mxu0 0.0
  %107 = vmatpush1.msra.mxu0 %v38
  %108 = vmatprep.subr.mxu0 0.0
  %109 = vmatpush1.msra.mxu0 %v39
  %110 = vmatprep.subr.mxu0 0.0
  %111 = vmatpush1.msra.mxu0 %v40
  %112 = vmatprep.subr.mxu0 0.0
  %113 = vmatpush1.msra.mxu0 %v41
  %114 = vmatprep.subr.mxu0 0.0
  %115 = vmatpush1.msra.mxu0 %v42
  %116 = vmatprep.subr.mxu0 0.0
  %117 = vmatpush1.msra.mxu0 %v43
  %118 = vmatprep.subr.mxu0 0.0
  %119 = vmatpush1.msra.mxu0 %v44
  %120 = vmatprep.subr.mxu0 0.0
  %121 = vmatpush1.msra.mxu0 %v45
  %122 = vmatprep.subr.mxu0 0.0
  %123 = vmatpush1.msra.mxu0 %v46
  %124 = vmatprep.subr.mxu0 0.0
  %125 = vmatpush1.msra.mxu0 %v47
  %126 = vmatprep.subr.mxu0 0.0
  %127 = vmatpush1.msra.mxu0 %v48
  %128 = vmatprep.subr.mxu0 0.0
  %129 = vmatpush1.msra.mxu0 %v49
  %130 = vmatprep.subr.mxu0 0.0
  %131 = vmatpush1.msra.mxu0 %v50
  %132 = vmatprep.subr.mxu0 0.0
  %133 = vmatpush1.msra.mxu0 %v51
  %134 = vmatprep.subr.mxu0 0.0
  %135 = vmatpush1.msra.mxu0 %v52
  %136 = vmatprep.subr.mxu0 0.0
  %137 = vmatpush1.msra.mxu0 %v53
  %138 = vmatprep.subr.mxu0 0.0
  %139 = vmatpush1.msra.mxu0 %v54
  %140 = vmatprep.subr.mxu0 0.0
  %141 = vmatpush1.msra.mxu0 %v55
  %142 = vmatprep.subr.mxu0 0.0
  %143 = vmatpush1.msra.mxu0 %v56
  %144 = vmatprep.subr.mxu0 0.0
  %145 = vmatpush1.msra.mxu0 %v57
  %146 = vmatprep.subr.mxu0 0.0
  %147 = vmatpush1.msra.mxu0 %v58
  %148 = vmatprep.subr.mxu0 0.0
  %149 = vmatpush1.msra.mxu0 %v59
  %150 = vmatprep.subr.mxu0 0.0
  %151 = vmatpush1.msra.mxu0 %v60
  %152 = vmatprep.subr.mxu0 0.0
  %153 = vmatpush1.msra.mxu0 %v61
  %154 = vmatprep.subr.mxu0 0.0
  %155 = vmatpush1.msra.mxu0 %v62
  %156 = vmatprep.subr.mxu0 0.0
  %157 = vmatpush1.msra.mxu0 %v63
  %158 = vmatprep.mubr.f32.mxu0 %v65
  %159 = vmatmul.mubr.f32.gmra.mrb[0].mxu0 %v64
  %v160 = vpop.f32.mrb[0].mxu0
  %v161 = vadd.f32 0.0, %v160
  %v162 = vpop.f32.mrb[0].mxu0
  %163 = vmatprep.mubr.f32.mxu0 %v67
  %164 = vmatmul.mubr.f32.gmra.mrb[0].mxu0 %v66
  %v165 = vpop.f32.mrb[0].mxu0
  %v166 = vadd.f32 0.0, %v165
  %v167 = vpop.f32.mrb[0].mxu0
  %168 = vmatprep.mubr.f32.mxu0 %v69
  %169 = vmatmul.mubr.f32.gmra.mrb[0].mxu0 %v68
  %v170 = vpop.f32.mrb[0].mxu0
  %v171 = vadd.f32 0.0, %v170
  %v172 = vpop.f32.mrb[0].mxu0
  %173 = vmatprep.mubr.f32.mxu0 %v71
  %174 = vmatmul.mubr.f32.gmra.mrb[0].mxu0 %v70
  %v175 = vpop.f32.mrb[0].mxu0
  %v176 = vadd.f32 0.0, %v175
  %v177 = vpop.f32.mrb[0].mxu0
  %178 = vmatprep.mubr.f32.mxu0 %v73
  %179 = vmatmul.mubr.f32.gmra.mrb[0].mxu0 %v72
  %v180 = vpop.f32.mrb[0].mxu0
  %v181 = vadd.f32 0.0, %v180
  %v182 = vpop.f32.mrb[0].mxu0
  %183 = vmatprep.mubr.f32.mxu0 %v75
  %184 = vmatmul.mubr.f32.gmra.mrb[0].mxu0 %v74
  %v185 = vpop.f32.mrb[0].mxu0
  %v186 = vadd.f32 0.0, %v185
  %v187 = vpop.f32.mrb[0].mxu0
  %188 = vmatprep.mubr.f32.mxu0 %v77
  %189 = vmatmul.mubr.f32.gmra.mrb[0].mxu0 %v76
  %v190 = vpop.f32.mrb[0].mxu0
  %v191 = vadd.f32 0.0, %v190
  %v192 = vpop.f32.mrb[0].mxu0
  %193 = vmatprep.mubr.f32.mxu0 %v79
  %194 = vmatmul.mubr.f32.gmra.mrb[0].mxu0 %v78
  %v195 = vpop.f32.mrb[0].mxu0
  %v196 = vadd.f32 0.0, %v195
  %v197 = vpop.f32.mrb[0].mxu0
  %198 = vmatprep.mubr.f32.mxu0 %v81
  %199 = vmatmul.mubr.f32.gmra.mrb[0].mxu0 %v80
  %v200 = vpop.f32.mrb[0].mxu0
  %v201 = vadd.f32 0.0, %v200
  %v202 = vpop.f32.mrb[0].mxu0
  %203 = vmatprep.mubr.f32.mxu0 %v83
  %204 = vmatmul.mubr.f32.gmra.mrb[0].mxu0 %v82
  %v205 = vpop.f32.mrb[0].mxu0
  %v206 = vadd.f32 0.0, %v205
  %v207 = vpop.f32.mrb[0].mxu0
  %208 = vmatprep.mubr.f32.mxu0 %v85
  %209 = vmatmul.mubr.f32.gmra.mrb[0].mxu0 %v84
  %v210 = vpop.f32.mrb[0].mxu0
  %v211 = vadd.f32 0.0, %v210
  %v212 = vpop.f32.mrb[0].mxu0
  %213 = vmatprep.mubr.f32.mxu0 %v87
  %214 = vmatmul.mubr.f32.gmra.mrb[0].mxu0 %v86
  %v215 = vpop.f32.mrb[0].mxu0
  %v216 = vadd.f32 0.0, %v215
  %v217 = vpop.f32.mrb[0].mxu0
  %218 = vmatprep.mubr.f32.mxu0 %v89
  %219 = vmatmul.mubr.f32.gmra.mrb[0].mxu0 %v88
  %v220 = vpop.f32.mrb[0].mxu0
  %v221 = vadd.f32 0.0, %v220
  %v222 = vpop.f32.mrb[0].mxu0
  %223 = vmatprep.mubr.f32.mxu0 %v91
  %224 = vmatmul.mubr.f32.gmra.mrb[0].mxu0 %v90
  %v225 = vpop.f32.mrb[0].mxu0
  %v226 = vadd.f32 0.0, %v225
  %v227 = vpop.f32.mrb[0].mxu0
  %228 = vmatprep.mubr.f32.mxu0 %v93
  %229 = vmatmul.mubr.f32.gmra.mrb[0].mxu0 %v92
  %v230 = vpop.f32.mrb[0].mxu0
  %v231 = vadd.f32 0.0, %v230
  %v232 = vpop.f32.mrb[0].mxu0
  %233 = vdwg.mxu0
  %v234 = vld [vmem:[%s2] sm:$0xff]
  %v235 = vld [vmem:[%s2 + $0x8] sm:$0xff]
  %v236 = vld [vmem:[%s2 + $0x10] sm:$0xff]
  %v237 = vld [vmem:[%s2 + $0x18] sm:$0xff]
  %v238 = vld [vmem:[%s2 + $0x20] sm:$0xff]
  %v239 = vld [vmem:[%s2 + $0x28] sm:$0xff]
  %v240 = vld [vmem:[%s2 + $0x30] sm:$0xff]
  %v241 = vld [vmem:[%s2 + $0x38] sm:$0xff]
  %s242 = scalar_lea.vmem %s1, 240
  %v243 = vld [vmem:[%s242] sm:$0xff]
  %v244 = vld [vmem:[%s242 + $0x8] sm:$0xff]
  %v245 = vld [vmem:[%s242 + $0x10] sm:$0xff]
  %v246 = vld [vmem:[%s242 + $0x18] sm:$0xff]
  %v247 = vld [vmem:[%s242 + $0x20] sm:$0xff]
  %v248 = vld [vmem:[%s242 + $0x28] sm:$0xff]
  %v249 = vld [vmem:[%s242 + $0x30] sm:$0xff]
  %v250 = vld [vmem:[%s242 + $0x38] sm:$0xff]
  %v251 = vld [vmem:[%s242 + $0x40] sm:$0xff]
  %v252 = vld [vmem:[%s242 + $0x48] sm:$0xff]
  %v253 = vld [vmem:[%s242 + $0x50] sm:$0xff]
  %v254 = vld [vmem:[%s242 + $0x58] sm:$0xff]
  %v255 = vld [vmem:[%s242 + $0x60] sm:$0xff]
  %v256 = vld [vmem:[%s242 + $0x68] sm:$0xff]
  %v257 = vld [vmem:[%s242 + $0x70] sm:$0xff]
  %v258 = vld [vmem:[%s242 + $0x78] sm:$0xff]
  %v259 = vld [vmem:[%s242 + $0x80] sm:$0xff]
  %v260 = vld [vmem:[%s242 + $0x88] sm:$0xff]
  %v261 = vld [vmem:[%s242 + $0x90] sm:$0xff]
  %v262 = vld [vmem:[%s242 + $0x98] sm:$0xff]
  %v263 = vld [vmem:[%s242 + $0xa0] sm:$0xff]
  %v264 = vld [vmem:[%s242 + $0xa8] sm:$0xff]
  %v265 = vld [vmem:[%s242 + $0xb0] sm:$0xff]
  %v266 = vld [vmem:[%s242 + $0xb8] sm:$0xff]
  %v267 = vld [vmem:[%s242 + $0xc0] sm:$0xff]
  %v268 = vld [vmem:[%s242 + $0xc8] sm:$0xff]
  %v269 = vld [vmem:[%s242 + $0xd0] sm:$0xff]
  %v270 = vld [vmem:[%s242 + $0xd8] sm:$0xff]
  %v271 = vld [vmem:[%s242 + $0xe0] sm:$0xff]
  %v272 = vld [vmem:[%s242 + $0xe8] sm:$0xff]
  %273 = vmatprep.subr.mxu0 0.0
  %274 = vmatpush1.msra.mxu0 %v32
  %275 = vmatprep.subr.mxu0 0.0
  %276 = vmatpush1.msra.mxu0 %v33
  %277 = vmatprep.subr.mxu0 0.0
  %278 = vmatpush1.msra.mxu0 %v34
  %279 = vmatprep.subr.mxu0 0.0
  %280 = vmatpush1.msra.mxu0 %v35
  %281 = vmatprep.subr.mxu0 0.0
  %282 = vmatpush1.msra.mxu0 %v36
  %283 = vmatprep.subr.mxu0 0.0
  %284 = vmatpush1.msra.mxu0 %v37
  %285 = vmatprep.subr.mxu0 0.0
  %286 = vmatpush1.msra.mxu0 %v38
  %287 = vmatprep.subr.mxu0 0.0
  %288 = vmatpush1.msra.mxu0 %v39
  %289 = vmatprep.subr.mxu0 0.0
  %290 = vmatpush1.msra.mxu0 %v40
  %291 = vmatprep.subr.mxu0 0.0
  %292 = vmatpush1.msra.mxu0 %v41
  %293 = vmatprep.subr.mxu0 0.0
  %294 = vmatpush1.msra.mxu0 %v42
  %295 = vmatprep.subr.mxu0 0.0
  %296 = vmatpush1.msra.mxu0 %v43
  %297 = vmatprep.subr.mxu0 0.0
  %298 = vmatpush1.msra.mxu0 %v44
  %299 = vmatprep.subr.mxu0 0.0
  %300 = vmatpush1.msra.mxu0 %v45
  %301 = vmatprep.subr.mxu0 0.0
  %302 = vmatpush1.msra.mxu0 %v46
  %303 = vmatprep.subr.mxu0 0.0
  %304 = vmatpush1.msra.mxu0 %v47
  %305 = vmatprep.subr.mxu0 0.0
  %306 = vmatpush1.msra.mxu0 %v48
  %307 = vmatprep.subr.mxu0 0.0
  %308 = vmatpush1.msra.mxu0 %v49
  %309 = vmatprep.subr.mxu0 0.0
  %310 = vmatpush1.msra.mxu0 %v50
  %311 = vmatprep.subr.mxu0 0.0
  %312 = vmatpush1.msra.mxu0 %v51
  %313 = vmatprep.subr.mxu0 0.0
  %314 = vmatpush1.msra.mxu0 %v52
  %315 = vmatprep.subr.mxu0 0.0
  %316 = vmatpush1.msra.mxu0 %v53
  %317 = vmatprep.subr.mxu0 0.0
  %318 = vmatpush1.msra.mxu0 %v54
  %319 = vmatprep.subr.mxu0 0.0
  %320 = vmatpush1.msra.mxu0 %v55
  %321 = vmatprep.subr.mxu0 0.0
  %322 = vmatpush1.msra.mxu0 %v56
  %323 = vmatprep.subr.mxu0 0.0
  %324 = vmatpush1.msra.mxu0 %v57
  %325 = vmatprep.subr.mxu0 0.0
  %326 = vmatpush1.msra.mxu0 %v58
  %327 = vmatprep.subr.mxu0 0.0
  %328 = vmatpush1.msra.mxu0 %v59
  %329 = vmatprep.subr.mxu0 0.0
  %330 = vmatpush1.msra.mxu0 %v60
  %331 = vmatprep.subr.mxu0 0.0
  %332 = vmatpush1.msra.mxu0 %v61
  %333 = vmatprep.subr.mxu0 0.0
  %334 = vmatpush1.msra.mxu0 %v62
  %335 = vmatprep.subr.mxu0 0.0
  %336 = vmatpush1.msra.mxu0 %v63
  %337 = vmatprep.mubr.f32.mxu0 %v244
  %338 = vmatmul.mubr.f32.gmra.mrb[0].mxu0 %v243
  %v339 = vpop.f32.mrb[0].mxu0
  %v340 = vadd.f32 0.0, %v339
  %v341 = vpop.f32.mrb[0].mxu0
  %342 = vmatprep.mubr.f32.mxu0 %v246
  %343 = vmatmul.mubr.f32.gmra.mrb[0].mxu0 %v245
  %v344 = vpop.f32.mrb[0].mxu0
  %v345 = vadd.f32 0.0, %v344
  %v346 = vpop.f32.mrb[0].mxu0
  %347 = vmatprep.mubr.f32.mxu0 %v248
  %348 = vmatmul.mubr.f32.gmra.mrb[0].mxu0 %v247
  %v349 = vpop.f32.mrb[0].mxu0
  %v350 = vadd.f32 0.0, %v349
  %v351 = vpop.f32.mrb[0].mxu0
  %352 = vmatprep.mubr.f32.mxu0 %v250
  %353 = vmatmul.mubr.f32.gmra.mrb[0].mxu0 %v249
  %v354 = vpop.f32.mrb[0].mxu0
  %v355 = vadd.f32 0.0, %v354
  %v356 = vpop.f32.mrb[0].mxu0
  %357 = vmatprep.mubr.f32.mxu0 %v252
  %358 = vmatmul.mubr.f32.gmra.mrb[0].mxu0 %v251
  %v359 = vpop.f32.mrb[0].mxu0
  %v360 = vadd.f32 0.0, %v359
  %v361 = vpop.f32.mrb[0].mxu0
  %362 = vmatprep.mubr.f32.mxu0 %v254
  %363 = vmatmul.mubr.f32.gmra.mrb[0].mxu0 %v253
  %v364 = vpop.f32.mrb[0].mxu0
  %v365 = vadd.f32 0.0, %v364
  %v366 = vpop.f32.mrb[0].mxu0
  %367 = vmatprep.mubr.f32.mxu0 %v256
  %368 = vmatmul.mubr.f32.gmra.mrb[0].mxu0 %v255
  %v369 = vpop.f32.mrb[0].mxu0
  %v370 = vadd.f32 0.0, %v369
  %v371 = vpop.f32.mrb[0].mxu0
  %372 = vmatprep.mubr.f32.mxu0 %v258
  %373 = vmatmul.mubr.f32.gmra.mrb[0].mxu0 %v257
  %v374 = vpop.f32.mrb[0].mxu0
  %v375 = vadd.f32 0.0, %v374
  %v376 = vpop.f32.mrb[0].mxu0
  %377 = vmatprep.mubr.f32.mxu0 %v260
  %378 = vmatmul.mubr.f32.gmra.mrb[0].mxu0 %v259
  %v379 = vpop.f32.mrb[0].mxu0
  %v380 = vadd.f32 0.0, %v379
  %v381 = vpop.f32.mrb[0].mxu0
  %382 = vmatprep.mubr.f32.mxu0 %v262
  %383 = vmatmul.mubr.f32.gmra.mrb[0].mxu0 %v261
  %v384 = vpop.f32.mrb[0].mxu0
  %v385 = vadd.f32 0.0, %v384
  %v386 = vpop.f32.mrb[0].mxu0
  %387 = vmatprep.mubr.f32.mxu0 %v264
  %388 = vmatmul.mubr.f32.gmra.mrb[0].mxu0 %v263
  %v389 = vpop.f32.mrb[0].mxu0
  %v390 = vadd.f32 0.0, %v389
  %v391 = vpop.f32.mrb[0].mxu0
  %392 = vmatprep.mubr.f32.mxu0 %v266
  %393 = vmatmul.mubr.f32.gmra.mrb[0].mxu0 %v265
  %v394 = vpop.f32.mrb[0].mxu0
  %v395 = vadd.f32 0.0, %v394
  %v396 = vpop.f32.mrb[0].mxu0
  %397 = vmatprep.mubr.f32.mxu0 %v268
  %398 = vmatmul.mubr.f32.gmra.mrb[0].mxu0 %v267
  %v399 = vpop.f32.mrb[0].mxu0
  %v400 = vadd.f32 0.0, %v399
  %v401 = vpop.f32.mrb[0].mxu0
  %402 = vmatprep.mubr.f32.mxu0 %v270
  %403 = vmatmul.mubr.f32.gmra.mrb[0].mxu0 %v269
  %v404 = vpop.f32.mrb[0].mxu0
  %v405 = vadd.f32 0.0, %v404
  %v406 = vpop.f32.mrb[0].mxu0
  %407 = vmatprep.mubr.f32.mxu0 %v272
  %408 = vmatmul.mubr.f32.gmra.mrb[0].mxu0 %v271
  %v409 = vpop.f32.mrb[0].mxu0
  %v410 = vadd.f32 0.0, %v409
  %v411 = vpop.f32.mrb[0].mxu0
  %412 = vdwg.mxu0
  %s413 = scalar_lea.vmem %s2, 64
  %v414 = vld [vmem:[%s413] sm:$0xff]
  %v415 = vld [vmem:[%s413 + $0x8] sm:$0xff]
  %v416 = vld [vmem:[%s413 + $0x10] sm:$0xff]
  %v417 = vld [vmem:[%s413 + $0x18] sm:$0xff]
  %v418 = vld [vmem:[%s413 + $0x20] sm:$0xff]
  %v419 = vld [vmem:[%s413 + $0x28] sm:$0xff]
  %v420 = vld [vmem:[%s413 + $0x30] sm:$0xff]
  %v421 = vld [vmem:[%s413 + $0x38] sm:$0xff]
  %vm422 = vcmask 261120
  %v424 = vsel %vm422, %v340, 0
  %v427 = vsel %vm422, %v345, 0
  %v430 = vsel %vm422, %v350, 0
  %v433 = vsel %vm422, %v355, 0
  %v436 = vsel %vm422, %v360, 0
  %v439 = vsel %vm422, %v365, 0
  %v442 = vsel %vm422, %v370, 0
  %v445 = vsel %vm422, %v375, 0
  %v448 = vsel %vm422, %v380, 0
  %v451 = vsel %vm422, %v385, 0
  %v454 = vsel %vm422, %v390, 0
  %v457 = vsel %vm422, %v395, 0
  %v460 = vsel %vm422, %v400, 0
  %v463 = vsel %vm422, %v405, 0
  %v466 = vsel %vm422, %v410, 0
  %468 = vmatprep.subr.mxu0 %v415
  %469 = vmatpush1.msra.mxu0 %v414
  %470 = vmatprep.subr.mxu0 %v417
  %471 = vmatpush1.msra.mxu0 %v416
  %472 = vmatprep.subr.mxu0 %v419
  %473 = vmatpush1.msra.mxu0 %v418
  %474 = vmatprep.subr.mxu0 %v421
  %475 = vmatpush1.msra.mxu0 %v420
  %476 = vmatprep.subr.mxu0 0.0
  %477 = vmatpush1.msra.mxu0 0.0
  %478 = vmatprep.subr.mxu0 0.0
  %479 = vmatpush1.msra.mxu0 0.0
  %480 = vmatprep.subr.mxu0 0.0
  %481 = vmatpush1.msra.mxu0 0.0
  %482 = vmatprep.subr.mxu0 0.0
  %483 = vmatpush1.msra.mxu0 0.0
  %484 = vmatprep.subr.mxu0 0.0
  %485 = vmatpush1.msra.mxu0 0.0
  %486 = vmatprep.subr.mxu0 0.0
  %487 = vmatpush1.msra.mxu0 0.0
  %488 = vmatprep.subr.mxu0 0.0
  %489 = vmatpush1.msra.mxu0 0.0
  %490 = vmatprep.subr.mxu0 0.0
  %491 = vmatpush1.msra.mxu0 0.0
  %492 = vmatprep.subr.mxu0 0.0
  %493 = vmatpush1.msra.mxu0 0.0
  %494 = vmatprep.subr.mxu0 0.0
  %495 = vmatpush1.msra.mxu0 0.0
  %496 = vmatprep.subr.mxu0 0.0
  %497 = vmatpush1.msra.mxu0 0.0
  %498 = vmatprep.subr.mxu0 0.0
  %499 = vmatpush1.msra.mxu0 0.0
  %500 = vmatprep.subr.mxu0 0.0
  %501 = vmatpush1.msra.mxu0 0.0
  %502 = vmatprep.subr.mxu0 0.0
  %503 = vmatpush1.msra.mxu0 0.0
  %504 = vmatprep.subr.mxu0 0.0
  %505 = vmatpush1.msra.mxu0 0.0
  %506 = vmatprep.subr.mxu0 0.0
  %507 = vmatpush1.msra.mxu0 0.0
  %508 = vmatprep.subr.mxu0 0.0
  %509 = vmatpush1.msra.mxu0 0.0
  %510 = vmatprep.subr.mxu0 0.0
  %511 = vmatpush1.msra.mxu0 0.0
  %512 = vmatprep.subr.mxu0 0.0
  %513 = vmatpush1.msra.mxu0 0.0
  %514 = vmatprep.subr.mxu0 0.0
  %515 = vmatpush1.msra.mxu0 0.0
  %516 = vmatprep.subr.mxu0 0.0
  %517 = vmatpush1.msra.mxu0 0.0
  %518 = vmatprep.subr.mxu0 0.0
  %519 = vmatpush1.msra.mxu0 0.0
  %520 = vmatprep.subr.mxu0 0.0
  %521 = vmatpush1.msra.mxu0 0.0
  %522 = vmatprep.subr.mxu0 0.0
  %523 = vmatpush1.msra.mxu0 0.0
  %524 = vmatprep.subr.mxu0 0.0
  %525 = vmatpush1.msra.mxu0 0.0
  %526 = vmatprep.subr.mxu0 0.0
  %527 = vmatpush1.msra.mxu0 0.0
  %528 = vmatprep.subr.mxu0 0.0
  %529 = vmatpush1.msra.mxu0 0.0
  %530 = vmatprep.subr.mxu0 0.0
  %531 = vmatpush1.msra.mxu0 0.0
  %532 = vmatprep.mubr.f32.mxu0 0.0
  %533 = vmatmul.mubr.f32.gmra.mrb[0].mxu0 %v424
  %v534 = vpop.f32.mrb[0].mxu0
  %v535 = vadd.f32 0.0, %v534
  %v536 = vpop.f32.mrb[0].mxu0
  %v537 = vadd.f32 0.0, %v536
  %538 = vmatprep.mubr.f32.mxu0 0.0
  %539 = vmatmul.mubr.f32.gmra.mrb[0].mxu0 %v427
  %v540 = vpop.f32.mrb[0].mxu0
  %v541 = vadd.f32 0.0, %v540
  %v542 = vpop.f32.mrb[0].mxu0
  %v543 = vadd.f32 0.0, %v542
  %544 = vmatprep.mubr.f32.mxu0 0.0
  %545 = vmatmul.mubr.f32.gmra.mrb[0].mxu0 %v430
  %v546 = vpop.f32.mrb[0].mxu0
  %v547 = vadd.f32 0.0, %v546
  %v548 = vpop.f32.mrb[0].mxu0
  %v549 = vadd.f32 0.0, %v548
  %550 = vmatprep.mubr.f32.mxu0 0.0
  %551 = vmatmul.mubr.f32.gmra.mrb[0].mxu0 %v433
  %v552 = vpop.f32.mrb[0].mxu0
  %v553 = vadd.f32 0.0, %v552
  %v554 = vpop.f32.mrb[0].mxu0
  %v555 = vadd.f32 0.0, %v554
  %556 = vmatprep.mubr.f32.mxu0 0.0
  %557 = vmatmul.mubr.f32.gmra.mrb[0].mxu0 %v436
  %v558 = vpop.f32.mrb[0].mxu0
  %v559 = vadd.f32 0.0, %v558
  %v560 = vpop.f32.mrb[0].mxu0
  %v561 = vadd.f32 0.0, %v560
  %562 = vmatprep.mubr.f32.mxu0 0.0
  %563 = vmatmul.mubr.f32.gmra.mrb[0].mxu0 %v439
  %v564 = vpop.f32.mrb[0].mxu0
  %v565 = vadd.f32 0.0, %v564
  %v566 = vpop.f32.mrb[0].mxu0
  %v567 = vadd.f32 0.0, %v566
  %568 = vmatprep.mubr.f32.mxu0 0.0
  %569 = vmatmul.mubr.f32.gmra.mrb[0].mxu0 %v442
  %v570 = vpop.f32.mrb[0].mxu0
  %v571 = vadd.f32 0.0, %v570
  %v572 = vpop.f32.mrb[0].mxu0
  %v573 = vadd.f32 0.0, %v572
  %574 = vmatprep.mubr.f32.mxu0 0.0
  %575 = vmatmul.mubr.f32.gmra.mrb[0].mxu0 %v445
  %v576 = vpop.f32.mrb[0].mxu0
  %v577 = vadd.f32 0.0, %v576
  %v578 = vpop.f32.mrb[0].mxu0
  %v579 = vadd.f32 0.0, %v578
  %580 = vmatprep.mubr.f32.mxu0 0.0
  %581 = vmatmul.mubr.f32.gmra.mrb[0].mxu0 %v448
  %v582 = vpop.f32.mrb[0].mxu0
  %v583 = vadd.f32 0.0, %v582
  %v584 = vpop.f32.mrb[0].mxu0
  %v585 = vadd.f32 0.0, %v584
  %586 = vmatprep.mubr.f32.mxu0 0.0
  %587 = vmatmul.mubr.f32.gmra.mrb[0].mxu0 %v451
  %v588 = vpop.f32.mrb[0].mxu0
  %v589 = vadd.f32 0.0, %v588
  %v590 = vpop.f32.mrb[0].mxu0
  %v591 = vadd.f32 0.0, %v590
  %592 = vmatprep.mubr.f32.mxu0 0.0
  %593 = vmatmul.mubr.f32.gmra.mrb[0].mxu0 %v454
  %v594 = vpop.f32.mrb[0].mxu0
  %v595 = vadd.f32 0.0, %v594
  %v596 = vpop.f32.mrb[0].mxu0
  %v597 = vadd.f32 0.0, %v596
  %598 = vmatprep.mubr.f32.mxu0 0.0
  %599 = vmatmul.mubr.f32.gmra.mrb[0].mxu0 %v457
  %v600 = vpop.f32.mrb[0].mxu0
  %v601 = vadd.f32 0.0, %v600
  %v602 = vpop.f32.mrb[0].mxu0
  %v603 = vadd.f32 0.0, %v602
  %604 = vmatprep.mubr.f32.mxu0 0.0
  %605 = vmatmul.mubr.f32.gmra.mrb[0].mxu0 %v460
  %v606 = vpop.f32.mrb[0].mxu0
  %v607 = vadd.f32 0.0, %v606
  %v608 = vpop.f32.mrb[0].mxu0
  %v609 = vadd.f32 0.0, %v608
  %610 = vmatprep.mubr.f32.mxu0 0.0
  %611 = vmatmul.mubr.f32.gmra.mrb[0].mxu0 %v463
  %v612 = vpop.f32.mrb[0].mxu0
  %v613 = vadd.f32 0.0, %v612
  %v614 = vpop.f32.mrb[0].mxu0
  %v615 = vadd.f32 0.0, %v614
  %616 = vmatprep.mubr.f32.mxu0 0.0
  %617 = vmatmul.mubr.f32.gmra.mrb[0].mxu0 %v466
  %v618 = vpop.f32.mrb[0].mxu0
  %v619 = vadd.f32 0.0, %v618
  %v620 = vpop.f32.mrb[0].mxu0
  %v621 = vadd.f32 0.0, %v620
  %622 = vdwg.mxu0
  %v624 = vsel %vm422, %v161, 0
  %v627 = vsel %vm422, %v166, 0
  %v630 = vsel %vm422, %v171, 0
  %v633 = vsel %vm422, %v176, 0
  %v636 = vsel %vm422, %v181, 0
  %v639 = vsel %vm422, %v186, 0
  %v642 = vsel %vm422, %v191, 0
  %v645 = vsel %vm422, %v196, 0
  %v648 = vsel %vm422, %v201, 0
  %v651 = vsel %vm422, %v206, 0
  %v654 = vsel %vm422, %v211, 0
  %v657 = vsel %vm422, %v216, 0
  %v660 = vsel %vm422, %v221, 0
  %v663 = vsel %vm422, %v226, 0
  %v666 = vsel %vm422, %v231, 0
  %668 = vmatprep.subr.mxu0 %v235
  %669 = vmatpush1.msra.mxu0 %v234
  %670 = vmatprep.subr.mxu0 %v237
  %671 = vmatpush1.msra.mxu0 %v236
  %672 = vmatprep.subr.mxu0 %v239
  %673 = vmatpush1.msra.mxu0 %v238
  %674 = vmatprep.subr.mxu0 %v241
  %675 = vmatpush1.msra.mxu0 %v240
  %676 = vmatprep.subr.mxu0 0.0
  %677 = vmatpush1.msra.mxu0 0.0
  %678 = vmatprep.subr.mxu0 0.0
  %679 = vmatpush1.msra.mxu0 0.0
  %680 = vmatprep.subr.mxu0 0.0
  %681 = vmatpush1.msra.mxu0 0.0
  %682 = vmatprep.subr.mxu0 0.0
  %683 = vmatpush1.msra.mxu0 0.0
  %684 = vmatprep.subr.mxu0 0.0
  %685 = vmatpush1.msra.mxu0 0.0
  %686 = vmatprep.subr.mxu0 0.0
  %687 = vmatpush1.msra.mxu0 0.0
  %688 = vmatprep.subr.mxu0 0.0
  %689 = vmatpush1.msra.mxu0 0.0
  %690 = vmatprep.subr.mxu0 0.0
  %691 = vmatpush1.msra.mxu0 0.0
  %692 = vmatprep.subr.mxu0 0.0
  %693 = vmatpush1.msra.mxu0 0.0
  %694 = vmatprep.subr.mxu0 0.0
  %695 = vmatpush1.msra.mxu0 0.0
  %696 = vmatprep.subr.mxu0 0.0
  %697 = vmatpush1.msra.mxu0 0.0
  %698 = vmatprep.subr.mxu0 0.0
  %699 = vmatpush1.msra.mxu0 0.0
  %700 = vmatprep.subr.mxu0 0.0
  %701 = vmatpush1.msra.mxu0 0.0
  %702 = vmatprep.subr.mxu0 0.0
  %703 = vmatpush1.msra.mxu0 0.0
  %704 = vmatprep.subr.mxu0 0.0
  %705 = vmatpush1.msra.mxu0 0.0
  %706 = vmatprep.subr.mxu0 0.0
  %707 = vmatpush1.msra.mxu0 0.0
  %708 = vmatprep.subr.mxu0 0.0
  %709 = vmatpush1.msra.mxu0 0.0
  %710 = vmatprep.subr.mxu0 0.0
  %711 = vmatpush1.msra.mxu0 0.0
  %712 = vmatprep.subr.mxu0 0.0
  %713 = vmatpush1.msra.mxu0 0.0
  %714 = vmatprep.subr.mxu0 0.0
  %715 = vmatpush1.msra.mxu0 0.0
  %716 = vmatprep.subr.mxu0 0.0
  %717 = vmatpush1.msra.mxu0 0.0
  %718 = vmatprep.subr.mxu0 0.0
  %719 = vmatpush1.msra.mxu0 0.0
  %720 = vmatprep.subr.mxu0 0.0
  %721 = vmatpush1.msra.mxu0 0.0
  %722 = vmatprep.subr.mxu0 0.0
  %723 = vmatpush1.msra.mxu0 0.0
  %724 = vmatprep.subr.mxu0 0.0
  %725 = vmatpush1.msra.mxu0 0.0
  %726 = vmatprep.subr.mxu0 0.0
  %727 = vmatpush1.msra.mxu0 0.0
  %728 = vmatprep.subr.mxu0 0.0
  %729 = vmatpush1.msra.mxu0 0.0
  %730 = vmatprep.subr.mxu0 0.0
  %731 = vmatpush1.msra.mxu0 0.0
  %732 = vmatprep.mubr.f32.mxu0 0.0
  %733 = vmatmul.mubr.f32.gmra.mrb[0].mxu0 %v624
  %v734 = vpop.f32.mrb[0].mxu0
  %v735 = vadd.f32 %v535, %v734
  %v736 = vpop.f32.mrb[0].mxu0
  %v737 = vadd.f32 %v537, %v736
  %738 = vmatprep.mubr.f32.mxu0 0.0
  %739 = vmatmul.mubr.f32.gmra.mrb[0].mxu0 %v627
  %v740 = vpop.f32.mrb[0].mxu0
  %v741 = vadd.f32 %v541, %v740
  %v742 = vpop.f32.mrb[0].mxu0
  %v743 = vadd.f32 %v543, %v742
  %744 = vmatprep.mubr.f32.mxu0 0.0
  %745 = vmatmul.mubr.f32.gmra.mrb[0].mxu0 %v630
  %v746 = vpop.f32.mrb[0].mxu0
  %v747 = vadd.f32 %v547, %v746
  %v748 = vpop.f32.mrb[0].mxu0
  %v749 = vadd.f32 %v549, %v748
  %750 = vmatprep.mubr.f32.mxu0 0.0
  %751 = vmatmul.mubr.f32.gmra.mrb[0].mxu0 %v633
  %v752 = vpop.f32.mrb[0].mxu0
  %v753 = vadd.f32 %v553, %v752
  %v754 = vpop.f32.mrb[0].mxu0
  %v755 = vadd.f32 %v555, %v754
  %756 = vmatprep.mubr.f32.mxu0 0.0
  %757 = vmatmul.mubr.f32.gmra.mrb[0].mxu0 %v636
  %v758 = vpop.f32.mrb[0].mxu0
  %v759 = vadd.f32 %v559, %v758
  %v760 = vpop.f32.mrb[0].mxu0
  %v761 = vadd.f32 %v561, %v760
  %762 = vmatprep.mubr.f32.mxu0 0.0
  %763 = vmatmul.mubr.f32.gmra.mrb[0].mxu0 %v639
  %v764 = vpop.f32.mrb[0].mxu0
  %v765 = vadd.f32 %v565, %v764
  %v766 = vpop.f32.mrb[0].mxu0
  %v767 = vadd.f32 %v567, %v766
  %768 = vmatprep.mubr.f32.mxu0 0.0
  %769 = vmatmul.mubr.f32.gmra.mrb[0].mxu0 %v642
  %v770 = vpop.f32.mrb[0].mxu0
  %v771 = vadd.f32 %v571, %v770
  %v772 = vpop.f32.mrb[0].mxu0
  %v773 = vadd.f32 %v573, %v772
  %774 = vmatprep.mubr.f32.mxu0 0.0
  %775 = vmatmul.mubr.f32.gmra.mrb[0].mxu0 %v645
  %v776 = vpop.f32.mrb[0].mxu0
  %v777 = vadd.f32 %v577, %v776
  %v778 = vpop.f32.mrb[0].mxu0
  %v779 = vadd.f32 %v579, %v778
  %780 = vmatprep.mubr.f32.mxu0 0.0
  %781 = vmatmul.mubr.f32.gmra.mrb[0].mxu0 %v648
  %v782 = vpop.f32.mrb[0].mxu0
  %v783 = vadd.f32 %v583, %v782
  %v784 = vpop.f32.mrb[0].mxu0
  %v785 = vadd.f32 %v585, %v784
  %786 = vmatprep.mubr.f32.mxu0 0.0
  %787 = vmatmul.mubr.f32.gmra.mrb[0].mxu0 %v651
  %v788 = vpop.f32.mrb[0].mxu0
  %v789 = vadd.f32 %v589, %v788
  %v790 = vpop.f32.mrb[0].mxu0
  %v791 = vadd.f32 %v591, %v790
  %792 = vmatprep.mubr.f32.mxu0 0.0
  %793 = vmatmul.mubr.f32.gmra.mrb[0].mxu0 %v654
  %v794 = vpop.f32.mrb[0].mxu0
  %v795 = vadd.f32 %v595, %v794
  %v796 = vpop.f32.mrb[0].mxu0
  %v797 = vadd.f32 %v597, %v796
  %798 = vmatprep.mubr.f32.mxu0 0.0
  %799 = vmatmul.mubr.f32.gmra.mrb[0].mxu0 %v657
  %v800 = vpop.f32.mrb[0].mxu0
  %v801 = vadd.f32 %v601, %v800
  %v802 = vpop.f32.mrb[0].mxu0
  %v803 = vadd.f32 %v603, %v802
  %804 = vmatprep.mubr.f32.mxu0 0.0
  %805 = vmatmul.mubr.f32.gmra.mrb[0].mxu0 %v660
  %v806 = vpop.f32.mrb[0].mxu0
  %v807 = vadd.f32 %v607, %v806
  %v808 = vpop.f32.mrb[0].mxu0
  %v809 = vadd.f32 %v609, %v808
  %810 = vmatprep.mubr.f32.mxu0 0.0
  %811 = vmatmul.mubr.f32.gmra.mrb[0].mxu0 %v663
  %v812 = vpop.f32.mrb[0].mxu0
  %v813 = vadd.f32 %v613, %v812
  %v814 = vpop.f32.mrb[0].mxu0
  %v815 = vadd.f32 %v615, %v814
  %816 = vmatprep.mubr.f32.mxu0 0.0
  %817 = vmatmul.mubr.f32.gmra.mrb[0].mxu0 %v666
  %v818 = vpop.f32.mrb[0].mxu0
  %v819 = vadd.f32 %v619, %v818
  %v820 = vpop.f32.mrb[0].mxu0
  %v821 = vadd.f32 %v621, %v820
  %822 = vdwg.mxu0
  %s823 = scalar_lea.vmem %s1, 480
  %v824 = vld [vmem:[%s823] sm:$0xff]
  %v825 = vld [vmem:[%s823 + $0x8] sm:$0xff]
  %v826 = vld [vmem:[%s823 + $0x10] sm:$0xff]
  %v827 = vld [vmem:[%s823 + $0x18] sm:$0xff]
  %v828 = vld [vmem:[%s823 + $0x20] sm:$0xff]
  %v829 = vld [vmem:[%s823 + $0x28] sm:$0xff]
  %v830 = vld [vmem:[%s823 + $0x30] sm:$0xff]
  %v831 = vld [vmem:[%s823 + $0x38] sm:$0xff]
  %v832 = vld [vmem:[%s823 + $0x40] sm:$0xff]
  %v833 = vld [vmem:[%s823 + $0x48] sm:$0xff]
  %v834 = vld [vmem:[%s823 + $0x50] sm:$0xff]
  %v835 = vld [vmem:[%s823 + $0x58] sm:$0xff]
  %v836 = vld [vmem:[%s823 + $0x60] sm:$0xff]
  %v837 = vld [vmem:[%s823 + $0x68] sm:$0xff]
  %v838 = vld [vmem:[%s823 + $0x70] sm:$0xff]
  %v839 = vld [vmem:[%s823 + $0x78] sm:$0xff]
  %v840 = vld [vmem:[%s823 + $0x80] sm:$0xff]
  %v841 = vld [vmem:[%s823 + $0x88] sm:$0xff]
  %v842 = vld [vmem:[%s823 + $0x90] sm:$0xff]
  %v843 = vld [vmem:[%s823 + $0x98] sm:$0xff]
  %v844 = vld [vmem:[%s823 + $0xa0] sm:$0xff]
  %v845 = vld [vmem:[%s823 + $0xa8] sm:$0xff]
  %v846 = vld [vmem:[%s823 + $0xb0] sm:$0xff]
  %v847 = vld [vmem:[%s823 + $0xb8] sm:$0xff]
  %v848 = vld [vmem:[%s823 + $0xc0] sm:$0xff]
  %v849 = vld [vmem:[%s823 + $0xc8] sm:$0xff]
  %v850 = vld [vmem:[%s823 + $0xd0] sm:$0xff]
  %v851 = vld [vmem:[%s823 + $0xd8] sm:$0xff]
  %v852 = vld [vmem:[%s823 + $0xe0] sm:$0xff]
  %v853 = vld [vmem:[%s823 + $0xe8] sm:$0xff]
  %854 = vmatprep.subr.mxu0 0.0
  %855 = vmatpush1.msra.mxu0 %v32
  %856 = vmatprep.subr.mxu0 0.0
  %857 = vmatpush1.msra.mxu0 %v33
  %858 = vmatprep.subr.mxu0 0.0
  %859 = vmatpush1.msra.mxu0 %v34
  %860 = vmatprep.subr.mxu0 0.0
  %861 = vmatpush1.msra.mxu0 %v35
  %862 = vmatprep.subr.mxu0 0.0
  %863 = vmatpush1.msra.mxu0 %v36
  %864 = vmatprep.subr.mxu0 0.0
  %865 = vmatpush1.msra.mxu0 %v37
  %866 = vmatprep.subr.mxu0 0.0
  %867 = vmatpush1.msra.mxu0 %v38
  %868 = vmatprep.subr.mxu0 0.0
  %869 = vmatpush1.msra.mxu0 %v39
  %870 = vmatprep.subr.mxu0 0.0
  %871 = vmatpush1.msra.mxu0 %v40
  %872 = vmatprep.subr.mxu0 0.0
  %873 = vmatpush1.msra.mxu0 %v41
  %874 = vmatprep.subr.mxu0 0.0
  %875 = vmatpush1.msra.mxu0 %v42
  %876 = vmatprep.subr.mxu0 0.0
  %877 = vmatpush1.msra.mxu0 %v43
  %878 = vmatprep.subr.mxu0 0.0
  %879 = vmatpush1.msra.mxu0 %v44
  %880 = vmatprep.subr.mxu0 0.0
  %881 = vmatpush1.msra.mxu0 %v45
  %882 = vmatprep.subr.mxu0 0.0
  %883 = vmatpush1.msra.mxu0 %v46
  %884 = vmatprep.subr.mxu0 0.0
  %885 = vmatpush1.msra.mxu0 %v47
  %886 = vmatprep.subr.mxu0 0.0
  %887 = vmatpush1.msra.mxu0 %v48
  %888 = vmatprep.subr.mxu0 0.0
  %889 = vmatpush1.msra.mxu0 %v49
  %890 = vmatprep.subr.mxu0 0.0
  %891 = vmatpush1.msra.mxu0 %v50
  %892 = vmatprep.subr.mxu0 0.0
  %893 = vmatpush1.msra.mxu0 %v51
  %894 = vmatprep.subr.mxu0 0.0
  %895 = vmatpush1.msra.mxu0 %v52
  %896 = vmatprep.subr.mxu0 0.0
  %897 = vmatpush1.msra.mxu0 %v53
  %898 = vmatprep.subr.mxu0 0.0
  %899 = vmatpush1.msra.mxu0 %v54
  %900 = vmatprep.subr.mxu0 0.0
  %901 = vmatpush1.msra.mxu0 %v55
  %902 = vmatprep.subr.mxu0 0.0
  %903 = vmatpush1.msra.mxu0 %v56
  %904 = vmatprep.subr.mxu0 0.0
  %905 = vmatpush1.msra.mxu0 %v57
  %906 = vmatprep.subr.mxu0 0.0
  %907 = vmatpush1.msra.mxu0 %v58
  %908 = vmatprep.subr.mxu0 0.0
  %909 = vmatpush1.msra.mxu0 %v59
  %910 = vmatprep.subr.mxu0 0.0
  %911 = vmatpush1.msra.mxu0 %v60
  %912 = vmatprep.subr.mxu0 0.0
  %913 = vmatpush1.msra.mxu0 %v61
  %914 = vmatprep.subr.mxu0 0.0
  %915 = vmatpush1.msra.mxu0 %v62
  %916 = vmatprep.subr.mxu0 0.0
  %917 = vmatpush1.msra.mxu0 %v63
  %918 = vmatprep.mubr.f32.mxu0 %v825
  %919 = vmatmul.mubr.f32.gmra.mrb[0].mxu0 %v824
  %v920 = vpop.f32.mrb[0].mxu0
  %v921 = vadd.f32 0.0, %v920
  %v922 = vpop.f32.mrb[0].mxu0
  %923 = vmatprep.mubr.f32.mxu0 %v827
  %924 = vmatmul.mubr.f32.gmra.mrb[0].mxu0 %v826
  %v925 = vpop.f32.mrb[0].mxu0
  %v926 = vadd.f32 0.0, %v925
  %v927 = vpop.f32.mrb[0].mxu0
  %928 = vmatprep.mubr.f32.mxu0 %v829
  %929 = vmatmul.mubr.f32.gmra.mrb[0].mxu0 %v828
  %v930 = vpop.f32.mrb[0].mxu0
  %v931 = vadd.f32 0.0, %v930
  %v932 = vpop.f32.mrb[0].mxu0
  %933 = vmatprep.mubr.f32.mxu0 %v831
  %934 = vmatmul.mubr.f32.gmra.mrb[0].mxu0 %v830
  %v935 = vpop.f32.mrb[0].mxu0
  %v936 = vadd.f32 0.0, %v935
  %v937 = vpop.f32.mrb[0].mxu0
  %938 = vmatprep.mubr.f32.mxu0 %v833
  %939 = vmatmul.mubr.f32.gmra.mrb[0].mxu0 %v832
  %v940 = vpop.f32.mrb[0].mxu0
  %v941 = vadd.f32 0.0, %v940
  %v942 = vpop.f32.mrb[0].mxu0
  %943 = vmatprep.mubr.f32.mxu0 %v835
  %944 = vmatmul.mubr.f32.gmra.mrb[0].mxu0 %v834
  %v945 = vpop.f32.mrb[0].mxu0
  %v946 = vadd.f32 0.0, %v945
  %v947 = vpop.f32.mrb[0].mxu0
  %948 = vmatprep.mubr.f32.mxu0 %v837
  %949 = vmatmul.mubr.f32.gmra.mrb[0].mxu0 %v836
  %v950 = vpop.f32.mrb[0].mxu0
  %v951 = vadd.f32 0.0, %v950
  %v952 = vpop.f32.mrb[0].mxu0
  %953 = vmatprep.mubr.f32.mxu0 %v839
  %954 = vmatmul.mubr.f32.gmra.mrb[0].mxu0 %v838
  %v955 = vpop.f32.mrb[0].mxu0
  %v956 = vadd.f32 0.0, %v955
  %v957 = vpop.f32.mrb[0].mxu0
  %958 = vmatprep.mubr.f32.mxu0 %v841
  %959 = vmatmul.mubr.f32.gmra.mrb[0].mxu0 %v840
  %v960 = vpop.f32.mrb[0].mxu0
  %v961 = vadd.f32 0.0, %v960
  %v962 = vpop.f32.mrb[0].mxu0
  %963 = vmatprep.mubr.f32.mxu0 %v843
  %964 = vmatmul.mubr.f32.gmra.mrb[0].mxu0 %v842
  %v965 = vpop.f32.mrb[0].mxu0
  %v966 = vadd.f32 0.0, %v965
  %v967 = vpop.f32.mrb[0].mxu0
  %968 = vmatprep.mubr.f32.mxu0 %v845
  %969 = vmatmul.mubr.f32.gmra.mrb[0].mxu0 %v844
  %v970 = vpop.f32.mrb[0].mxu0
  %v971 = vadd.f32 0.0, %v970
  %v972 = vpop.f32.mrb[0].mxu0
  %973 = vmatprep.mubr.f32.mxu0 %v847
  %974 = vmatmul.mubr.f32.gmra.mrb[0].mxu0 %v846
  %v975 = vpop.f32.mrb[0].mxu0
  %v976 = vadd.f32 0.0, %v975
  %v977 = vpop.f32.mrb[0].mxu0
  %978 = vmatprep.mubr.f32.mxu0 %v849
  %979 = vmatmul.mubr.f32.gmra.mrb[0].mxu0 %v848
  %v980 = vpop.f32.mrb[0].mxu0
  %v981 = vadd.f32 0.0, %v980
  %v982 = vpop.f32.mrb[0].mxu0
  %983 = vmatprep.mubr.f32.mxu0 %v851
  %984 = vmatmul.mubr.f32.gmra.mrb[0].mxu0 %v850
  %v985 = vpop.f32.mrb[0].mxu0
  %v986 = vadd.f32 0.0, %v985
  %v987 = vpop.f32.mrb[0].mxu0
  %988 = vmatprep.mubr.f32.mxu0 %v853
  %989 = vmatmul.mubr.f32.gmra.mrb[0].mxu0 %v852
  %v990 = vpop.f32.mrb[0].mxu0
  %v991 = vadd.f32 0.0, %v990
  %v992 = vpop.f32.mrb[0].mxu0
  %993 = vdwg.mxu0
  %s994 = scalar_lea.vmem %s2, 128
  %v995 = vld [vmem:[%s994] sm:$0xff]
  %v996 = vld [vmem:[%s994 + $0x8] sm:$0xff]
  %v997 = vld [vmem:[%s994 + $0x10] sm:$0xff]
  %v998 = vld [vmem:[%s994 + $0x18] sm:$0xff]
  %v999 = vld [vmem:[%s994 + $0x20] sm:$0xff]
  %v1000 = vld [vmem:[%s994 + $0x28] sm:$0xff]
  %v1001 = vld [vmem:[%s994 + $0x30] sm:$0xff]
  %v1002 = vld [vmem:[%s994 + $0x38] sm:$0xff]
  %v1004 = vsel %vm422, %v921, 0
  %v1007 = vsel %vm422, %v926, 0
  %v1010 = vsel %vm422, %v931, 0
  %v1013 = vsel %vm422, %v936, 0
  %v1016 = vsel %vm422, %v941, 0
  %v1019 = vsel %vm422, %v946, 0
  %v1022 = vsel %vm422, %v951, 0
  %v1025 = vsel %vm422, %v956, 0
  %v1028 = vsel %vm422, %v961, 0
  %v1031 = vsel %vm422, %v966, 0
  %v1034 = vsel %vm422, %v971, 0
  %v1037 = vsel %vm422, %v976, 0
  %v1040 = vsel %vm422, %v981, 0
  %v1043 = vsel %vm422, %v986, 0
  %v1046 = vsel %vm422, %v991, 0
  %1048 = vmatprep.subr.mxu0 %v996
  %1049 = vmatpush1.msra.mxu0 %v995
  %1050 = vmatprep.subr.mxu0 %v998
  %1051 = vmatpush1.msra.mxu0 %v997
  %1052 = vmatprep.subr.mxu0 %v1000
  %1053 = vmatpush1.msra.mxu0 %v999
  %1054 = vmatprep.subr.mxu0 %v1002
  %1055 = vmatpush1.msra.mxu0 %v1001
  %1056 = vmatprep.subr.mxu0 0.0
  %1057 = vmatpush1.msra.mxu0 0.0
  %1058 = vmatprep.subr.mxu0 0.0
  %1059 = vmatpush1.msra.mxu0 0.0
  %1060 = vmatprep.subr.mxu0 0.0
  %1061 = vmatpush1.msra.mxu0 0.0
  %1062 = vmatprep.subr.mxu0 0.0
  %1063 = vmatpush1.msra.mxu0 0.0
  %1064 = vmatprep.subr.mxu0 0.0
  %1065 = vmatpush1.msra.mxu0 0.0
  %1066 = vmatprep.subr.mxu0 0.0
  %1067 = vmatpush1.msra.mxu0 0.0
  %1068 = vmatprep.subr.mxu0 0.0
  %1069 = vmatpush1.msra.mxu0 0.0
  %1070 = vmatprep.subr.mxu0 0.0
  %1071 = vmatpush1.msra.mxu0 0.0
  %1072 = vmatprep.subr.mxu0 0.0
  %1073 = vmatpush1.msra.mxu0 0.0
  %1074 = vmatprep.subr.mxu0 0.0
  %1075 = vmatpush1.msra.mxu0 0.0
  %1076 = vmatprep.subr.mxu0 0.0
  %1077 = vmatpush1.msra.mxu0 0.0
  %1078 = vmatprep.subr.mxu0 0.0
  %1079 = vmatpush1.msra.mxu0 0.0
  %1080 = vmatprep.subr.mxu0 0.0
  %1081 = vmatpush1.msra.mxu0 0.0
  %1082 = vmatprep.subr.mxu0 0.0
  %1083 = vmatpush1.msra.mxu0 0.0
  %1084 = vmatprep.subr.mxu0 0.0
  %1085 = vmatpush1.msra.mxu0 0.0
  %1086 = vmatprep.subr.mxu0 0.0
  %1087 = vmatpush1.msra.mxu0 0.0
  %1088 = vmatprep.subr.mxu0 0.0
  %1089 = vmatpush1.msra.mxu0 0.0
  %1090 = vmatprep.subr.mxu0 0.0
  %1091 = vmatpush1.msra.mxu0 0.0
  %1092 = vmatprep.subr.mxu0 0.0
  %1093 = vmatpush1.msra.mxu0 0.0
  %1094 = vmatprep.subr.mxu0 0.0
  %1095 = vmatpush1.msra.mxu0 0.0
  %1096 = vmatprep.subr.mxu0 0.0
  %1097 = vmatpush1.msra.mxu0 0.0
  %1098 = vmatprep.subr.mxu0 0.0
  %1099 = vmatpush1.msra.mxu0 0.0
  %1100 = vmatprep.subr.mxu0 0.0
  %1101 = vmatpush1.msra.mxu0 0.0
  %1102 = vmatprep.subr.mxu0 0.0
  %1103 = vmatpush1.msra.mxu0 0.0
  %1104 = vmatprep.subr.mxu0 0.0
  %1105 = vmatpush1.msra.mxu0 0.0
  %1106 = vmatprep.subr.mxu0 0.0
  %1107 = vmatpush1.msra.mxu0 0.0
  %1108 = vmatprep.subr.mxu0 0.0
  %1109 = vmatpush1.msra.mxu0 0.0
  %1110 = vmatprep.subr.mxu0 0.0
  %1111 = vmatpush1.msra.mxu0 0.0
  %1112 = vmatprep.mubr.f32.mxu0 0.0
  %1113 = vmatmul.mubr.f32.gmra.mrb[0].mxu0 %v1004
  %v1114 = vpop.f32.mrb[0].mxu0
  %v1115 = vadd.f32 0.0, %v1114
  %v1116 = vpop.f32.mrb[0].mxu0
  %v1117 = vadd.f32 0.0, %v1116
  %1118 = vmatprep.mubr.f32.mxu0 0.0
  %1119 = vmatmul.mubr.f32.gmra.mrb[0].mxu0 %v1007
  %v1120 = vpop.f32.mrb[0].mxu0
  %v1121 = vadd.f32 0.0, %v1120
  %v1122 = vpop.f32.mrb[0].mxu0
  %v1123 = vadd.f32 0.0, %v1122
  %1124 = vmatprep.mubr.f32.mxu0 0.0
  %1125 = vmatmul.mubr.f32.gmra.mrb[0].mxu0 %v1010
  %v1126 = vpop.f32.mrb[0].mxu0
  %v1127 = vadd.f32 0.0, %v1126
  %v1128 = vpop.f32.mrb[0].mxu0
  %v1129 = vadd.f32 0.0, %v1128
  %1130 = vmatprep.mubr.f32.mxu0 0.0
  %1131 = vmatmul.mubr.f32.gmra.mrb[0].mxu0 %v1013
  %v1132 = vpop.f32.mrb[0].mxu0
  %v1133 = vadd.f32 0.0, %v1132
  %v1134 = vpop.f32.mrb[0].mxu0
  %v1135 = vadd.f32 0.0, %v1134
  %1136 = vmatprep.mubr.f32.mxu0 0.0
  %1137 = vmatmul.mubr.f32.gmra.mrb[0].mxu0 %v1016
  %v1138 = vpop.f32.mrb[0].mxu0
  %v1139 = vadd.f32 0.0, %v1138
  %v1140 = vpop.f32.mrb[0].mxu0
  %v1141 = vadd.f32 0.0, %v1140
  %1142 = vmatprep.mubr.f32.mxu0 0.0
  %1143 = vmatmul.mubr.f32.gmra.mrb[0].mxu0 %v1019
  %v1144 = vpop.f32.mrb[0].mxu0
  %v1145 = vadd.f32 0.0, %v1144
  %v1146 = vpop.f32.mrb[0].mxu0
  %v1147 = vadd.f32 0.0, %v1146
  %1148 = vmatprep.mubr.f32.mxu0 0.0
  %1149 = vmatmul.mubr.f32.gmra.mrb[0].mxu0 %v1022
  %v1150 = vpop.f32.mrb[0].mxu0
  %v1151 = vadd.f32 0.0, %v1150
  %v1152 = vpop.f32.mrb[0].mxu0
  %v1153 = vadd.f32 0.0, %v1152
  %1154 = vmatprep.mubr.f32.mxu0 0.0
  %1155 = vmatmul.mubr.f32.gmra.mrb[0].mxu0 %v1025
  %v1156 = vpop.f32.mrb[0].mxu0
  %v1157 = vadd.f32 0.0, %v1156
  %v1158 = vpop.f32.mrb[0].mxu0
  %v1159 = vadd.f32 0.0, %v1158
  %1160 = vmatprep.mubr.f32.mxu0 0.0
  %1161 = vmatmul.mubr.f32.gmra.mrb[0].mxu0 %v1028
  %v1162 = vpop.f32.mrb[0].mxu0
  %v1163 = vadd.f32 0.0, %v1162
  %v1164 = vpop.f32.mrb[0].mxu0
  %v1165 = vadd.f32 0.0, %v1164
  %1166 = vmatprep.mubr.f32.mxu0 0.0
  %1167 = vmatmul.mubr.f32.gmra.mrb[0].mxu0 %v1031
  %v1168 = vpop.f32.mrb[0].mxu0
  %v1169 = vadd.f32 0.0, %v1168
  %v1170 = vpop.f32.mrb[0].mxu0
  %v1171 = vadd.f32 0.0, %v1170
  %1172 = vmatprep.mubr.f32.mxu0 0.0
  %1173 = vmatmul.mubr.f32.gmra.mrb[0].mxu0 %v1034
  %v1174 = vpop.f32.mrb[0].mxu0
  %v1175 = vadd.f32 0.0, %v1174
  %v1176 = vpop.f32.mrb[0].mxu0
  %v1177 = vadd.f32 0.0, %v1176
  %1178 = vmatprep.mubr.f32.mxu0 0.0
  %1179 = vmatmul.mubr.f32.gmra.mrb[0].mxu0 %v1037
  %v1180 = vpop.f32.mrb[0].mxu0
  %v1181 = vadd.f32 0.0, %v1180
  %v1182 = vpop.f32.mrb[0].mxu0
  %v1183 = vadd.f32 0.0, %v1182
  %1184 = vmatprep.mubr.f32.mxu0 0.0
  %1185 = vmatmul.mubr.f32.gmra.mrb[0].mxu0 %v1040
  %v1186 = vpop.f32.mrb[0].mxu0
  %v1187 = vadd.f32 0.0, %v1186
  %v1188 = vpop.f32.mrb[0].mxu0
  %v1189 = vadd.f32 0.0, %v1188
  %1190 = vmatprep.mubr.f32.mxu0 0.0
  %1191 = vmatmul.mubr.f32.gmra.mrb[0].mxu0 %v1043
  %v1192 = vpop.f32.mrb[0].mxu0
  %v1193 = vadd.f32 0.0, %v1192
  %v1194 = vpop.f32.mrb[0].mxu0
  %v1195 = vadd.f32 0.0, %v1194
  %1196 = vmatprep.mubr.f32.mxu0 0.0
  %1197 = vmatmul.mubr.f32.gmra.mrb[0].mxu0 %v1046
  %v1198 = vpop.f32.mrb[0].mxu0
  %v1199 = vadd.f32 0.0, %v1198
  %v1200 = vpop.f32.mrb[0].mxu0
  %v1201 = vadd.f32 0.0, %v1200
  %1202 = vdwg.mxu0
  %v1203 = vadd.f32 %v735, %v1115
  %v1204 = vadd.f32 %v737, %v1117
  %v1205 = vadd.f32 %v741, %v1121
  %v1206 = vadd.f32 %v743, %v1123
  %v1207 = vadd.f32 %v747, %v1127
  %v1208 = vadd.f32 %v749, %v1129
  %v1209 = vadd.f32 %v753, %v1133
  %v1210 = vadd.f32 %v755, %v1135
  %v1211 = vadd.f32 %v759, %v1139
  %v1212 = vadd.f32 %v761, %v1141
  %v1213 = vadd.f32 %v765, %v1145
  %v1214 = vadd.f32 %v767, %v1147
  %v1215 = vadd.f32 %v771, %v1151
  %v1216 = vadd.f32 %v773, %v1153
  %v1217 = vadd.f32 %v777, %v1157
  %v1218 = vadd.f32 %v779, %v1159
  %v1219 = vadd.f32 %v783, %v1163
  %v1220 = vadd.f32 %v785, %v1165
  %v1221 = vadd.f32 %v789, %v1169
  %v1222 = vadd.f32 %v791, %v1171
  %v1223 = vadd.f32 %v795, %v1175
  %v1224 = vadd.f32 %v797, %v1177
  %v1225 = vadd.f32 %v801, %v1181
  %v1226 = vadd.f32 %v803, %v1183
  %v1227 = vadd.f32 %v807, %v1187
  %v1228 = vadd.f32 %v809, %v1189
  %v1229 = vadd.f32 %v813, %v1193
  %v1230 = vadd.f32 %v815, %v1195
  %v1231 = vadd.f32 %v819, %v1199
  %v1232 = vadd.f32 %v821, %v1201
  %v1233 = vld [vmem:[%s3] sm:$0x3]
  %v1235 = vlaneseq
  %v1236 = vshrl.u32 %v1235, 7
  %v1237 = vsub.s32 0, %v1236
  %v1238 = vrot.slane %v1233, %v1237
  %v1239 = vlaneseq
  %v1240 = vshrl.u32 %v1239, 7
  %v1241 = vsub.s32 1, %v1240
  %v1242 = vrot.slane %v1233, %v1241
  %v1245 = vadd.f32 %v1203, %v1238
  %v1246 = vadd.f32 %v1204, %v1242
  %v1247 = vadd.f32 %v1205, %v1238
  %v1248 = vadd.f32 %v1206, %v1242
  %v1249 = vadd.f32 %v1207, %v1238
  %v1250 = vadd.f32 %v1208, %v1242
  %v1251 = vadd.f32 %v1209, %v1238
  %v1252 = vadd.f32 %v1210, %v1242
  %v1253 = vadd.f32 %v1211, %v1238
  %v1254 = vadd.f32 %v1212, %v1242
  %v1255 = vadd.f32 %v1213, %v1238
  %v1256 = vadd.f32 %v1214, %v1242
  %v1257 = vadd.f32 %v1215, %v1238
  %v1258 = vadd.f32 %v1216, %v1242
  %v1259 = vadd.f32 %v1217, %v1238
  %v1260 = vadd.f32 %v1218, %v1242
  %v1261 = vadd.f32 %v1219, %v1238
  %v1262 = vadd.f32 %v1220, %v1242
  %v1263 = vadd.f32 %v1221, %v1238
  %v1264 = vadd.f32 %v1222, %v1242
  %v1265 = vadd.f32 %v1223, %v1238
  %v1266 = vadd.f32 %v1224, %v1242
  %v1267 = vadd.f32 %v1225, %v1238
  %v1268 = vadd.f32 %v1226, %v1242
  %v1269 = vadd.f32 %v1227, %v1238
  %v1270 = vadd.f32 %v1228, %v1242
  %v1271 = vadd.f32 %v1229, %v1238
  %v1272 = vadd.f32 %v1230, %v1242
  %v1273 = vadd.f32 %v1231, %v1238
  %v1274 = vadd.f32 %v1232, %v1242
  %v1275 = vmax.f32 %v1245, 0.0
  %v1276 = vmax.f32 %v1246, 0.0
  %v1277 = vmax.f32 %v1247, 0.0
  %v1278 = vmax.f32 %v1248, 0.0
  %v1279 = vmax.f32 %v1249, 0.0
  %v1280 = vmax.f32 %v1250, 0.0
  %v1281 = vmax.f32 %v1251, 0.0
  %v1282 = vmax.f32 %v1252, 0.0
  %v1283 = vmax.f32 %v1253, 0.0
  %v1284 = vmax.f32 %v1254, 0.0
  %v1285 = vmax.f32 %v1255, 0.0
  %v1286 = vmax.f32 %v1256, 0.0
  %v1287 = vmax.f32 %v1257, 0.0
  %v1288 = vmax.f32 %v1258, 0.0
  %v1289 = vmax.f32 %v1259, 0.0
  %v1290 = vmax.f32 %v1260, 0.0
  %v1291 = vmax.f32 %v1261, 0.0
  %v1292 = vmax.f32 %v1262, 0.0
  %v1293 = vmax.f32 %v1263, 0.0
  %v1294 = vmax.f32 %v1264, 0.0
  %v1295 = vmax.f32 %v1265, 0.0
  %v1296 = vmax.f32 %v1266, 0.0
  %v1297 = vmax.f32 %v1267, 0.0
  %v1298 = vmax.f32 %v1268, 0.0
  %v1299 = vmax.f32 %v1269, 0.0
  %v1300 = vmax.f32 %v1270, 0.0
  %v1301 = vmax.f32 %v1271, 0.0
  %v1302 = vmax.f32 %v1272, 0.0
  %v1303 = vmax.f32 %v1273, 0.0
  %v1304 = vmax.f32 %v1274, 0.0
  %v1305 = vld [vmem:[%s4] sm:$0xff]
  %v1306 = vld [vmem:[%s4 + $0x8] sm:$0xff]
  %v1307 = vld [vmem:[%s4 + $0x10] sm:$0xff]
  %v1308 = vld [vmem:[%s4 + $0x18] sm:$0xff]
  %v1309 = vld [vmem:[%s4 + $0x20] sm:$0xff]
  %v1310 = vld [vmem:[%s4 + $0x28] sm:$0xff]
  %v1311 = vld [vmem:[%s4 + $0x30] sm:$0xff]
  %v1312 = vld [vmem:[%s4 + $0x38] sm:$0xff]
  %vm1313 = vcmask 982016
  %v1315 = vsel %vm1313, %v1305, 0
  %v1318 = vsel %vm1313, %v1306, 0
  %v1321 = vsel %vm1313, %v1307, 0
  %v1324 = vsel %vm1313, %v1308, 0
  %v1327 = vsel %vm1313, %v1309, 0
  %v1330 = vsel %vm1313, %v1310, 0
  %v1333 = vsel %vm1313, %v1311, 0
  %v1336 = vsel %vm1313, %v1312, 0
  %1338 = vmatprep.subr.mxu0 %v1276
  %1339 = vmatpush1.msra.mxu0 %v1275
  %1340 = vmatprep.subr.mxu0 %v1278
  %1341 = vmatpush1.msra.mxu0 %v1277
  %1342 = vmatprep.subr.mxu0 %v1280
  %1343 = vmatpush1.msra.mxu0 %v1279
  %1344 = vmatprep.subr.mxu0 %v1282
  %1345 = vmatpush1.msra.mxu0 %v1281
  %1346 = vmatprep.subr.mxu0 %v1284
  %1347 = vmatpush1.msra.mxu0 %v1283
  %1348 = vmatprep.subr.mxu0 %v1286
  %1349 = vmatpush1.msra.mxu0 %v1285
  %1350 = vmatprep.subr.mxu0 %v1288
  %1351 = vmatpush1.msra.mxu0 %v1287
  %1352 = vmatprep.subr.mxu0 %v1290
  %1353 = vmatpush1.msra.mxu0 %v1289
  %1354 = vmatprep.subr.mxu0 %v1292
  %1355 = vmatpush1.msra.mxu0 %v1291
  %1356 = vmatprep.subr.mxu0 %v1294
  %1357 = vmatpush1.msra.mxu0 %v1293
  %1358 = vmatprep.subr.mxu0 %v1296
  %1359 = vmatpush1.msra.mxu0 %v1295
  %1360 = vmatprep.subr.mxu0 %v1298
  %1361 = vmatpush1.msra.mxu0 %v1297
  %1362 = vmatprep.subr.mxu0 %v1300
  %1363 = vmatpush1.msra.mxu0 %v1299
  %1364 = vmatprep.subr.mxu0 %v1302
  %1365 = vmatpush1.msra.mxu0 %v1301
  %1366 = vmatprep.subr.mxu0 %v1304
  %1367 = vmatpush1.msra.mxu0 %v1303
  %1368 = vmatprep.subr.mxu0 0.0
  %1369 = vmatpush1.msra.mxu0 0.0
  %1370 = vmatprep.subr.mxu0 0.0
  %1371 = vmatpush1.msra.mxu0 0.0
  %1372 = vmatprep.subr.mxu0 0.0
  %1373 = vmatpush1.msra.mxu0 0.0
  %1374 = vmatprep.subr.mxu0 0.0
  %1375 = vmatpush1.msra.mxu0 0.0
  %1376 = vmatprep.subr.mxu0 0.0
  %1377 = vmatpush1.msra.mxu0 0.0
  %1378 = vmatprep.subr.mxu0 0.0
  %1379 = vmatpush1.msra.mxu0 0.0
  %1380 = vmatprep.subr.mxu0 0.0
  %1381 = vmatpush1.msra.mxu0 0.0
  %1382 = vmatprep.subr.mxu0 0.0
  %1383 = vmatpush1.msra.mxu0 0.0
  %1384 = vmatprep.subr.mxu0 0.0
  %1385 = vmatpush1.msra.mxu0 0.0
  %1386 = vmatprep.subr.mxu0 0.0
  %1387 = vmatpush1.msra.mxu0 0.0
  %1388 = vmatprep.subr.mxu0 0.0
  %1389 = vmatpush1.msra.mxu0 0.0
  %1390 = vmatprep.subr.mxu0 0.0
  %1391 = vmatpush1.msra.mxu0 0.0
  %1392 = vmatprep.subr.mxu0 0.0
  %1393 = vmatpush1.msra.mxu0 0.0
  %1394 = vmatprep.subr.mxu0 0.0
  %1395 = vmatpush1.msra.mxu0 0.0
  %1396 = vmatprep.subr.mxu0 0.0
  %1397 = vmatpush1.msra.mxu0 0.0
  %1398 = vmatprep.subr.mxu0 0.0
  %1399 = vmatpush1.msra.mxu0 0.0
  %1400 = vmatprep.subr.mxu0 0.0
  %1401 = vmatpush1.msra.mxu0 0.0
  %1402 = vmatprep.mubr.f32.mxu0 0.0
  %1403 = vmatmul.mubr.f32.gmra.mrb[0].mxu0 %v1315
  %v1404 = vpop.f32.mrb[0].mxu0
  %v1405 = vadd.f32 0.0, %v1404
  %v1406 = vpop.f32.mrb[0].mxu0
  %v1407 = vadd.f32 0.0, %v1406
  %1408 = vmatprep.mubr.f32.mxu0 0.0
  %1409 = vmatmul.mubr.f32.gmra.mrb[0].mxu0 %v1318
  %v1410 = vpop.f32.mrb[0].mxu0
  %v1411 = vadd.f32 0.0, %v1410
  %v1412 = vpop.f32.mrb[0].mxu0
  %v1413 = vadd.f32 0.0, %v1412
  %1414 = vmatprep.mubr.f32.mxu0 0.0
  %1415 = vmatmul.mubr.f32.gmra.mrb[0].mxu0 %v1321
  %v1416 = vpop.f32.mrb[0].mxu0
  %v1417 = vadd.f32 0.0, %v1416
  %v1418 = vpop.f32.mrb[0].mxu0
  %v1419 = vadd.f32 0.0, %v1418
  %1420 = vmatprep.mubr.f32.mxu0 0.0
  %1421 = vmatmul.mubr.f32.gmra.mrb[0].mxu0 %v1324
  %v1422 = vpop.f32.mrb[0].mxu0
  %v1423 = vadd.f32 0.0, %v1422
  %v1424 = vpop.f32.mrb[0].mxu0
  %v1425 = vadd.f32 0.0, %v1424
  %1426 = vmatprep.mubr.f32.mxu0 0.0
  %1427 = vmatmul.mubr.f32.gmra.mrb[0].mxu0 %v1327
  %v1428 = vpop.f32.mrb[0].mxu0
  %v1429 = vadd.f32 0.0, %v1428
  %v1430 = vpop.f32.mrb[0].mxu0
  %v1431 = vadd.f32 0.0, %v1430
  %1432 = vmatprep.mubr.f32.mxu0 0.0
  %1433 = vmatmul.mubr.f32.gmra.mrb[0].mxu0 %v1330
  %v1434 = vpop.f32.mrb[0].mxu0
  %v1435 = vadd.f32 0.0, %v1434
  %v1436 = vpop.f32.mrb[0].mxu0
  %v1437 = vadd.f32 0.0, %v1436
  %1438 = vmatprep.mubr.f32.mxu0 0.0
  %1439 = vmatmul.mubr.f32.gmra.mrb[0].mxu0 %v1333
  %v1440 = vpop.f32.mrb[0].mxu0
  %v1441 = vadd.f32 0.0, %v1440
  %v1442 = vpop.f32.mrb[0].mxu0
  %v1443 = vadd.f32 0.0, %v1442
  %1444 = vmatprep.mubr.f32.mxu0 0.0
  %1445 = vmatmul.mubr.f32.gmra.mrb[0].mxu0 %v1336
  %v1446 = vpop.f32.mrb[0].mxu0
  %v1447 = vadd.f32 0.0, %v1446
  %v1448 = vpop.f32.mrb[0].mxu0
  %v1449 = vadd.f32 0.0, %v1448
  %1450 = vdwg.mxu0
  %v1451 = vld [vmem:[%s5] sm:$0xff]
  %v1452 = vld [vmem:[%s5 + $0x8] sm:$0xff]
  %v1453 = vld [vmem:[%s5 + $0x10] sm:$0xff]
  %v1454 = vld [vmem:[%s5 + $0x18] sm:$0xff]
  %v1455 = vld [vmem:[%s5 + $0x20] sm:$0xff]
  %v1456 = vld [vmem:[%s5 + $0x28] sm:$0xff]
  %v1457 = vld [vmem:[%s5 + $0x30] sm:$0xff]
  %v1458 = vld [vmem:[%s5 + $0x38] sm:$0xff]
  %v1459 = vld [vmem:[%s5 + $0x40] sm:$0xff]
  %v1460 = vld [vmem:[%s5 + $0x48] sm:$0xff]
  %v1461 = vld [vmem:[%s5 + $0x50] sm:$0xff]
  %v1462 = vld [vmem:[%s5 + $0x58] sm:$0xff]
  %v1463 = vld [vmem:[%s5 + $0x60] sm:$0xff]
  %v1464 = vld [vmem:[%s5 + $0x68] sm:$0xff]
  %v1465 = vld [vmem:[%s5 + $0x70] sm:$0xff]
  %v1466 = vld [vmem:[%s5 + $0x78] sm:$0xff]
  %v1467 = vld [vmem:[%s5 + $0x80] sm:$0xff]
  %v1468 = vld [vmem:[%s5 + $0x88] sm:$0xff]
  %v1469 = vld [vmem:[%s5 + $0x90] sm:$0xff]
  %v1470 = vld [vmem:[%s5 + $0x98] sm:$0xff]
  %v1471 = vld [vmem:[%s5 + $0xa0] sm:$0xff]
  %v1472 = vld [vmem:[%s5 + $0xa8] sm:$0xff]
  %v1473 = vld [vmem:[%s5 + $0xb0] sm:$0xff]
  %v1474 = vld [vmem:[%s5 + $0xb8] sm:$0xff]
  %v1475 = vld [vmem:[%s5 + $0xc0] sm:$0xff]
  %v1476 = vld [vmem:[%s5 + $0xc8] sm:$0xff]
  %v1477 = vld [vmem:[%s5 + $0xd0] sm:$0xff]
  %v1478 = vld [vmem:[%s5 + $0xd8] sm:$0xff]
  %v1479 = vld [vmem:[%s5 + $0xe0] sm:$0xff]
  %v1480 = vld [vmem:[%s5 + $0xe8] sm:$0xff]
  %v1481 = vld [vmem:[%s5 + $0xf0] sm:$0xff]
  %v1482 = vld [vmem:[%s5 + $0xf8] sm:$0xff]
  %v1483 = vld [vmem:[%s5 + $0x100] sm:$0xff]
  %v1484 = vld [vmem:[%s5 + $0x108] sm:$0xff]
  %v1485 = vld [vmem:[%s5 + $0x110] sm:$0xff]
  %v1486 = vld [vmem:[%s5 + $0x118] sm:$0xff]
  %v1487 = vld [vmem:[%s5 + $0x120] sm:$0xff]
  %v1488 = vld [vmem:[%s5 + $0x128] sm:$0xff]
  %v1489 = vld [vmem:[%s5 + $0x130] sm:$0xff]
  %v1490 = vld [vmem:[%s5 + $0x138] sm:$0xff]
  %v1491 = vld [vmem:[%s5 + $0x140] sm:$0xff]
  %v1492 = vld [vmem:[%s5 + $0x148] sm:$0xff]
  %v1493 = vld [vmem:[%s5 + $0x150] sm:$0xff]
  %v1494 = vld [vmem:[%s5 + $0x158] sm:$0xff]
  %v1495 = vld [vmem:[%s5 + $0x160] sm:$0xff]
  %v1496 = vld [vmem:[%s5 + $0x168] sm:$0xff]
  %v1497 = vld [vmem:[%s5 + $0x170] sm:$0xff]
  %v1498 = vld [vmem:[%s5 + $0x178] sm:$0xff]
  %v1499 = vld [vmem:[%s5 + $0x180] sm:$0xff]
  %v1500 = vld [vmem:[%s5 + $0x188] sm:$0xff]
  %v1501 = vld [vmem:[%s5 + $0x190] sm:$0xff]
  %v1502 = vld [vmem:[%s5 + $0x198] sm:$0xff]
  %v1503 = vld [vmem:[%s5 + $0x1a0] sm:$0xff]
  %v1504 = vld [vmem:[%s5 + $0x1a8] sm:$0xff]
  %v1505 = vld [vmem:[%s5 + $0x1b0] sm:$0xff]
  %v1506 = vld [vmem:[%s5 + $0x1b8] sm:$0xff]
  %v1507 = vld [vmem:[%s5 + $0x1c0] sm:$0xff]
  %v1508 = vld [vmem:[%s5 + $0x1c8] sm:$0xff]
  %v1509 = vld [vmem:[%s5 + $0x1d0] sm:$0xff]
  %v1510 = vld [vmem:[%s5 + $0x1d8] sm:$0xff]
  %s1511 = scalar_lea.vmem %s4, 64
  %v1512 = vld [vmem:[%s1511] sm:$0xff]
  %v1513 = vld [vmem:[%s1511 + $0x8] sm:$0xff]
  %v1514 = vld [vmem:[%s1511 + $0x10] sm:$0xff]
  %v1515 = vld [vmem:[%s1511 + $0x18] sm:$0xff]
  %v1516 = vld [vmem:[%s1511 + $0x20] sm:$0xff]
  %v1517 = vld [vmem:[%s1511 + $0x28] sm:$0xff]
  %v1518 = vld [vmem:[%s1511 + $0x30] sm:$0xff]
  %v1519 = vld [vmem:[%s1511 + $0x38] sm:$0xff]
  %v1521 = vsel %vm1313, %v1512, 0
  %v1524 = vsel %vm1313, %v1513, 0
  %v1527 = vsel %vm1313, %v1514, 0
  %v1530 = vsel %vm1313, %v1515, 0
  %v1533 = vsel %vm1313, %v1516, 0
  %v1536 = vsel %vm1313, %v1517, 0
  %v1539 = vsel %vm1313, %v1518, 0
  %v1542 = vsel %vm1313, %v1519, 0
  %1544 = vmatprep.subr.mxu0 %v1276
  %1545 = vmatpush1.msra.mxu0 %v1275
  %1546 = vmatprep.subr.mxu0 %v1278
  %1547 = vmatpush1.msra.mxu0 %v1277
  %1548 = vmatprep.subr.mxu0 %v1280
  %1549 = vmatpush1.msra.mxu0 %v1279
  %1550 = vmatprep.subr.mxu0 %v1282
  %1551 = vmatpush1.msra.mxu0 %v1281
  %1552 = vmatprep.subr.mxu0 %v1284
  %1553 = vmatpush1.msra.mxu0 %v1283
  %1554 = vmatprep.subr.mxu0 %v1286
  %1555 = vmatpush1.msra.mxu0 %v1285
  %1556 = vmatprep.subr.mxu0 %v1288
  %1557 = vmatpush1.msra.mxu0 %v1287
  %1558 = vmatprep.subr.mxu0 %v1290
  %1559 = vmatpush1.msra.mxu0 %v1289
  %1560 = vmatprep.subr.mxu0 %v1292
  %1561 = vmatpush1.msra.mxu0 %v1291
  %1562 = vmatprep.subr.mxu0 %v1294
  %1563 = vmatpush1.msra.mxu0 %v1293
  %1564 = vmatprep.subr.mxu0 %v1296
  %1565 = vmatpush1.msra.mxu0 %v1295
  %1566 = vmatprep.subr.mxu0 %v1298
  %1567 = vmatpush1.msra.mxu0 %v1297
  %1568 = vmatprep.subr.mxu0 %v1300
  %1569 = vmatpush1.msra.mxu0 %v1299
  %1570 = vmatprep.subr.mxu0 %v1302
  %1571 = vmatpush1.msra.mxu0 %v1301
  %1572 = vmatprep.subr.mxu0 %v1304
  %1573 = vmatpush1.msra.mxu0 %v1303
  %1574 = vmatprep.subr.mxu0 0.0
  %1575 = vmatpush1.msra.mxu0 0.0
  %1576 = vmatprep.subr.mxu0 0.0
  %1577 = vmatpush1.msra.mxu0 0.0
  %1578 = vmatprep.subr.mxu0 0.0
  %1579 = vmatpush1.msra.mxu0 0.0
  %1580 = vmatprep.subr.mxu0 0.0
  %1581 = vmatpush1.msra.mxu0 0.0
  %1582 = vmatprep.subr.mxu0 0.0
  %1583 = vmatpush1.msra.mxu0 0.0
  %1584 = vmatprep.subr.mxu0 0.0
  %1585 = vmatpush1.msra.mxu0 0.0
  %1586 = vmatprep.subr.mxu0 0.0
  %1587 = vmatpush1.msra.mxu0 0.0
  %1588 = vmatprep.subr.mxu0 0.0
  %1589 = vmatpush1.msra.mxu0 0.0
  %1590 = vmatprep.subr.mxu0 0.0
  %1591 = vmatpush1.msra.mxu0 0.0
  %1592 = vmatprep.subr.mxu0 0.0
  %1593 = vmatpush1.msra.mxu0 0.0
  %1594 = vmatprep.subr.mxu0 0.0
  %1595 = vmatpush1.msra.mxu0 0.0
  %1596 = vmatprep.subr.mxu0 0.0
  %1597 = vmatpush1.msra.mxu0 0.0
  %1598 = vmatprep.subr.mxu0 0.0
  %1599 = vmatpush1.msra.mxu0 0.0
  %1600 = vmatprep.subr.mxu0 0.0
  %1601 = vmatpush1.msra.mxu0 0.0
  %1602 = vmatprep.subr.mxu0 0.0
  %1603 = vmatpush1.msra.mxu0 0.0
  %1604 = vmatprep.subr.mxu0 0.0
  %1605 = vmatpush1.msra.mxu0 0.0
  %1606 = vmatprep.subr.mxu0 0.0
  %1607 = vmatpush1.msra.mxu0 0.0
  %1608 = vmatprep.mubr.f32.mxu0 0.0
  %1609 = vmatmul.mubr.f32.gmra.mrb[0].mxu0 %v1521
  %v1610 = vpop.f32.mrb[0].mxu0
  %v1611 = vadd.f32 0.0, %v1610
  %v1612 = vpop.f32.mrb[0].mxu0
  %v1613 = vadd.f32 0.0, %v1612
  %1614 = vmatprep.mubr.f32.mxu0 0.0
  %1615 = vmatmul.mubr.f32.gmra.mrb[0].mxu0 %v1524
  %v1616 = vpop.f32.mrb[0].mxu0
  %v1617 = vadd.f32 0.0, %v1616
  %v1618 = vpop.f32.mrb[0].mxu0
  %v1619 = vadd.f32 0.0, %v1618
  %1620 = vmatprep.mubr.f32.mxu0 0.0
  %1621 = vmatmul.mubr.f32.gmra.mrb[0].mxu0 %v1527
  %v1622 = vpop.f32.mrb[0].mxu0
  %v1623 = vadd.f32 0.0, %v1622
  %v1624 = vpop.f32.mrb[0].mxu0
  %v1625 = vadd.f32 0.0, %v1624
  %1626 = vmatprep.mubr.f32.mxu0 0.0
  %1627 = vmatmul.mubr.f32.gmra.mrb[0].mxu0 %v1530
  %v1628 = vpop.f32.mrb[0].mxu0
  %v1629 = vadd.f32 0.0, %v1628
  %v1630 = vpop.f32.mrb[0].mxu0
  %v1631 = vadd.f32 0.0, %v1630
  %1632 = vmatprep.mubr.f32.mxu0 0.0
  %1633 = vmatmul.mubr.f32.gmra.mrb[0].mxu0 %v1533
  %v1634 = vpop.f32.mrb[0].mxu0
  %v1635 = vadd.f32 0.0, %v1634
  %v1636 = vpop.f32.mrb[0].mxu0
  %v1637 = vadd.f32 0.0, %v1636
  %1638 = vmatprep.mubr.f32.mxu0 0.0
  %1639 = vmatmul.mubr.f32.gmra.mrb[0].mxu0 %v1536
  %v1640 = vpop.f32.mrb[0].mxu0
  %v1641 = vadd.f32 0.0, %v1640
  %v1642 = vpop.f32.mrb[0].mxu0
  %v1643 = vadd.f32 0.0, %v1642
  %1644 = vmatprep.mubr.f32.mxu0 0.0
  %1645 = vmatmul.mubr.f32.gmra.mrb[0].mxu0 %v1539
  %v1646 = vpop.f32.mrb[0].mxu0
  %v1647 = vadd.f32 0.0, %v1646
  %v1648 = vpop.f32.mrb[0].mxu0
  %v1649 = vadd.f32 0.0, %v1648
  %1650 = vmatprep.mubr.f32.mxu0 0.0
  %1651 = vmatmul.mubr.f32.gmra.mrb[0].mxu0 %v1542
  %v1652 = vpop.f32.mrb[0].mxu0
  %v1653 = vadd.f32 0.0, %v1652
  %v1654 = vpop.f32.mrb[0].mxu0
  %v1655 = vadd.f32 0.0, %v1654
  %1656 = vdwg.mxu0
  %s1657 = scalar_lea.vmem %s5, 480
  %v1658 = vld [vmem:[%s1657] sm:$0xff]
  %v1659 = vld [vmem:[%s1657 + $0x8] sm:$0xff]
  %v1660 = vld [vmem:[%s1657 + $0x10] sm:$0xff]
  %v1661 = vld [vmem:[%s1657 + $0x18] sm:$0xff]
  %v1662 = vld [vmem:[%s1657 + $0x20] sm:$0xff]
  %v1663 = vld [vmem:[%s1657 + $0x28] sm:$0xff]
  %v1664 = vld [vmem:[%s1657 + $0x30] sm:$0xff]
  %v1665 = vld [vmem:[%s1657 + $0x38] sm:$0xff]
  %v1666 = vld [vmem:[%s1657 + $0x40] sm:$0xff]
  %v1667 = vld [vmem:[%s1657 + $0x48] sm:$0xff]
  %v1668 = vld [vmem:[%s1657 + $0x50] sm:$0xff]
  %v1669 = vld [vmem:[%s1657 + $0x58] sm:$0xff]
  %v1670 = vld [vmem:[%s1657 + $0x60] sm:$0xff]
  %v1671 = vld [vmem:[%s1657 + $0x68] sm:$0xff]
  %v1672 = vld [vmem:[%s1657 + $0x70] sm:$0xff]
  %v1673 = vld [vmem:[%s1657 + $0x78] sm:$0xff]
  %v1674 = vld [vmem:[%s1657 + $0x80] sm:$0xff]
  %v1675 = vld [vmem:[%s1657 + $0x88] sm:$0xff]
  %v1676 = vld [vmem:[%s1657 + $0x90] sm:$0xff]
  %v1677 = vld [vmem:[%s1657 + $0x98] sm:$0xff]
  %v1678 = vld [vmem:[%s1657 + $0xa0] sm:$0xff]
  %v1679 = vld [vmem:[%s1657 + $0xa8] sm:$0xff]
  %v1680 = vld [vmem:[%s1657 + $0xb0] sm:$0xff]
  %v1681 = vld [vmem:[%s1657 + $0xb8] sm:$0xff]
  %v1682 = vld [vmem:[%s1657 + $0xc0] sm:$0xff]
  %v1683 = vld [vmem:[%s1657 + $0xc8] sm:$0xff]
  %v1684 = vld [vmem:[%s1657 + $0xd0] sm:$0xff]
  %v1685 = vld [vmem:[%s1657 + $0xd8] sm:$0xff]
  %v1686 = vld [vmem:[%s1657 + $0xe0] sm:$0xff]
  %v1687 = vld [vmem:[%s1657 + $0xe8] sm:$0xff]
  %v1688 = vld [vmem:[%s1657 + $0xf0] sm:$0xff]
  %v1689 = vld [vmem:[%s1657 + $0xf8] sm:$0xff]
  %v1690 = vld [vmem:[%s1657 + $0x100] sm:$0xff]
  %v1691 = vld [vmem:[%s1657 + $0x108] sm:$0xff]
  %v1692 = vld [vmem:[%s1657 + $0x110] sm:$0xff]
  %v1693 = vld [vmem:[%s1657 + $0x118] sm:$0xff]
  %v1694 = vld [vmem:[%s1657 + $0x120] sm:$0xff]
  %v1695 = vld [vmem:[%s1657 + $0x128] sm:$0xff]
  %v1696 = vld [vmem:[%s1657 + $0x130] sm:$0xff]
  %v1697 = vld [vmem:[%s1657 + $0x138] sm:$0xff]
  %v1698 = vld [vmem:[%s1657 + $0x140] sm:$0xff]
  %v1699 = vld [vmem:[%s1657 + $0x148] sm:$0xff]
  %v1700 = vld [vmem:[%s1657 + $0x150] sm:$0xff]
  %v1701 = vld [vmem:[%s1657 + $0x158] sm:$0xff]
  %v1702 = vld [vmem:[%s1657 + $0x160] sm:$0xff]
  %v1703 = vld [vmem:[%s1657 + $0x168] sm:$0xff]
  %v1704 = vld [vmem:[%s1657 + $0x170] sm:$0xff]
  %v1705 = vld [vmem:[%s1657 + $0x178] sm:$0xff]
  %v1706 = vld [vmem:[%s1657 + $0x180] sm:$0xff]
  %v1707 = vld [vmem:[%s1657 + $0x188] sm:$0xff]
  %v1708 = vld [vmem:[%s1657 + $0x190] sm:$0xff]
  %v1709 = vld [vmem:[%s1657 + $0x198] sm:$0xff]
  %v1710 = vld [vmem:[%s1657 + $0x1a0] sm:$0xff]
  %v1711 = vld [vmem:[%s1657 + $0x1a8] sm:$0xff]
  %v1712 = vld [vmem:[%s1657 + $0x1b0] sm:$0xff]
  %v1713 = vld [vmem:[%s1657 + $0x1b8] sm:$0xff]
  %v1714 = vld [vmem:[%s1657 + $0x1c0] sm:$0xff]
  %v1715 = vld [vmem:[%s1657 + $0x1c8] sm:$0xff]
  %v1716 = vld [vmem:[%s1657 + $0x1d0] sm:$0xff]
  %v1717 = vld [vmem:[%s1657 + $0x1d8] sm:$0xff]
  %vm1718 = vcmask 916480
  %v1720 = vsel %vm1718, %v1613, 0
  %v1723 = vsel %vm1718, %v1619, 0
  %v1726 = vsel %vm1718, %v1625, 0
  %v1729 = vsel %vm1718, %v1631, 0
  %v1732 = vsel %vm1718, %v1637, 0
  %v1735 = vsel %vm1718, %v1643, 0
  %v1738 = vsel %vm1718, %v1649, 0
  %v1741 = vsel %vm1718, %v1655, 0
  %1743 = vmatprep.subr.mxu0 %v1659
  %1744 = vmatpush1.msra.mxu0 %v1658
  %1745 = vmatprep.subr.mxu0 %v1661
  %1746 = vmatpush1.msra.mxu0 %v1660
  %1747 = vmatprep.subr.mxu0 %v1663
  %1748 = vmatpush1.msra.mxu0 %v1662
  %1749 = vmatprep.subr.mxu0 %v1665
  %1750 = vmatpush1.msra.mxu0 %v1664
  %1751 = vmatprep.subr.mxu0 %v1667
  %1752 = vmatpush1.msra.mxu0 %v1666
  %1753 = vmatprep.subr.mxu0 %v1669
  %1754 = vmatpush1.msra.mxu0 %v1668
  %1755 = vmatprep.subr.mxu0 %v1671
  %1756 = vmatpush1.msra.mxu0 %v1670
  %1757 = vmatprep.subr.mxu0 %v1673
  %1758 = vmatpush1.msra.mxu0 %v1672
  %1759 = vmatprep.subr.mxu0 %v1675
  %1760 = vmatpush1.msra.mxu0 %v1674
  %1761 = vmatprep.subr.mxu0 %v1677
  %1762 = vmatpush1.msra.mxu0 %v1676
  %1763 = vmatprep.subr.mxu0 %v1679
  %1764 = vmatpush1.msra.mxu0 %v1678
  %1765 = vmatprep.subr.mxu0 %v1681
  %1766 = vmatpush1.msra.mxu0 %v1680
  %1767 = vmatprep.subr.mxu0 %v1683
  %1768 = vmatpush1.msra.mxu0 %v1682
  %1769 = vmatprep.subr.mxu0 %v1685
  %1770 = vmatpush1.msra.mxu0 %v1684
  %1771 = vmatprep.subr.mxu0 %v1687
  %1772 = vmatpush1.msra.mxu0 %v1686
  %1773 = vmatprep.subr.mxu0 %v1689
  %1774 = vmatpush1.msra.mxu0 %v1688
  %1775 = vmatprep.subr.mxu0 %v1691
  %1776 = vmatpush1.msra.mxu0 %v1690
  %1777 = vmatprep.subr.mxu0 %v1693
  %1778 = vmatpush1.msra.mxu0 %v1692
  %1779 = vmatprep.subr.mxu0 %v1695
  %1780 = vmatpush1.msra.mxu0 %v1694
  %1781 = vmatprep.subr.mxu0 %v1697
  %1782 = vmatpush1.msra.mxu0 %v1696
  %1783 = vmatprep.subr.mxu0 %v1699
  %1784 = vmatpush1.msra.mxu0 %v1698
  %1785 = vmatprep.subr.mxu0 %v1701
  %1786 = vmatpush1.msra.mxu0 %v1700
  %1787 = vmatprep.subr.mxu0 %v1703
  %1788 = vmatpush1.msra.mxu0 %v1702
  %1789 = vmatprep.subr.mxu0 %v1705
  %1790 = vmatpush1.msra.mxu0 %v1704
  %1791 = vmatprep.subr.mxu0 %v1707
  %1792 = vmatpush1.msra.mxu0 %v1706
  %1793 = vmatprep.subr.mxu0 %v1709
  %1794 = vmatpush1.msra.mxu0 %v1708
  %1795 = vmatprep.subr.mxu0 %v1711
  %1796 = vmatpush1.msra.mxu0 %v1710
  %1797 = vmatprep.subr.mxu0 %v1713
  %1798 = vmatpush1.msra.mxu0 %v1712
  %1799 = vmatprep.subr.mxu0 %v1715
  %1800 = vmatpush1.msra.mxu0 %v1714
  %1801 = vmatprep.subr.mxu0 %v1717
  %1802 = vmatpush1.msra.mxu0 %v1716
  %1803 = vmatprep.subr.mxu0 0.0
  %1804 = vmatpush1.msra.mxu0 0.0
  %1805 = vmatprep.subr.mxu0 0.0
  %1806 = vmatpush1.msra.mxu0 0.0
  %1807 = vmatprep.mubr.f32.mxu0 %v1720
  %1808 = vmatmul.mubr.f32.gmra.mrb[0].mxu0 %v1611
  %v1809 = vpop.f32.mrb[0].mxu0
  %v1810 = vadd.f32 0.0, %v1809
  %v1811 = vpop.f32.mrb[0].mxu0
  %v1812 = vadd.f32 0.0, %v1811
  %1813 = vmatprep.mubr.f32.mxu0 %v1723
  %1814 = vmatmul.mubr.f32.gmra.mrb[0].mxu0 %v1617
  %v1815 = vpop.f32.mrb[0].mxu0
  %v1816 = vadd.f32 0.0, %v1815
  %v1817 = vpop.f32.mrb[0].mxu0
  %v1818 = vadd.f32 0.0, %v1817
  %1819 = vmatprep.mubr.f32.mxu0 %v1726
  %1820 = vmatmul.mubr.f32.gmra.mrb[0].mxu0 %v1623
  %v1821 = vpop.f32.mrb[0].mxu0
  %v1822 = vadd.f32 0.0, %v1821
  %v1823 = vpop.f32.mrb[0].mxu0
  %v1824 = vadd.f32 0.0, %v1823
  %1825 = vmatprep.mubr.f32.mxu0 %v1729
  %1826 = vmatmul.mubr.f32.gmra.mrb[0].mxu0 %v1629
  %v1827 = vpop.f32.mrb[0].mxu0
  %v1828 = vadd.f32 0.0, %v1827
  %v1829 = vpop.f32.mrb[0].mxu0
  %v1830 = vadd.f32 0.0, %v1829
  %1831 = vmatprep.mubr.f32.mxu0 %v1732
  %1832 = vmatmul.mubr.f32.gmra.mrb[0].mxu0 %v1635
  %v1833 = vpop.f32.mrb[0].mxu0
  %v1834 = vadd.f32 0.0, %v1833
  %v1835 = vpop.f32.mrb[0].mxu0
  %v1836 = vadd.f32 0.0, %v1835
  %1837 = vmatprep.mubr.f32.mxu0 %v1735
  %1838 = vmatmul.mubr.f32.gmra.mrb[0].mxu0 %v1641
  %v1839 = vpop.f32.mrb[0].mxu0
  %v1840 = vadd.f32 0.0, %v1839
  %v1841 = vpop.f32.mrb[0].mxu0
  %v1842 = vadd.f32 0.0, %v1841
  %1843 = vmatprep.mubr.f32.mxu0 %v1738
  %1844 = vmatmul.mubr.f32.gmra.mrb[0].mxu0 %v1647
  %v1845 = vpop.f32.mrb[0].mxu0
  %v1846 = vadd.f32 0.0, %v1845
  %v1847 = vpop.f32.mrb[0].mxu0
  %v1848 = vadd.f32 0.0, %v1847
  %1849 = vmatprep.mubr.f32.mxu0 %v1741
  %1850 = vmatmul.mubr.f32.gmra.mrb[0].mxu0 %v1653
  %v1851 = vpop.f32.mrb[0].mxu0
  %v1852 = vadd.f32 0.0, %v1851
  %v1853 = vpop.f32.mrb[0].mxu0
  %v1854 = vadd.f32 0.0, %v1853
  %1855 = vdwg.mxu0
  %v1857 = vsel %vm1718, %v1407, 0
  %v1860 = vsel %vm1718, %v1413, 0
  %v1863 = vsel %vm1718, %v1419, 0
  %v1866 = vsel %vm1718, %v1425, 0
  %v1869 = vsel %vm1718, %v1431, 0
  %v1872 = vsel %vm1718, %v1437, 0
  %v1875 = vsel %vm1718, %v1443, 0
  %v1878 = vsel %vm1718, %v1449, 0
  %1880 = vmatprep.subr.mxu0 %v1452
  %1881 = vmatpush1.msra.mxu0 %v1451
  %1882 = vmatprep.subr.mxu0 %v1454
  %1883 = vmatpush1.msra.mxu0 %v1453
  %1884 = vmatprep.subr.mxu0 %v1456
  %1885 = vmatpush1.msra.mxu0 %v1455
  %1886 = vmatprep.subr.mxu0 %v1458
  %1887 = vmatpush1.msra.mxu0 %v1457
  %1888 = vmatprep.subr.mxu0 %v1460
  %1889 = vmatpush1.msra.mxu0 %v1459
  %1890 = vmatprep.subr.mxu0 %v1462
  %1891 = vmatpush1.msra.mxu0 %v1461
  %1892 = vmatprep.subr.mxu0 %v1464
  %1893 = vmatpush1.msra.mxu0 %v1463
  %1894 = vmatprep.subr.mxu0 %v1466
  %1895 = vmatpush1.msra.mxu0 %v1465
  %1896 = vmatprep.subr.mxu0 %v1468
  %1897 = vmatpush1.msra.mxu0 %v1467
  %1898 = vmatprep.subr.mxu0 %v1470
  %1899 = vmatpush1.msra.mxu0 %v1469
  %1900 = vmatprep.subr.mxu0 %v1472
  %1901 = vmatpush1.msra.mxu0 %v1471
  %1902 = vmatprep.subr.mxu0 %v1474
  %1903 = vmatpush1.msra.mxu0 %v1473
  %1904 = vmatprep.subr.mxu0 %v1476
  %1905 = vmatpush1.msra.mxu0 %v1475
  %1906 = vmatprep.subr.mxu0 %v1478
  %1907 = vmatpush1.msra.mxu0 %v1477
  %1908 = vmatprep.subr.mxu0 %v1480
  %1909 = vmatpush1.msra.mxu0 %v1479
  %1910 = vmatprep.subr.mxu0 %v1482
  %1911 = vmatpush1.msra.mxu0 %v1481
  %1912 = vmatprep.subr.mxu0 %v1484
  %1913 = vmatpush1.msra.mxu0 %v1483
  %1914 = vmatprep.subr.mxu0 %v1486
  %1915 = vmatpush1.msra.mxu0 %v1485
  %1916 = vmatprep.subr.mxu0 %v1488
  %1917 = vmatpush1.msra.mxu0 %v1487
  %1918 = vmatprep.subr.mxu0 %v1490
  %1919 = vmatpush1.msra.mxu0 %v1489
  %1920 = vmatprep.subr.mxu0 %v1492
  %1921 = vmatpush1.msra.mxu0 %v1491
  %1922 = vmatprep.subr.mxu0 %v1494
  %1923 = vmatpush1.msra.mxu0 %v1493
  %1924 = vmatprep.subr.mxu0 %v1496
  %1925 = vmatpush1.msra.mxu0 %v1495
  %1926 = vmatprep.subr.mxu0 %v1498
  %1927 = vmatpush1.msra.mxu0 %v1497
  %1928 = vmatprep.subr.mxu0 %v1500
  %1929 = vmatpush1.msra.mxu0 %v1499
  %1930 = vmatprep.subr.mxu0 %v1502
  %1931 = vmatpush1.msra.mxu0 %v1501
  %1932 = vmatprep.subr.mxu0 %v1504
  %1933 = vmatpush1.msra.mxu0 %v1503
  %1934 = vmatprep.subr.mxu0 %v1506
  %1935 = vmatpush1.msra.mxu0 %v1505
  %1936 = vmatprep.subr.mxu0 %v1508
  %1937 = vmatpush1.msra.mxu0 %v1507
  %1938 = vmatprep.subr.mxu0 %v1510
  %1939 = vmatpush1.msra.mxu0 %v1509
  %1940 = vmatprep.subr.mxu0 0.0
  %1941 = vmatpush1.msra.mxu0 0.0
  %1942 = vmatprep.subr.mxu0 0.0
  %1943 = vmatpush1.msra.mxu0 0.0
  %1944 = vmatprep.mubr.f32.mxu0 %v1857
  %1945 = vmatmul.mubr.f32.gmra.mrb[0].mxu0 %v1405
  %v1946 = vpop.f32.mrb[0].mxu0
  %v1947 = vadd.f32 %v1810, %v1946
  %v1948 = vpop.f32.mrb[0].mxu0
  %v1949 = vadd.f32 %v1812, %v1948
  %1950 = vmatprep.mubr.f32.mxu0 %v1860
  %1951 = vmatmul.mubr.f32.gmra.mrb[0].mxu0 %v1411
  %v1952 = vpop.f32.mrb[0].mxu0
  %v1953 = vadd.f32 %v1816, %v1952
  %v1954 = vpop.f32.mrb[0].mxu0
  %v1955 = vadd.f32 %v1818, %v1954
  %1956 = vmatprep.mubr.f32.mxu0 %v1863
  %1957 = vmatmul.mubr.f32.gmra.mrb[0].mxu0 %v1417
  %v1958 = vpop.f32.mrb[0].mxu0
  %v1959 = vadd.f32 %v1822, %v1958
  %v1960 = vpop.f32.mrb[0].mxu0
  %v1961 = vadd.f32 %v1824, %v1960
  %1962 = vmatprep.mubr.f32.mxu0 %v1866
  %1963 = vmatmul.mubr.f32.gmra.mrb[0].mxu0 %v1423
  %v1964 = vpop.f32.mrb[0].mxu0
  %v1965 = vadd.f32 %v1828, %v1964
  %v1966 = vpop.f32.mrb[0].mxu0
  %v1967 = vadd.f32 %v1830, %v1966
  %1968 = vmatprep.mubr.f32.mxu0 %v1869
  %1969 = vmatmul.mubr.f32.gmra.mrb[0].mxu0 %v1429
  %v1970 = vpop.f32.mrb[0].mxu0
  %v1971 = vadd.f32 %v1834, %v1970
  %v1972 = vpop.f32.mrb[0].mxu0
  %v1973 = vadd.f32 %v1836, %v1972
  %1974 = vmatprep.mubr.f32.mxu0 %v1872
  %1975 = vmatmul.mubr.f32.gmra.mrb[0].mxu0 %v1435
  %v1976 = vpop.f32.mrb[0].mxu0
  %v1977 = vadd.f32 %v1840, %v1976
  %v1978 = vpop.f32.mrb[0].mxu0
  %v1979 = vadd.f32 %v1842, %v1978
  %1980 = vmatprep.mubr.f32.mxu0 %v1875
  %1981 = vmatmul.mubr.f32.gmra.mrb[0].mxu0 %v1441
  %v1982 = vpop.f32.mrb[0].mxu0
  %v1983 = vadd.f32 %v1846, %v1982
  %v1984 = vpop.f32.mrb[0].mxu0
  %v1985 = vadd.f32 %v1848, %v1984
  %1986 = vmatprep.mubr.f32.mxu0 %v1878
  %1987 = vmatmul.mubr.f32.gmra.mrb[0].mxu0 %v1447
  %v1988 = vpop.f32.mrb[0].mxu0
  %v1989 = vadd.f32 %v1852, %v1988
  %v1990 = vpop.f32.mrb[0].mxu0
  %v1991 = vadd.f32 %v1854, %v1990
  %1992 = vdwg.mxu0
  %s1993 = scalar_lea.vmem %s4, 128
  %v1994 = vld [vmem:[%s1993] sm:$0xff]
  %v1995 = vld [vmem:[%s1993 + $0x8] sm:$0xff]
  %v1996 = vld [vmem:[%s1993 + $0x10] sm:$0xff]
  %v1997 = vld [vmem:[%s1993 + $0x18] sm:$0xff]
  %v1998 = vld [vmem:[%s1993 + $0x20] sm:$0xff]
  %v1999 = vld [vmem:[%s1993 + $0x28] sm:$0xff]
  %v2000 = vld [vmem:[%s1993 + $0x30] sm:$0xff]
  %v2001 = vld [vmem:[%s1993 + $0x38] sm:$0xff]
  %v2003 = vsel %vm1313, %v1994, 0
  %v2006 = vsel %vm1313, %v1995, 0
  %v2009 = vsel %vm1313, %v1996, 0
  %v2012 = vsel %vm1313, %v1997, 0
  %v2015 = vsel %vm1313, %v1998, 0
  %v2018 = vsel %vm1313, %v1999, 0
  %v2021 = vsel %vm1313, %v2000, 0
  %v2024 = vsel %vm1313, %v2001, 0
  %2026 = vmatprep.subr.mxu0 %v1276
  %2027 = vmatpush1.msra.mxu0 %v1275
  %2028 = vmatprep.subr.mxu0 %v1278
  %2029 = vmatpush1.msra.mxu0 %v1277
  %2030 = vmatprep.subr.mxu0 %v1280
  %2031 = vmatpush1.msra.mxu0 %v1279
  %2032 = vmatprep.subr.mxu0 %v1282
  %2033 = vmatpush1.msra.mxu0 %v1281
  %2034 = vmatprep.subr.mxu0 %v1284
  %2035 = vmatpush1.msra.mxu0 %v1283
  %2036 = vmatprep.subr.mxu0 %v1286
  %2037 = vmatpush1.msra.mxu0 %v1285
  %2038 = vmatprep.subr.mxu0 %v1288
  %2039 = vmatpush1.msra.mxu0 %v1287
  %2040 = vmatprep.subr.mxu0 %v1290
  %2041 = vmatpush1.msra.mxu0 %v1289
  %2042 = vmatprep.subr.mxu0 %v1292
  %2043 = vmatpush1.msra.mxu0 %v1291
  %2044 = vmatprep.subr.mxu0 %v1294
  %2045 = vmatpush1.msra.mxu0 %v1293
  %2046 = vmatprep.subr.mxu0 %v1296
  %2047 = vmatpush1.msra.mxu0 %v1295
  %2048 = vmatprep.subr.mxu0 %v1298
  %2049 = vmatpush1.msra.mxu0 %v1297
  %2050 = vmatprep.subr.mxu0 %v1300
  %2051 = vmatpush1.msra.mxu0 %v1299
  %2052 = vmatprep.subr.mxu0 %v1302
  %2053 = vmatpush1.msra.mxu0 %v1301
  %2054 = vmatprep.subr.mxu0 %v1304
  %2055 = vmatpush1.msra.mxu0 %v1303
  %2056 = vmatprep.subr.mxu0 0.0
  %2057 = vmatpush1.msra.mxu0 0.0
  %2058 = vmatprep.subr.mxu0 0.0
  %2059 = vmatpush1.msra.mxu0 0.0
  %2060 = vmatprep.subr.mxu0 0.0
  %2061 = vmatpush1.msra.mxu0 0.0
  %2062 = vmatprep.subr.mxu0 0.0
  %2063 = vmatpush1.msra.mxu0 0.0
  %2064 = vmatprep.subr.mxu0 0.0
  %2065 = vmatpush1.msra.mxu0 0.0
  %2066 = vmatprep.subr.mxu0 0.0
  %2067 = vmatpush1.msra.mxu0 0.0
  %2068 = vmatprep.subr.mxu0 0.0
  %2069 = vmatpush1.msra.mxu0 0.0
  %2070 = vmatprep.subr.mxu0 0.0
  %2071 = vmatpush1.msra.mxu0 0.0
  %2072 = vmatprep.subr.mxu0 0.0
  %2073 = vmatpush1.msra.mxu0 0.0
  %2074 = vmatprep.subr.mxu0 0.0
  %2075 = vmatpush1.msra.mxu0 0.0
  %2076 = vmatprep.subr.mxu0 0.0
  %2077 = vmatpush1.msra.mxu0 0.0
  %2078 = vmatprep.subr.mxu0 0.0
  %2079 = vmatpush1.msra.mxu0 0.0
  %2080 = vmatprep.subr.mxu0 0.0
  %2081 = vmatpush1.msra.mxu0 0.0
  %2082 = vmatprep.subr.mxu0 0.0
  %2083 = vmatpush1.msra.mxu0 0.0
  %2084 = vmatprep.subr.mxu0 0.0
  %2085 = vmatpush1.msra.mxu0 0.0
  %2086 = vmatprep.subr.mxu0 0.0
  %2087 = vmatpush1.msra.mxu0 0.0
  %2088 = vmatprep.subr.mxu0 0.0
  %2089 = vmatpush1.msra.mxu0 0.0
  %2090 = vmatprep.mubr.f32.mxu0 0.0
  %2091 = vmatmul.mubr.f32.gmra.mrb[0].mxu0 %v2003
  %v2092 = vpop.f32.mrb[0].mxu0
  %v2093 = vadd.f32 0.0, %v2092
  %v2094 = vpop.f32.mrb[0].mxu0
  %v2095 = vadd.f32 0.0, %v2094
  %2096 = vmatprep.mubr.f32.mxu0 0.0
  %2097 = vmatmul.mubr.f32.gmra.mrb[0].mxu0 %v2006
  %v2098 = vpop.f32.mrb[0].mxu0
  %v2099 = vadd.f32 0.0, %v2098
  %v2100 = vpop.f32.mrb[0].mxu0
  %v2101 = vadd.f32 0.0, %v2100
  %2102 = vmatprep.mubr.f32.mxu0 0.0
  %2103 = vmatmul.mubr.f32.gmra.mrb[0].mxu0 %v2009
  %v2104 = vpop.f32.mrb[0].mxu0
  %v2105 = vadd.f32 0.0, %v2104
  %v2106 = vpop.f32.mrb[0].mxu0
  %v2107 = vadd.f32 0.0, %v2106
  %2108 = vmatprep.mubr.f32.mxu0 0.0
  %2109 = vmatmul.mubr.f32.gmra.mrb[0].mxu0 %v2012
  %v2110 = vpop.f32.mrb[0].mxu0
  %v2111 = vadd.f32 0.0, %v2110
  %v2112 = vpop.f32.mrb[0].mxu0
  %v2113 = vadd.f32 0.0, %v2112
  %2114 = vmatprep.mubr.f32.mxu0 0.0
  %2115 = vmatmul.mubr.f32.gmra.mrb[0].mxu0 %v2015
  %v2116 = vpop.f32.mrb[0].mxu0
  %v2117 = vadd.f32 0.0, %v2116
  %v2118 = vpop.f32.mrb[0].mxu0
  %v2119 = vadd.f32 0.0, %v2118
  %2120 = vmatprep.mubr.f32.mxu0 0.0
  %2121 = vmatmul.mubr.f32.gmra.mrb[0].mxu0 %v2018
  %v2122 = vpop.f32.mrb[0].mxu0
  %v2123 = vadd.f32 0.0, %v2122
  %v2124 = vpop.f32.mrb[0].mxu0
  %v2125 = vadd.f32 0.0, %v2124
  %2126 = vmatprep.mubr.f32.mxu0 0.0
  %2127 = vmatmul.mubr.f32.gmra.mrb[0].mxu0 %v2021
  %v2128 = vpop.f32.mrb[0].mxu0
  %v2129 = vadd.f32 0.0, %v2128
  %v2130 = vpop.f32.mrb[0].mxu0
  %v2131 = vadd.f32 0.0, %v2130
  %2132 = vmatprep.mubr.f32.mxu0 0.0
  %2133 = vmatmul.mubr.f32.gmra.mrb[0].mxu0 %v2024
  %v2134 = vpop.f32.mrb[0].mxu0
  %v2135 = vadd.f32 0.0, %v2134
  %v2136 = vpop.f32.mrb[0].mxu0
  %v2137 = vadd.f32 0.0, %v2136
  %2138 = vdwg.mxu0
  %s2139 = scalar_lea.vmem %s5, 960
  %v2140 = vld [vmem:[%s2139] sm:$0xff]
  %v2141 = vld [vmem:[%s2139 + $0x8] sm:$0xff]
  %v2142 = vld [vmem:[%s2139 + $0x10] sm:$0xff]
  %v2143 = vld [vmem:[%s2139 + $0x18] sm:$0xff]
  %v2144 = vld [vmem:[%s2139 + $0x20] sm:$0xff]
  %v2145 = vld [vmem:[%s2139 + $0x28] sm:$0xff]
  %v2146 = vld [vmem:[%s2139 + $0x30] sm:$0xff]
  %v2147 = vld [vmem:[%s2139 + $0x38] sm:$0xff]
  %v2148 = vld [vmem:[%s2139 + $0x40] sm:$0xff]
  %v2149 = vld [vmem:[%s2139 + $0x48] sm:$0xff]
  %v2150 = vld [vmem:[%s2139 + $0x50] sm:$0xff]
  %v2151 = vld [vmem:[%s2139 + $0x58] sm:$0xff]
  %v2152 = vld [vmem:[%s2139 + $0x60] sm:$0xff]
  %v2153 = vld [vmem:[%s2139 + $0x68] sm:$0xff]
  %v2154 = vld [vmem:[%s2139 + $0x70] sm:$0xff]
  %v2155 = vld [vmem:[%s2139 + $0x78] sm:$0xff]
  %v2156 = vld [vmem:[%s2139 + $0x80] sm:$0xff]
  %v2157 = vld [vmem:[%s2139 + $0x88] sm:$0xff]
  %v2158 = vld [vmem:[%s2139 + $0x90] sm:$0xff]
  %v2159 = vld [vmem:[%s2139 + $0x98] sm:$0xff]
  %v2160 = vld [vmem:[%s2139 + $0xa0] sm:$0xff]
  %v2161 = vld [vmem:[%s2139 + $0xa8] sm:$0xff]
  %v2162 = vld [vmem:[%s2139 + $0xb0] sm:$0xff]
  %v2163 = vld [vmem:[%s2139 + $0xb8] sm:$0xff]
  %v2164 = vld [vmem:[%s2139 + $0xc0] sm:$0xff]
  %v2165 = vld [vmem:[%s2139 + $0xc8] sm:$0xff]
  %v2166 = vld [vmem:[%s2139 + $0xd0] sm:$0xff]
  %v2167 = vld [vmem:[%s2139 + $0xd8] sm:$0xff]
  %v2168 = vld [vmem:[%s2139 + $0xe0] sm:$0xff]
  %v2169 = vld [vmem:[%s2139 + $0xe8] sm:$0xff]
  %v2170 = vld [vmem:[%s2139 + $0xf0] sm:$0xff]
  %v2171 = vld [vmem:[%s2139 + $0xf8] sm:$0xff]
  %v2172 = vld [vmem:[%s2139 + $0x100] sm:$0xff]
  %v2173 = vld [vmem:[%s2139 + $0x108] sm:$0xff]
  %v2174 = vld [vmem:[%s2139 + $0x110] sm:$0xff]
  %v2175 = vld [vmem:[%s2139 + $0x118] sm:$0xff]
  %v2176 = vld [vmem:[%s2139 + $0x120] sm:$0xff]
  %v2177 = vld [vmem:[%s2139 + $0x128] sm:$0xff]
  %v2178 = vld [vmem:[%s2139 + $0x130] sm:$0xff]
  %v2179 = vld [vmem:[%s2139 + $0x138] sm:$0xff]
  %v2180 = vld [vmem:[%s2139 + $0x140] sm:$0xff]
  %v2181 = vld [vmem:[%s2139 + $0x148] sm:$0xff]
  %v2182 = vld [vmem:[%s2139 + $0x150] sm:$0xff]
  %v2183 = vld [vmem:[%s2139 + $0x158] sm:$0xff]
  %v2184 = vld [vmem:[%s2139 + $0x160] sm:$0xff]
  %v2185 = vld [vmem:[%s2139 + $0x168] sm:$0xff]
  %v2186 = vld [vmem:[%s2139 + $0x170] sm:$0xff]
  %v2187 = vld [vmem:[%s2139 + $0x178] sm:$0xff]
  %v2188 = vld [vmem:[%s2139 + $0x180] sm:$0xff]
  %v2189 = vld [vmem:[%s2139 + $0x188] sm:$0xff]
  %v2190 = vld [vmem:[%s2139 + $0x190] sm:$0xff]
  %v2191 = vld [vmem:[%s2139 + $0x198] sm:$0xff]
  %v2192 = vld [vmem:[%s2139 + $0x1a0] sm:$0xff]
  %v2193 = vld [vmem:[%s2139 + $0x1a8] sm:$0xff]
  %v2194 = vld [vmem:[%s2139 + $0x1b0] sm:$0xff]
  %v2195 = vld [vmem:[%s2139 + $0x1b8] sm:$0xff]
  %v2196 = vld [vmem:[%s2139 + $0x1c0] sm:$0xff]
  %v2197 = vld [vmem:[%s2139 + $0x1c8] sm:$0xff]
  %v2198 = vld [vmem:[%s2139 + $0x1d0] sm:$0xff]
  %v2199 = vld [vmem:[%s2139 + $0x1d8] sm:$0xff]
  %v2201 = vsel %vm1718, %v2095, 0
  %v2204 = vsel %vm1718, %v2101, 0
  %v2207 = vsel %vm1718, %v2107, 0
  %v2210 = vsel %vm1718, %v2113, 0
  %v2213 = vsel %vm1718, %v2119, 0
  %v2216 = vsel %vm1718, %v2125, 0
  %v2219 = vsel %vm1718, %v2131, 0
  %v2222 = vsel %vm1718, %v2137, 0
  %2224 = vmatprep.subr.mxu0 %v2141
  %2225 = vmatpush1.msra.mxu0 %v2140
  %2226 = vmatprep.subr.mxu0 %v2143
  %2227 = vmatpush1.msra.mxu0 %v2142
  %2228 = vmatprep.subr.mxu0 %v2145
  %2229 = vmatpush1.msra.mxu0 %v2144
  %2230 = vmatprep.subr.mxu0 %v2147
  %2231 = vmatpush1.msra.mxu0 %v2146
  %2232 = vmatprep.subr.mxu0 %v2149
  %2233 = vmatpush1.msra.mxu0 %v2148
  %2234 = vmatprep.subr.mxu0 %v2151
  %2235 = vmatpush1.msra.mxu0 %v2150
  %2236 = vmatprep.subr.mxu0 %v2153
  %2237 = vmatpush1.msra.mxu0 %v2152
  %2238 = vmatprep.subr.mxu0 %v2155
  %2239 = vmatpush1.msra.mxu0 %v2154
  %2240 = vmatprep.subr.mxu0 %v2157
  %2241 = vmatpush1.msra.mxu0 %v2156
  %2242 = vmatprep.subr.mxu0 %v2159
  %2243 = vmatpush1.msra.mxu0 %v2158
  %2244 = vmatprep.subr.mxu0 %v2161
  %2245 = vmatpush1.msra.mxu0 %v2160
  %2246 = vmatprep.subr.mxu0 %v2163
  %2247 = vmatpush1.msra.mxu0 %v2162
  %2248 = vmatprep.subr.mxu0 %v2165
  %2249 = vmatpush1.msra.mxu0 %v2164
  %2250 = vmatprep.subr.mxu0 %v2167
  %2251 = vmatpush1.msra.mxu0 %v2166
  %2252 = vmatprep.subr.mxu0 %v2169
  %2253 = vmatpush1.msra.mxu0 %v2168
  %2254 = vmatprep.subr.mxu0 %v2171
  %2255 = vmatpush1.msra.mxu0 %v2170
  %2256 = vmatprep.subr.mxu0 %v2173
  %2257 = vmatpush1.msra.mxu0 %v2172
  %2258 = vmatprep.subr.mxu0 %v2175
  %2259 = vmatpush1.msra.mxu0 %v2174
  %2260 = vmatprep.subr.mxu0 %v2177
  %2261 = vmatpush1.msra.mxu0 %v2176
  %2262 = vmatprep.subr.mxu0 %v2179
  %2263 = vmatpush1.msra.mxu0 %v2178
  %2264 = vmatprep.subr.mxu0 %v2181
  %2265 = vmatpush1.msra.mxu0 %v2180
  %2266 = vmatprep.subr.mxu0 %v2183
  %2267 = vmatpush1.msra.mxu0 %v2182
  %2268 = vmatprep.subr.mxu0 %v2185
  %2269 = vmatpush1.msra.mxu0 %v2184
  %2270 = vmatprep.subr.mxu0 %v2187
  %2271 = vmatpush1.msra.mxu0 %v2186
  %2272 = vmatprep.subr.mxu0 %v2189
  %2273 = vmatpush1.msra.mxu0 %v2188
  %2274 = vmatprep.subr.mxu0 %v2191
  %2275 = vmatpush1.msra.mxu0 %v2190
  %2276 = vmatprep.subr.mxu0 %v2193
  %2277 = vmatpush1.msra.mxu0 %v2192
  %2278 = vmatprep.subr.mxu0 %v2195
  %2279 = vmatpush1.msra.mxu0 %v2194
  %2280 = vmatprep.subr.mxu0 %v2197
  %2281 = vmatpush1.msra.mxu0 %v2196
  %2282 = vmatprep.subr.mxu0 %v2199
  %2283 = vmatpush1.msra.mxu0 %v2198
  %2284 = vmatprep.subr.mxu0 0.0
  %2285 = vmatpush1.msra.mxu0 0.0
  %2286 = vmatprep.subr.mxu0 0.0
  %2287 = vmatpush1.msra.mxu0 0.0
  %2288 = vmatprep.mubr.f32.mxu0 %v2201
  %2289 = vmatmul.mubr.f32.gmra.mrb[0].mxu0 %v2093
  %v2290 = vpop.f32.mrb[0].mxu0
  %v2291 = vadd.f32 0.0, %v2290
  %v2292 = vpop.f32.mrb[0].mxu0
  %v2293 = vadd.f32 0.0, %v2292
  %2294 = vmatprep.mubr.f32.mxu0 %v2204
  %2295 = vmatmul.mubr.f32.gmra.mrb[0].mxu0 %v2099
  %v2296 = vpop.f32.mrb[0].mxu0
  %v2297 = vadd.f32 0.0, %v2296
  %v2298 = vpop.f32.mrb[0].mxu0
  %v2299 = vadd.f32 0.0, %v2298
  %2300 = vmatprep.mubr.f32.mxu0 %v2207
  %2301 = vmatmul.mubr.f32.gmra.mrb[0].mxu0 %v2105
  %v2302 = vpop.f32.mrb[0].mxu0
  %v2303 = vadd.f32 0.0, %v2302
  %v2304 = vpop.f32.mrb[0].mxu0
  %v2305 = vadd.f32 0.0, %v2304
  %2306 = vmatprep.mubr.f32.mxu0 %v2210
  %2307 = vmatmul.mubr.f32.gmra.mrb[0].mxu0 %v2111
  %v2308 = vpop.f32.mrb[0].mxu0
  %v2309 = vadd.f32 0.0, %v2308
  %v2310 = vpop.f32.mrb[0].mxu0
  %v2311 = vadd.f32 0.0, %v2310
  %2312 = vmatprep.mubr.f32.mxu0 %v2213
  %2313 = vmatmul.mubr.f32.gmra.mrb[0].mxu0 %v2117
  %v2314 = vpop.f32.mrb[0].mxu0
  %v2315 = vadd.f32 0.0, %v2314
  %v2316 = vpop.f32.mrb[0].mxu0
  %v2317 = vadd.f32 0.0, %v2316
  %2318 = vmatprep.mubr.f32.mxu0 %v2216
  %2319 = vmatmul.mubr.f32.gmra.mrb[0].mxu0 %v2123
  %v2320 = vpop.f32.mrb[0].mxu0
  %v2321 = vadd.f32 0.0, %v2320
  %v2322 = vpop.f32.mrb[0].mxu0
  %v2323 = vadd.f32 0.0, %v2322
  %2324 = vmatprep.mubr.f32.mxu0 %v2219
  %2325 = vmatmul.mubr.f32.gmra.mrb[0].mxu0 %v2129
  %v2326 = vpop.f32.mrb[0].mxu0
  %v2327 = vadd.f32 0.0, %v2326
  %v2328 = vpop.f32.mrb[0].mxu0
  %v2329 = vadd.f32 0.0, %v2328
  %2330 = vmatprep.mubr.f32.mxu0 %v2222
  %2331 = vmatmul.mubr.f32.gmra.mrb[0].mxu0 %v2135
  %v2332 = vpop.f32.mrb[0].mxu0
  %v2333 = vadd.f32 0.0, %v2332
  %v2334 = vpop.f32.mrb[0].mxu0
  %v2335 = vadd.f32 0.0, %v2334
  %2336 = vdwg.mxu0
  %v2337 = vadd.f32 %v1947, %v2291
  %v2338 = vadd.f32 %v1949, %v2293
  %v2339 = vadd.f32 %v1953, %v2297
  %v2340 = vadd.f32 %v1955, %v2299
  %v2341 = vadd.f32 %v1959, %v2303
  %v2342 = vadd.f32 %v1961, %v2305
  %v2343 = vadd.f32 %v1965, %v2309
  %v2344 = vadd.f32 %v1967, %v2311
  %v2345 = vadd.f32 %v1971, %v2315
  %v2346 = vadd.f32 %v1973, %v2317
  %v2347 = vadd.f32 %v1977, %v2321
  %v2348 = vadd.f32 %v1979, %v2323
  %v2349 = vadd.f32 %v1983, %v2327
  %v2350 = vadd.f32 %v1985, %v2329
  %v2351 = vadd.f32 %v1989, %v2333
  %v2352 = vadd.f32 %v1991, %v2335
  %v2353 = vld [vmem:[%s6] sm:$0x3]
  %v2355 = vlaneseq
  %v2356 = vshrl.u32 %v2355, 7
  %v2357 = vsub.s32 0, %v2356
  %v2358 = vrot.slane %v2353, %v2357
  %v2359 = vlaneseq
  %v2360 = vshrl.u32 %v2359, 7
  %v2361 = vsub.s32 1, %v2360
  %v2362 = vrot.slane %v2353, %v2361
  %v2365 = vadd.f32 %v2337, %v2358
  %v2366 = vadd.f32 %v2338, %v2362
  %v2367 = vadd.f32 %v2339, %v2358
  %v2368 = vadd.f32 %v2340, %v2362
  %v2369 = vadd.f32 %v2341, %v2358
  %v2370 = vadd.f32 %v2342, %v2362
  %v2371 = vadd.f32 %v2343, %v2358
  %v2372 = vadd.f32 %v2344, %v2362
  %v2373 = vadd.f32 %v2345, %v2358
  %v2374 = vadd.f32 %v2346, %v2362
  %v2375 = vadd.f32 %v2347, %v2358
  %v2376 = vadd.f32 %v2348, %v2362
  %v2377 = vadd.f32 %v2349, %v2358
  %v2378 = vadd.f32 %v2350, %v2362
  %v2379 = vadd.f32 %v2351, %v2358
  %v2380 = vadd.f32 %v2352, %v2362
  %v2381 = vmax.f32 %v2365, 0.0
  %v2382 = vmax.f32 %v2366, 0.0
  %v2383 = vmax.f32 %v2367, 0.0
  %v2384 = vmax.f32 %v2368, 0.0
  %v2385 = vmax.f32 %v2369, 0.0
  %v2386 = vmax.f32 %v2370, 0.0
  %v2387 = vmax.f32 %v2371, 0.0
  %v2388 = vmax.f32 %v2372, 0.0
  %v2389 = vmax.f32 %v2373, 0.0
  %v2390 = vmax.f32 %v2374, 0.0
  %v2391 = vmax.f32 %v2375, 0.0
  %v2392 = vmax.f32 %v2376, 0.0
  %v2393 = vmax.f32 %v2377, 0.0
  %v2394 = vmax.f32 %v2378, 0.0
  %v2395 = vmax.f32 %v2379, 0.0
  %v2396 = vmax.f32 %v2380, 0.0
  %v2397 = vld [vmem:[%s7] sm:$0xff]
  %v2398 = vld [vmem:[%s7 + $0x8] sm:$0xff]
  %v2399 = vld [vmem:[%s7 + $0x10] sm:$0xff]
  %v2400 = vld [vmem:[%s7 + $0x18] sm:$0xff]
  %v2401 = vld [vmem:[%s7 + $0x20] sm:$0xff]
  %v2402 = vld [vmem:[%s7 + $0x28] sm:$0xff]
  %v2403 = vld [vmem:[%s7 + $0x30] sm:$0xff]
  %v2404 = vld [vmem:[%s7 + $0x38] sm:$0xff]
  %v2405 = vld [vmem:[%s7 + $0x40] sm:$0xff]
  %v2406 = vld [vmem:[%s7 + $0x48] sm:$0xff]
  %v2407 = vld [vmem:[%s7 + $0x50] sm:$0xff]
  %v2408 = vld [vmem:[%s7 + $0x58] sm:$0xff]
  %v2409 = vld [vmem:[%s7 + $0x60] sm:$0xff]
  %v2410 = vld [vmem:[%s7 + $0x68] sm:$0xff]
  %v2411 = vld [vmem:[%s7 + $0x70] sm:$0xff]
  %v2412 = vld [vmem:[%s7 + $0x78] sm:$0xff]
  %v2413 = vld [vmem:[%s7 + $0x80] sm:$0xff]
  %v2414 = vld [vmem:[%s7 + $0x88] sm:$0xff]
  %v2415 = vld [vmem:[%s7 + $0x90] sm:$0xff]
  %v2416 = vld [vmem:[%s7 + $0x98] sm:$0xff]
  %v2417 = vld [vmem:[%s7 + $0xa0] sm:$0xff]
  %v2418 = vld [vmem:[%s7 + $0xa8] sm:$0xff]
  %v2419 = vld [vmem:[%s7 + $0xb0] sm:$0xff]
  %v2420 = vld [vmem:[%s7 + $0xb8] sm:$0xff]
  %v2421 = vld [vmem:[%s7 + $0xc0] sm:$0xff]
  %v2422 = vld [vmem:[%s7 + $0xc8] sm:$0xff]
  %v2423 = vld [vmem:[%s7 + $0xd0] sm:$0xff]
  %v2424 = vld [vmem:[%s7 + $0xd8] sm:$0xff]
  %v2425 = vld [vmem:[%s7 + $0xe0] sm:$0xff]
  %v2426 = vld [vmem:[%s7 + $0xe8] sm:$0xff]
  %v2427 = vld [vmem:[%s7 + $0xf0] sm:$0xff]
  %v2428 = vld [vmem:[%s7 + $0xf8] sm:$0xff]
  %s2429 = scalar_lea.vmem %s7, 256
  %v2430 = vld [vmem:[%s2429] sm:$0xff]
  %v2431 = vld [vmem:[%s2429 + $0x8] sm:$0xff]
  %v2432 = vld [vmem:[%s2429 + $0x10] sm:$0xff]
  %v2433 = vld [vmem:[%s2429 + $0x18] sm:$0xff]
  %v2434 = vld [vmem:[%s2429 + $0x20] sm:$0xff]
  %v2435 = vld [vmem:[%s2429 + $0x28] sm:$0xff]
  %v2436 = vld [vmem:[%s2429 + $0x30] sm:$0xff]
  %v2437 = vld [vmem:[%s2429 + $0x38] sm:$0xff]
  %v2438 = vld [vmem:[%s2429 + $0x40] sm:$0xff]
  %v2439 = vld [vmem:[%s2429 + $0x48] sm:$0xff]
  %v2440 = vld [vmem:[%s2429 + $0x50] sm:$0xff]
  %v2441 = vld [vmem:[%s2429 + $0x58] sm:$0xff]
  %v2442 = vld [vmem:[%s2429 + $0x60] sm:$0xff]
  %v2443 = vld [vmem:[%s2429 + $0x68] sm:$0xff]
  %v2444 = vld [vmem:[%s2429 + $0x70] sm:$0xff]
  %v2445 = vld [vmem:[%s2429 + $0x78] sm:$0xff]
  %v2446 = vld [vmem:[%s2429 + $0x80] sm:$0xff]
  %v2447 = vld [vmem:[%s2429 + $0x88] sm:$0xff]
  %v2448 = vld [vmem:[%s2429 + $0x90] sm:$0xff]
  %v2449 = vld [vmem:[%s2429 + $0x98] sm:$0xff]
  %v2450 = vld [vmem:[%s2429 + $0xa0] sm:$0xff]
  %v2451 = vld [vmem:[%s2429 + $0xa8] sm:$0xff]
  %v2452 = vld [vmem:[%s2429 + $0xb0] sm:$0xff]
  %v2453 = vld [vmem:[%s2429 + $0xb8] sm:$0xff]
  %v2454 = vld [vmem:[%s2429 + $0xc0] sm:$0xff]
  %v2455 = vld [vmem:[%s2429 + $0xc8] sm:$0xff]
  %v2456 = vld [vmem:[%s2429 + $0xd0] sm:$0xff]
  %v2457 = vld [vmem:[%s2429 + $0xd8] sm:$0xff]
  %v2458 = vld [vmem:[%s2429 + $0xe0] sm:$0xff]
  %v2459 = vld [vmem:[%s2429 + $0xe8] sm:$0xff]
  %v2460 = vld [vmem:[%s2429 + $0xf0] sm:$0xff]
  %v2461 = vld [vmem:[%s2429 + $0xf8] sm:$0xff]
  %2462 = vmatprep.subr.mxu0 0.0
  %2463 = vmatpush1.msra.mxu0 %v2430
  %2464 = vmatprep.subr.mxu0 0.0
  %2465 = vmatpush1.msra.mxu0 %v2431
  %2466 = vmatprep.subr.mxu0 0.0
  %2467 = vmatpush1.msra.mxu0 %v2432
  %2468 = vmatprep.subr.mxu0 0.0
  %2469 = vmatpush1.msra.mxu0 %v2433
  %2470 = vmatprep.subr.mxu0 0.0
  %2471 = vmatpush1.msra.mxu0 %v2434
  %2472 = vmatprep.subr.mxu0 0.0
  %2473 = vmatpush1.msra.mxu0 %v2435
  %2474 = vmatprep.subr.mxu0 0.0
  %2475 = vmatpush1.msra.mxu0 %v2436
  %2476 = vmatprep.subr.mxu0 0.0
  %2477 = vmatpush1.msra.mxu0 %v2437
  %2478 = vmatprep.subr.mxu0 0.0
  %2479 = vmatpush1.msra.mxu0 %v2438
  %2480 = vmatprep.subr.mxu0 0.0
  %2481 = vmatpush1.msra.mxu0 %v2439
  %2482 = vmatprep.subr.mxu0 0.0
  %2483 = vmatpush1.msra.mxu0 %v2440
  %2484 = vmatprep.subr.mxu0 0.0
  %2485 = vmatpush1.msra.mxu0 %v2441
  %2486 = vmatprep.subr.mxu0 0.0
  %2487 = vmatpush1.msra.mxu0 %v2442
  %2488 = vmatprep.subr.mxu0 0.0
  %2489 = vmatpush1.msra.mxu0 %v2443
  %2490 = vmatprep.subr.mxu0 0.0
  %2491 = vmatpush1.msra.mxu0 %v2444
  %2492 = vmatprep.subr.mxu0 0.0
  %2493 = vmatpush1.msra.mxu0 %v2445
  %2494 = vmatprep.subr.mxu0 0.0
  %2495 = vmatpush1.msra.mxu0 %v2446
  %2496 = vmatprep.subr.mxu0 0.0
  %2497 = vmatpush1.msra.mxu0 %v2447
  %2498 = vmatprep.subr.mxu0 0.0
  %2499 = vmatpush1.msra.mxu0 %v2448
  %2500 = vmatprep.subr.mxu0 0.0
  %2501 = vmatpush1.msra.mxu0 %v2449
  %2502 = vmatprep.subr.mxu0 0.0
  %2503 = vmatpush1.msra.mxu0 %v2450
  %2504 = vmatprep.subr.mxu0 0.0
  %2505 = vmatpush1.msra.mxu0 %v2451
  %2506 = vmatprep.subr.mxu0 0.0
  %2507 = vmatpush1.msra.mxu0 %v2452
  %2508 = vmatprep.subr.mxu0 0.0
  %2509 = vmatpush1.msra.mxu0 %v2453
  %2510 = vmatprep.subr.mxu0 0.0
  %2511 = vmatpush1.msra.mxu0 %v2454
  %2512 = vmatprep.subr.mxu0 0.0
  %2513 = vmatpush1.msra.mxu0 %v2455
  %2514 = vmatprep.subr.mxu0 0.0
  %2515 = vmatpush1.msra.mxu0 %v2456
  %2516 = vmatprep.subr.mxu0 0.0
  %2517 = vmatpush1.msra.mxu0 %v2457
  %2518 = vmatprep.subr.mxu0 0.0
  %2519 = vmatpush1.msra.mxu0 %v2458
  %2520 = vmatprep.subr.mxu0 0.0
  %2521 = vmatpush1.msra.mxu0 %v2459
  %2522 = vmatprep.subr.mxu0 0.0
  %2523 = vmatpush1.msra.mxu0 %v2460
  %2524 = vmatprep.subr.mxu0 0.0
  %2525 = vmatpush1.msra.mxu0 %v2461
  %2526 = vmatprep.mubr.f32.mxu0 %v2384
  %2527 = vmatmul.mubr.f32.gmra.mrb[0].mxu0 %v2383
  %v2528 = vpop.f32.mrb[0].mxu0
  %v2529 = vadd.f32 0.0, %v2528
  %v2530 = vpop.f32.mrb[0].mxu0
  %2531 = vdwg.mxu0
  %2532 = vmatprep.subr.mxu0 0.0
  %2533 = vmatpush1.msra.mxu0 %v2397
  %2534 = vmatprep.subr.mxu0 0.0
  %2535 = vmatpush1.msra.mxu0 %v2398
  %2536 = vmatprep.subr.mxu0 0.0
  %2537 = vmatpush1.msra.mxu0 %v2399
  %2538 = vmatprep.subr.mxu0 0.0
  %2539 = vmatpush1.msra.mxu0 %v2400
  %2540 = vmatprep.subr.mxu0 0.0
  %2541 = vmatpush1.msra.mxu0 %v2401
  %2542 = vmatprep.subr.mxu0 0.0
  %2543 = vmatpush1.msra.mxu0 %v2402
  %2544 = vmatprep.subr.mxu0 0.0
  %2545 = vmatpush1.msra.mxu0 %v2403
  %2546 = vmatprep.subr.mxu0 0.0
  %2547 = vmatpush1.msra.mxu0 %v2404
  %2548 = vmatprep.subr.mxu0 0.0
  %2549 = vmatpush1.msra.mxu0 %v2405
  %2550 = vmatprep.subr.mxu0 0.0
  %2551 = vmatpush1.msra.mxu0 %v2406
  %2552 = vmatprep.subr.mxu0 0.0
  %2553 = vmatpush1.msra.mxu0 %v2407
  %2554 = vmatprep.subr.mxu0 0.0
  %2555 = vmatpush1.msra.mxu0 %v2408
  %2556 = vmatprep.subr.mxu0 0.0
  %2557 = vmatpush1.msra.mxu0 %v2409
  %2558 = vmatprep.subr.mxu0 0.0
  %2559 = vmatpush1.msra.mxu0 %v2410
  %2560 = vmatprep.subr.mxu0 0.0
  %2561 = vmatpush1.msra.mxu0 %v2411
  %2562 = vmatprep.subr.mxu0 0.0
  %2563 = vmatpush1.msra.mxu0 %v2412
  %2564 = vmatprep.subr.mxu0 0.0
  %2565 = vmatpush1.msra.mxu0 %v2413
  %2566 = vmatprep.subr.mxu0 0.0
  %2567 = vmatpush1.msra.mxu0 %v2414
  %2568 = vmatprep.subr.mxu0 0.0
  %2569 = vmatpush1.msra.mxu0 %v2415
  %2570 = vmatprep.subr.mxu0 0.0
  %2571 = vmatpush1.msra.mxu0 %v2416
  %2572 = vmatprep.subr.mxu0 0.0
  %2573 = vmatpush1.msra.mxu0 %v2417
  %2574 = vmatprep.subr.mxu0 0.0
  %2575 = vmatpush1.msra.mxu0 %v2418
  %2576 = vmatprep.subr.mxu0 0.0
  %2577 = vmatpush1.msra.mxu0 %v2419
  %2578 = vmatprep.subr.mxu0 0.0
  %2579 = vmatpush1.msra.mxu0 %v2420
  %2580 = vmatprep.subr.mxu0 0.0
  %2581 = vmatpush1.msra.mxu0 %v2421
  %2582 = vmatprep.subr.mxu0 0.0
  %2583 = vmatpush1.msra.mxu0 %v2422
  %2584 = vmatprep.subr.mxu0 0.0
  %2585 = vmatpush1.msra.mxu0 %v2423
  %2586 = vmatprep.subr.mxu0 0.0
  %2587 = vmatpush1.msra.mxu0 %v2424
  %2588 = vmatprep.subr.mxu0 0.0
  %2589 = vmatpush1.msra.mxu0 %v2425
  %2590 = vmatprep.subr.mxu0 0.0
  %2591 = vmatpush1.msra.mxu0 %v2426
  %2592 = vmatprep.subr.mxu0 0.0
  %2593 = vmatpush1.msra.mxu0 %v2427
  %2594 = vmatprep.subr.mxu0 0.0
  %2595 = vmatpush1.msra.mxu0 %v2428
  %2596 = vmatprep.mubr.f32.mxu0 %v2382
  %2597 = vmatmul.mubr.f32.gmra.mrb[0].mxu0 %v2381
  %v2598 = vpop.f32.mrb[0].mxu0
  %v2599 = vadd.f32 %v2529, %v2598
  %v2600 = vpop.f32.mrb[0].mxu0
  %2601 = vdwg.mxu0
  %s2602 = scalar_lea.vmem %s7, 512
  %v2603 = vld [vmem:[%s2602] sm:$0xff]
  %v2604 = vld [vmem:[%s2602 + $0x8] sm:$0xff]
  %v2605 = vld [vmem:[%s2602 + $0x10] sm:$0xff]
  %v2606 = vld [vmem:[%s2602 + $0x18] sm:$0xff]
  %v2607 = vld [vmem:[%s2602 + $0x20] sm:$0xff]
  %v2608 = vld [vmem:[%s2602 + $0x28] sm:$0xff]
  %v2609 = vld [vmem:[%s2602 + $0x30] sm:$0xff]
  %v2610 = vld [vmem:[%s2602 + $0x38] sm:$0xff]
  %v2611 = vld [vmem:[%s2602 + $0x40] sm:$0xff]
  %v2612 = vld [vmem:[%s2602 + $0x48] sm:$0xff]
  %v2613 = vld [vmem:[%s2602 + $0x50] sm:$0xff]
  %v2614 = vld [vmem:[%s2602 + $0x58] sm:$0xff]
  %v2615 = vld [vmem:[%s2602 + $0x60] sm:$0xff]
  %v2616 = vld [vmem:[%s2602 + $0x68] sm:$0xff]
  %v2617 = vld [vmem:[%s2602 + $0x70] sm:$0xff]
  %v2618 = vld [vmem:[%s2602 + $0x78] sm:$0xff]
  %v2619 = vld [vmem:[%s2602 + $0x80] sm:$0xff]
  %v2620 = vld [vmem:[%s2602 + $0x88] sm:$0xff]
  %v2621 = vld [vmem:[%s2602 + $0x90] sm:$0xff]
  %v2622 = vld [vmem:[%s2602 + $0x98] sm:$0xff]
  %v2623 = vld [vmem:[%s2602 + $0xa0] sm:$0xff]
  %v2624 = vld [vmem:[%s2602 + $0xa8] sm:$0xff]
  %v2625 = vld [vmem:[%s2602 + $0xb0] sm:$0xff]
  %v2626 = vld [vmem:[%s2602 + $0xb8] sm:$0xff]
  %v2627 = vld [vmem:[%s2602 + $0xc0] sm:$0xff]
  %v2628 = vld [vmem:[%s2602 + $0xc8] sm:$0xff]
  %v2629 = vld [vmem:[%s2602 + $0xd0] sm:$0xff]
  %v2630 = vld [vmem:[%s2602 + $0xd8] sm:$0xff]
  %v2631 = vld [vmem:[%s2602 + $0xe0] sm:$0xff]
  %v2632 = vld [vmem:[%s2602 + $0xe8] sm:$0xff]
  %v2633 = vld [vmem:[%s2602 + $0xf0] sm:$0xff]
  %v2634 = vld [vmem:[%s2602 + $0xf8] sm:$0xff]
  %2635 = vmatprep.subr.mxu0 0.0
  %2636 = vmatpush1.msra.mxu0 %v2603
  %2637 = vmatprep.subr.mxu0 0.0
  %2638 = vmatpush1.msra.mxu0 %v2604
  %2639 = vmatprep.subr.mxu0 0.0
  %2640 = vmatpush1.msra.mxu0 %v2605
  %2641 = vmatprep.subr.mxu0 0.0
  %2642 = vmatpush1.msra.mxu0 %v2606
  %2643 = vmatprep.subr.mxu0 0.0
  %2644 = vmatpush1.msra.mxu0 %v2607
  %2645 = vmatprep.subr.mxu0 0.0
  %2646 = vmatpush1.msra.mxu0 %v2608
  %2647 = vmatprep.subr.mxu0 0.0
  %2648 = vmatpush1.msra.mxu0 %v2609
  %2649 = vmatprep.subr.mxu0 0.0
  %2650 = vmatpush1.msra.mxu0 %v2610
  %2651 = vmatprep.subr.mxu0 0.0
  %2652 = vmatpush1.msra.mxu0 %v2611
  %2653 = vmatprep.subr.mxu0 0.0
  %2654 = vmatpush1.msra.mxu0 %v2612
  %2655 = vmatprep.subr.mxu0 0.0
  %2656 = vmatpush1.msra.mxu0 %v2613
  %2657 = vmatprep.subr.mxu0 0.0
  %2658 = vmatpush1.msra.mxu0 %v2614
  %2659 = vmatprep.subr.mxu0 0.0
  %2660 = vmatpush1.msra.mxu0 %v2615
  %2661 = vmatprep.subr.mxu0 0.0
  %2662 = vmatpush1.msra.mxu0 %v2616
  %2663 = vmatprep.subr.mxu0 0.0
  %2664 = vmatpush1.msra.mxu0 %v2617
  %2665 = vmatprep.subr.mxu0 0.0
  %2666 = vmatpush1.msra.mxu0 %v2618
  %2667 = vmatprep.subr.mxu0 0.0
  %2668 = vmatpush1.msra.mxu0 %v2619
  %2669 = vmatprep.subr.mxu0 0.0
  %2670 = vmatpush1.msra.mxu0 %v2620
  %2671 = vmatprep.subr.mxu0 0.0
  %2672 = vmatpush1.msra.mxu0 %v2621
  %2673 = vmatprep.subr.mxu0 0.0
  %2674 = vmatpush1.msra.mxu0 %v2622
  %2675 = vmatprep.subr.mxu0 0.0
  %2676 = vmatpush1.msra.mxu0 %v2623
  %2677 = vmatprep.subr.mxu0 0.0
  %2678 = vmatpush1.msra.mxu0 %v2624
  %2679 = vmatprep.subr.mxu0 0.0
  %2680 = vmatpush1.msra.mxu0 %v2625
  %2681 = vmatprep.subr.mxu0 0.0
  %2682 = vmatpush1.msra.mxu0 %v2626
  %2683 = vmatprep.subr.mxu0 0.0
  %2684 = vmatpush1.msra.mxu0 %v2627
  %2685 = vmatprep.subr.mxu0 0.0
  %2686 = vmatpush1.msra.mxu0 %v2628
  %2687 = vmatprep.subr.mxu0 0.0
  %2688 = vmatpush1.msra.mxu0 %v2629
  %2689 = vmatprep.subr.mxu0 0.0
  %2690 = vmatpush1.msra.mxu0 %v2630
  %2691 = vmatprep.subr.mxu0 0.0
  %2692 = vmatpush1.msra.mxu0 %v2631
  %2693 = vmatprep.subr.mxu0 0.0
  %2694 = vmatpush1.msra.mxu0 %v2632
  %2695 = vmatprep.subr.mxu0 0.0
  %2696 = vmatpush1.msra.mxu0 %v2633
  %2697 = vmatprep.subr.mxu0 0.0
  %2698 = vmatpush1.msra.mxu0 %v2634
  %2699 = vmatprep.mubr.f32.mxu0 %v2386
  %2700 = vmatmul.mubr.f32.gmra.mrb[0].mxu0 %v2385
  %v2701 = vpop.f32.mrb[0].mxu0
  %v2702 = vadd.f32 0.0, %v2701
  %v2703 = vpop.f32.mrb[0].mxu0
  %2704 = vdwg.mxu0
  %v2705 = vadd.f32 %v2599, %v2702
  %s2706 = scalar_lea.vmem %s7, 768
  %v2707 = vld [vmem:[%s2706] sm:$0xff]
  %v2708 = vld [vmem:[%s2706 + $0x8] sm:$0xff]
  %v2709 = vld [vmem:[%s2706 + $0x10] sm:$0xff]
  %v2710 = vld [vmem:[%s2706 + $0x18] sm:$0xff]
  %v2711 = vld [vmem:[%s2706 + $0x20] sm:$0xff]
  %v2712 = vld [vmem:[%s2706 + $0x28] sm:$0xff]
  %v2713 = vld [vmem:[%s2706 + $0x30] sm:$0xff]
  %v2714 = vld [vmem:[%s2706 + $0x38] sm:$0xff]
  %v2715 = vld [vmem:[%s2706 + $0x40] sm:$0xff]
  %v2716 = vld [vmem:[%s2706 + $0x48] sm:$0xff]
  %v2717 = vld [vmem:[%s2706 + $0x50] sm:$0xff]
  %v2718 = vld [vmem:[%s2706 + $0x58] sm:$0xff]
  %v2719 = vld [vmem:[%s2706 + $0x60] sm:$0xff]
  %v2720 = vld [vmem:[%s2706 + $0x68] sm:$0xff]
  %v2721 = vld [vmem:[%s2706 + $0x70] sm:$0xff]
  %v2722 = vld [vmem:[%s2706 + $0x78] sm:$0xff]
  %v2723 = vld [vmem:[%s2706 + $0x80] sm:$0xff]
  %v2724 = vld [vmem:[%s2706 + $0x88] sm:$0xff]
  %v2725 = vld [vmem:[%s2706 + $0x90] sm:$0xff]
  %v2726 = vld [vmem:[%s2706 + $0x98] sm:$0xff]
  %v2727 = vld [vmem:[%s2706 + $0xa0] sm:$0xff]
  %v2728 = vld [vmem:[%s2706 + $0xa8] sm:$0xff]
  %v2729 = vld [vmem:[%s2706 + $0xb0] sm:$0xff]
  %v2730 = vld [vmem:[%s2706 + $0xb8] sm:$0xff]
  %v2731 = vld [vmem:[%s2706 + $0xc0] sm:$0xff]
  %v2732 = vld [vmem:[%s2706 + $0xc8] sm:$0xff]
  %v2733 = vld [vmem:[%s2706 + $0xd0] sm:$0xff]
  %v2734 = vld [vmem:[%s2706 + $0xd8] sm:$0xff]
  %v2735 = vld [vmem:[%s2706 + $0xe0] sm:$0xff]
  %v2736 = vld [vmem:[%s2706 + $0xe8] sm:$0xff]
  %v2737 = vld [vmem:[%s2706 + $0xf0] sm:$0xff]
  %v2738 = vld [vmem:[%s2706 + $0xf8] sm:$0xff]
  %2739 = vmatprep.subr.mxu0 0.0
  %2740 = vmatpush1.msra.mxu0 %v2707
  %2741 = vmatprep.subr.mxu0 0.0
  %2742 = vmatpush1.msra.mxu0 %v2708
  %2743 = vmatprep.subr.mxu0 0.0
  %2744 = vmatpush1.msra.mxu0 %v2709
  %2745 = vmatprep.subr.mxu0 0.0
  %2746 = vmatpush1.msra.mxu0 %v2710
  %2747 = vmatprep.subr.mxu0 0.0
  %2748 = vmatpush1.msra.mxu0 %v2711
  %2749 = vmatprep.subr.mxu0 0.0
  %2750 = vmatpush1.msra.mxu0 %v2712
  %2751 = vmatprep.subr.mxu0 0.0
  %2752 = vmatpush1.msra.mxu0 %v2713
  %2753 = vmatprep.subr.mxu0 0.0
  %2754 = vmatpush1.msra.mxu0 %v2714
  %2755 = vmatprep.subr.mxu0 0.0
  %2756 = vmatpush1.msra.mxu0 %v2715
  %2757 = vmatprep.subr.mxu0 0.0
  %2758 = vmatpush1.msra.mxu0 %v2716
  %2759 = vmatprep.subr.mxu0 0.0
  %2760 = vmatpush1.msra.mxu0 %v2717
  %2761 = vmatprep.subr.mxu0 0.0
  %2762 = vmatpush1.msra.mxu0 %v2718
  %2763 = vmatprep.subr.mxu0 0.0
  %2764 = vmatpush1.msra.mxu0 %v2719
  %2765 = vmatprep.subr.mxu0 0.0
  %2766 = vmatpush1.msra.mxu0 %v2720
  %2767 = vmatprep.subr.mxu0 0.0
  %2768 = vmatpush1.msra.mxu0 %v2721
  %2769 = vmatprep.subr.mxu0 0.0
  %2770 = vmatpush1.msra.mxu0 %v2722
  %2771 = vmatprep.subr.mxu0 0.0
  %2772 = vmatpush1.msra.mxu0 %v2723
  %2773 = vmatprep.subr.mxu0 0.0
  %2774 = vmatpush1.msra.mxu0 %v2724
  %2775 = vmatprep.subr.mxu0 0.0
  %2776 = vmatpush1.msra.mxu0 %v2725
  %2777 = vmatprep.subr.mxu0 0.0
  %2778 = vmatpush1.msra.mxu0 %v2726
  %2779 = vmatprep.subr.mxu0 0.0
  %2780 = vmatpush1.msra.mxu0 %v2727
  %2781 = vmatprep.subr.mxu0 0.0
  %2782 = vmatpush1.msra.mxu0 %v2728
  %2783 = vmatprep.subr.mxu0 0.0
  %2784 = vmatpush1.msra.mxu0 %v2729
  %2785 = vmatprep.subr.mxu0 0.0
  %2786 = vmatpush1.msra.mxu0 %v2730
  %2787 = vmatprep.subr.mxu0 0.0
  %2788 = vmatpush1.msra.mxu0 %v2731
  %2789 = vmatprep.subr.mxu0 0.0
  %2790 = vmatpush1.msra.mxu0 %v2732
  %2791 = vmatprep.subr.mxu0 0.0
  %2792 = vmatpush1.msra.mxu0 %v2733
  %2793 = vmatprep.subr.mxu0 0.0
  %2794 = vmatpush1.msra.mxu0 %v2734
  %2795 = vmatprep.subr.mxu0 0.0
  %2796 = vmatpush1.msra.mxu0 %v2735
  %2797 = vmatprep.subr.mxu0 0.0
  %2798 = vmatpush1.msra.mxu0 %v2736
  %2799 = vmatprep.subr.mxu0 0.0
  %2800 = vmatpush1.msra.mxu0 %v2737
  %2801 = vmatprep.subr.mxu0 0.0
  %2802 = vmatpush1.msra.mxu0 %v2738
  %2803 = vmatprep.mubr.f32.mxu0 %v2388
  %2804 = vmatmul.mubr.f32.gmra.mrb[0].mxu0 %v2387
  %v2805 = vpop.f32.mrb[0].mxu0
  %v2806 = vadd.f32 0.0, %v2805
  %v2807 = vpop.f32.mrb[0].mxu0
  %2808 = vdwg.mxu0
  %v2809 = vadd.f32 %v2705, %v2806
  %s2810 = scalar_lea.vmem %s7, 1024
  %v2811 = vld [vmem:[%s2810] sm:$0xff]
  %v2812 = vld [vmem:[%s2810 + $0x8] sm:$0xff]
  %v2813 = vld [vmem:[%s2810 + $0x10] sm:$0xff]
  %v2814 = vld [vmem:[%s2810 + $0x18] sm:$0xff]
  %v2815 = vld [vmem:[%s2810 + $0x20] sm:$0xff]
  %v2816 = vld [vmem:[%s2810 + $0x28] sm:$0xff]
  %v2817 = vld [vmem:[%s2810 + $0x30] sm:$0xff]
  %v2818 = vld [vmem:[%s2810 + $0x38] sm:$0xff]
  %v2819 = vld [vmem:[%s2810 + $0x40] sm:$0xff]
  %v2820 = vld [vmem:[%s2810 + $0x48] sm:$0xff]
  %v2821 = vld [vmem:[%s2810 + $0x50] sm:$0xff]
  %v2822 = vld [vmem:[%s2810 + $0x58] sm:$0xff]
  %v2823 = vld [vmem:[%s2810 + $0x60] sm:$0xff]
  %v2824 = vld [vmem:[%s2810 + $0x68] sm:$0xff]
  %v2825 = vld [vmem:[%s2810 + $0x70] sm:$0xff]
  %v2826 = vld [vmem:[%s2810 + $0x78] sm:$0xff]
  %v2827 = vld [vmem:[%s2810 + $0x80] sm:$0xff]
  %v2828 = vld [vmem:[%s2810 + $0x88] sm:$0xff]
  %v2829 = vld [vmem:[%s2810 + $0x90] sm:$0xff]
  %v2830 = vld [vmem:[%s2810 + $0x98] sm:$0xff]
  %v2831 = vld [vmem:[%s2810 + $0xa0] sm:$0xff]
  %v2832 = vld [vmem:[%s2810 + $0xa8] sm:$0xff]
  %v2833 = vld [vmem:[%s2810 + $0xb0] sm:$0xff]
  %v2834 = vld [vmem:[%s2810 + $0xb8] sm:$0xff]
  %v2835 = vld [vmem:[%s2810 + $0xc0] sm:$0xff]
  %v2836 = vld [vmem:[%s2810 + $0xc8] sm:$0xff]
  %v2837 = vld [vmem:[%s2810 + $0xd0] sm:$0xff]
  %v2838 = vld [vmem:[%s2810 + $0xd8] sm:$0xff]
  %v2839 = vld [vmem:[%s2810 + $0xe0] sm:$0xff]
  %v2840 = vld [vmem:[%s2810 + $0xe8] sm:$0xff]
  %v2841 = vld [vmem:[%s2810 + $0xf0] sm:$0xff]
  %v2842 = vld [vmem:[%s2810 + $0xf8] sm:$0xff]
  %2843 = vmatprep.subr.mxu0 0.0
  %2844 = vmatpush1.msra.mxu0 %v2811
  %2845 = vmatprep.subr.mxu0 0.0
  %2846 = vmatpush1.msra.mxu0 %v2812
  %2847 = vmatprep.subr.mxu0 0.0
  %2848 = vmatpush1.msra.mxu0 %v2813
  %2849 = vmatprep.subr.mxu0 0.0
  %2850 = vmatpush1.msra.mxu0 %v2814
  %2851 = vmatprep.subr.mxu0 0.0
  %2852 = vmatpush1.msra.mxu0 %v2815
  %2853 = vmatprep.subr.mxu0 0.0
  %2854 = vmatpush1.msra.mxu0 %v2816
  %2855 = vmatprep.subr.mxu0 0.0
  %2856 = vmatpush1.msra.mxu0 %v2817
  %2857 = vmatprep.subr.mxu0 0.0
  %2858 = vmatpush1.msra.mxu0 %v2818
  %2859 = vmatprep.subr.mxu0 0.0
  %2860 = vmatpush1.msra.mxu0 %v2819
  %2861 = vmatprep.subr.mxu0 0.0
  %2862 = vmatpush1.msra.mxu0 %v2820
  %2863 = vmatprep.subr.mxu0 0.0
  %2864 = vmatpush1.msra.mxu0 %v2821
  %2865 = vmatprep.subr.mxu0 0.0
  %2866 = vmatpush1.msra.mxu0 %v2822
  %2867 = vmatprep.subr.mxu0 0.0
  %2868 = vmatpush1.msra.mxu0 %v2823
  %2869 = vmatprep.subr.mxu0 0.0
  %2870 = vmatpush1.msra.mxu0 %v2824
  %2871 = vmatprep.subr.mxu0 0.0
  %2872 = vmatpush1.msra.mxu0 %v2825
  %2873 = vmatprep.subr.mxu0 0.0
  %2874 = vmatpush1.msra.mxu0 %v2826
  %2875 = vmatprep.subr.mxu0 0.0
  %2876 = vmatpush1.msra.mxu0 %v2827
  %2877 = vmatprep.subr.mxu0 0.0
  %2878 = vmatpush1.msra.mxu0 %v2828
  %2879 = vmatprep.subr.mxu0 0.0
  %2880 = vmatpush1.msra.mxu0 %v2829
  %2881 = vmatprep.subr.mxu0 0.0
  %2882 = vmatpush1.msra.mxu0 %v2830
  %2883 = vmatprep.subr.mxu0 0.0
  %2884 = vmatpush1.msra.mxu0 %v2831
  %2885 = vmatprep.subr.mxu0 0.0
  %2886 = vmatpush1.msra.mxu0 %v2832
  %2887 = vmatprep.subr.mxu0 0.0
  %2888 = vmatpush1.msra.mxu0 %v2833
  %2889 = vmatprep.subr.mxu0 0.0
  %2890 = vmatpush1.msra.mxu0 %v2834
  %2891 = vmatprep.subr.mxu0 0.0
  %2892 = vmatpush1.msra.mxu0 %v2835
  %2893 = vmatprep.subr.mxu0 0.0
  %2894 = vmatpush1.msra.mxu0 %v2836
  %2895 = vmatprep.subr.mxu0 0.0
  %2896 = vmatpush1.msra.mxu0 %v2837
  %2897 = vmatprep.subr.mxu0 0.0
  %2898 = vmatpush1.msra.mxu0 %v2838
  %2899 = vmatprep.subr.mxu0 0.0
  %2900 = vmatpush1.msra.mxu0 %v2839
  %2901 = vmatprep.subr.mxu0 0.0
  %2902 = vmatpush1.msra.mxu0 %v2840
  %2903 = vmatprep.subr.mxu0 0.0
  %2904 = vmatpush1.msra.mxu0 %v2841
  %2905 = vmatprep.subr.mxu0 0.0
  %2906 = vmatpush1.msra.mxu0 %v2842
  %2907 = vmatprep.mubr.f32.mxu0 %v2390
  %2908 = vmatmul.mubr.f32.gmra.mrb[0].mxu0 %v2389
  %v2909 = vpop.f32.mrb[0].mxu0
  %v2910 = vadd.f32 0.0, %v2909
  %v2911 = vpop.f32.mrb[0].mxu0
  %2912 = vdwg.mxu0
  %v2913 = vadd.f32 %v2809, %v2910
  %s2914 = scalar_lea.vmem %s7, 1280
  %v2915 = vld [vmem:[%s2914] sm:$0xff]
  %v2916 = vld [vmem:[%s2914 + $0x8] sm:$0xff]
  %v2917 = vld [vmem:[%s2914 + $0x10] sm:$0xff]
  %v2918 = vld [vmem:[%s2914 + $0x18] sm:$0xff]
  %v2919 = vld [vmem:[%s2914 + $0x20] sm:$0xff]
  %v2920 = vld [vmem:[%s2914 + $0x28] sm:$0xff]
  %v2921 = vld [vmem:[%s2914 + $0x30] sm:$0xff]
  %v2922 = vld [vmem:[%s2914 + $0x38] sm:$0xff]
  %v2923 = vld [vmem:[%s2914 + $0x40] sm:$0xff]
  %v2924 = vld [vmem:[%s2914 + $0x48] sm:$0xff]
  %v2925 = vld [vmem:[%s2914 + $0x50] sm:$0xff]
  %v2926 = vld [vmem:[%s2914 + $0x58] sm:$0xff]
  %v2927 = vld [vmem:[%s2914 + $0x60] sm:$0xff]
  %v2928 = vld [vmem:[%s2914 + $0x68] sm:$0xff]
  %v2929 = vld [vmem:[%s2914 + $0x70] sm:$0xff]
  %v2930 = vld [vmem:[%s2914 + $0x78] sm:$0xff]
  %v2931 = vld [vmem:[%s2914 + $0x80] sm:$0xff]
  %v2932 = vld [vmem:[%s2914 + $0x88] sm:$0xff]
  %v2933 = vld [vmem:[%s2914 + $0x90] sm:$0xff]
  %v2934 = vld [vmem:[%s2914 + $0x98] sm:$0xff]
  %v2935 = vld [vmem:[%s2914 + $0xa0] sm:$0xff]
  %v2936 = vld [vmem:[%s2914 + $0xa8] sm:$0xff]
  %v2937 = vld [vmem:[%s2914 + $0xb0] sm:$0xff]
  %v2938 = vld [vmem:[%s2914 + $0xb8] sm:$0xff]
  %v2939 = vld [vmem:[%s2914 + $0xc0] sm:$0xff]
  %v2940 = vld [vmem:[%s2914 + $0xc8] sm:$0xff]
  %v2941 = vld [vmem:[%s2914 + $0xd0] sm:$0xff]
  %v2942 = vld [vmem:[%s2914 + $0xd8] sm:$0xff]
  %v2943 = vld [vmem:[%s2914 + $0xe0] sm:$0xff]
  %v2944 = vld [vmem:[%s2914 + $0xe8] sm:$0xff]
  %v2945 = vld [vmem:[%s2914 + $0xf0] sm:$0xff]
  %v2946 = vld [vmem:[%s2914 + $0xf8] sm:$0xff]
  %2947 = vmatprep.subr.mxu0 0.0
  %2948 = vmatpush1.msra.mxu0 %v2915
  %2949 = vmatprep.subr.mxu0 0.0
  %2950 = vmatpush1.msra.mxu0 %v2916
  %2951 = vmatprep.subr.mxu0 0.0
  %2952 = vmatpush1.msra.mxu0 %v2917
  %2953 = vmatprep.subr.mxu0 0.0
  %2954 = vmatpush1.msra.mxu0 %v2918
  %2955 = vmatprep.subr.mxu0 0.0
  %2956 = vmatpush1.msra.mxu0 %v2919
  %2957 = vmatprep.subr.mxu0 0.0
  %2958 = vmatpush1.msra.mxu0 %v2920
  %2959 = vmatprep.subr.mxu0 0.0
  %2960 = vmatpush1.msra.mxu0 %v2921
  %2961 = vmatprep.subr.mxu0 0.0
  %2962 = vmatpush1.msra.mxu0 %v2922
  %2963 = vmatprep.subr.mxu0 0.0
  %2964 = vmatpush1.msra.mxu0 %v2923
  %2965 = vmatprep.subr.mxu0 0.0
  %2966 = vmatpush1.msra.mxu0 %v2924
  %2967 = vmatprep.subr.mxu0 0.0
  %2968 = vmatpush1.msra.mxu0 %v2925
  %2969 = vmatprep.subr.mxu0 0.0
  %2970 = vmatpush1.msra.mxu0 %v2926
  %2971 = vmatprep.subr.mxu0 0.0
  %2972 = vmatpush1.msra.mxu0 %v2927
  %2973 = vmatprep.subr.mxu0 0.0
  %2974 = vmatpush1.msra.mxu0 %v2928
  %2975 = vmatprep.subr.mxu0 0.0
  %2976 = vmatpush1.msra.mxu0 %v2929
  %2977 = vmatprep.subr.mxu0 0.0
  %2978 = vmatpush1.msra.mxu0 %v2930
  %2979 = vmatprep.subr.mxu0 0.0
  %2980 = vmatpush1.msra.mxu0 %v2931
  %2981 = vmatprep.subr.mxu0 0.0
  %2982 = vmatpush1.msra.mxu0 %v2932
  %2983 = vmatprep.subr.mxu0 0.0
  %2984 = vmatpush1.msra.mxu0 %v2933
  %2985 = vmatprep.subr.mxu0 0.0
  %2986 = vmatpush1.msra.mxu0 %v2934
  %2987 = vmatprep.subr.mxu0 0.0
  %2988 = vmatpush1.msra.mxu0 %v2935
  %2989 = vmatprep.subr.mxu0 0.0
  %2990 = vmatpush1.msra.mxu0 %v2936
  %2991 = vmatprep.subr.mxu0 0.0
  %2992 = vmatpush1.msra.mxu0 %v2937
  %2993 = vmatprep.subr.mxu0 0.0
  %2994 = vmatpush1.msra.mxu0 %v2938
  %2995 = vmatprep.subr.mxu0 0.0
  %2996 = vmatpush1.msra.mxu0 %v2939
  %2997 = vmatprep.subr.mxu0 0.0
  %2998 = vmatpush1.msra.mxu0 %v2940
  %2999 = vmatprep.subr.mxu0 0.0
  %3000 = vmatpush1.msra.mxu0 %v2941
  %3001 = vmatprep.subr.mxu0 0.0
  %3002 = vmatpush1.msra.mxu0 %v2942
  %3003 = vmatprep.subr.mxu0 0.0
  %3004 = vmatpush1.msra.mxu0 %v2943
  %3005 = vmatprep.subr.mxu0 0.0
  %3006 = vmatpush1.msra.mxu0 %v2944
  %3007 = vmatprep.subr.mxu0 0.0
  %3008 = vmatpush1.msra.mxu0 %v2945
  %3009 = vmatprep.subr.mxu0 0.0
  %3010 = vmatpush1.msra.mxu0 %v2946
  %3011 = vmatprep.mubr.f32.mxu0 %v2392
  %3012 = vmatmul.mubr.f32.gmra.mrb[0].mxu0 %v2391
  %v3013 = vpop.f32.mrb[0].mxu0
  %v3014 = vadd.f32 0.0, %v3013
  %v3015 = vpop.f32.mrb[0].mxu0
  %3016 = vdwg.mxu0
  %v3017 = vadd.f32 %v2913, %v3014
  %s3018 = scalar_lea.vmem %s7, 1536
  %v3019 = vld [vmem:[%s3018] sm:$0xff]
  %v3020 = vld [vmem:[%s3018 + $0x8] sm:$0xff]
  %v3021 = vld [vmem:[%s3018 + $0x10] sm:$0xff]
  %v3022 = vld [vmem:[%s3018 + $0x18] sm:$0xff]
  %v3023 = vld [vmem:[%s3018 + $0x20] sm:$0xff]
  %v3024 = vld [vmem:[%s3018 + $0x28] sm:$0xff]
  %v3025 = vld [vmem:[%s3018 + $0x30] sm:$0xff]
  %v3026 = vld [vmem:[%s3018 + $0x38] sm:$0xff]
  %v3027 = vld [vmem:[%s3018 + $0x40] sm:$0xff]
  %v3028 = vld [vmem:[%s3018 + $0x48] sm:$0xff]
  %v3029 = vld [vmem:[%s3018 + $0x50] sm:$0xff]
  %v3030 = vld [vmem:[%s3018 + $0x58] sm:$0xff]
  %v3031 = vld [vmem:[%s3018 + $0x60] sm:$0xff]
  %v3032 = vld [vmem:[%s3018 + $0x68] sm:$0xff]
  %v3033 = vld [vmem:[%s3018 + $0x70] sm:$0xff]
  %v3034 = vld [vmem:[%s3018 + $0x78] sm:$0xff]
  %v3035 = vld [vmem:[%s3018 + $0x80] sm:$0xff]
  %v3036 = vld [vmem:[%s3018 + $0x88] sm:$0xff]
  %v3037 = vld [vmem:[%s3018 + $0x90] sm:$0xff]
  %v3038 = vld [vmem:[%s3018 + $0x98] sm:$0xff]
  %v3039 = vld [vmem:[%s3018 + $0xa0] sm:$0xff]
  %v3040 = vld [vmem:[%s3018 + $0xa8] sm:$0xff]
  %v3041 = vld [vmem:[%s3018 + $0xb0] sm:$0xff]
  %v3042 = vld [vmem:[%s3018 + $0xb8] sm:$0xff]
  %v3043 = vld [vmem:[%s3018 + $0xc0] sm:$0xff]
  %v3044 = vld [vmem:[%s3018 + $0xc8] sm:$0xff]
  %v3045 = vld [vmem:[%s3018 + $0xd0] sm:$0xff]
  %v3046 = vld [vmem:[%s3018 + $0xd8] sm:$0xff]
  %v3047 = vld [vmem:[%s3018 + $0xe0] sm:$0xff]
  %v3048 = vld [vmem:[%s3018 + $0xe8] sm:$0xff]
  %v3049 = vld [vmem:[%s3018 + $0xf0] sm:$0xff]
  %v3050 = vld [vmem:[%s3018 + $0xf8] sm:$0xff]
  %3051 = vmatprep.subr.mxu0 0.0
  %3052 = vmatpush1.msra.mxu0 %v3019
  %3053 = vmatprep.subr.mxu0 0.0
  %3054 = vmatpush1.msra.mxu0 %v3020
  %3055 = vmatprep.subr.mxu0 0.0
  %3056 = vmatpush1.msra.mxu0 %v3021
  %3057 = vmatprep.subr.mxu0 0.0
  %3058 = vmatpush1.msra.mxu0 %v3022
  %3059 = vmatprep.subr.mxu0 0.0
  %3060 = vmatpush1.msra.mxu0 %v3023
  %3061 = vmatprep.subr.mxu0 0.0
  %3062 = vmatpush1.msra.mxu0 %v3024
  %3063 = vmatprep.subr.mxu0 0.0
  %3064 = vmatpush1.msra.mxu0 %v3025
  %3065 = vmatprep.subr.mxu0 0.0
  %3066 = vmatpush1.msra.mxu0 %v3026
  %3067 = vmatprep.subr.mxu0 0.0
  %3068 = vmatpush1.msra.mxu0 %v3027
  %3069 = vmatprep.subr.mxu0 0.0
  %3070 = vmatpush1.msra.mxu0 %v3028
  %3071 = vmatprep.subr.mxu0 0.0
  %3072 = vmatpush1.msra.mxu0 %v3029
  %3073 = vmatprep.subr.mxu0 0.0
  %3074 = vmatpush1.msra.mxu0 %v3030
  %3075 = vmatprep.subr.mxu0 0.0
  %3076 = vmatpush1.msra.mxu0 %v3031
  %3077 = vmatprep.subr.mxu0 0.0
  %3078 = vmatpush1.msra.mxu0 %v3032
  %3079 = vmatprep.subr.mxu0 0.0
  %3080 = vmatpush1.msra.mxu0 %v3033
  %3081 = vmatprep.subr.mxu0 0.0
  %3082 = vmatpush1.msra.mxu0 %v3034
  %3083 = vmatprep.subr.mxu0 0.0
  %3084 = vmatpush1.msra.mxu0 %v3035
  %3085 = vmatprep.subr.mxu0 0.0
  %3086 = vmatpush1.msra.mxu0 %v3036
  %3087 = vmatprep.subr.mxu0 0.0
  %3088 = vmatpush1.msra.mxu0 %v3037
  %3089 = vmatprep.subr.mxu0 0.0
  %3090 = vmatpush1.msra.mxu0 %v3038
  %3091 = vmatprep.subr.mxu0 0.0
  %3092 = vmatpush1.msra.mxu0 %v3039
  %3093 = vmatprep.subr.mxu0 0.0
  %3094 = vmatpush1.msra.mxu0 %v3040
  %3095 = vmatprep.subr.mxu0 0.0
  %3096 = vmatpush1.msra.mxu0 %v3041
  %3097 = vmatprep.subr.mxu0 0.0
  %3098 = vmatpush1.msra.mxu0 %v3042
  %3099 = vmatprep.subr.mxu0 0.0
  %3100 = vmatpush1.msra.mxu0 %v3043
  %3101 = vmatprep.subr.mxu0 0.0
  %3102 = vmatpush1.msra.mxu0 %v3044
  %3103 = vmatprep.subr.mxu0 0.0
  %3104 = vmatpush1.msra.mxu0 %v3045
  %3105 = vmatprep.subr.mxu0 0.0
  %3106 = vmatpush1.msra.mxu0 %v3046
  %3107 = vmatprep.subr.mxu0 0.0
  %3108 = vmatpush1.msra.mxu0 %v3047
  %3109 = vmatprep.subr.mxu0 0.0
  %3110 = vmatpush1.msra.mxu0 %v3048
  %3111 = vmatprep.subr.mxu0 0.0
  %3112 = vmatpush1.msra.mxu0 %v3049
  %3113 = vmatprep.subr.mxu0 0.0
  %3114 = vmatpush1.msra.mxu0 %v3050
  %3115 = vmatprep.mubr.f32.mxu0 %v2394
  %3116 = vmatmul.mubr.f32.gmra.mrb[0].mxu0 %v2393
  %v3117 = vpop.f32.mrb[0].mxu0
  %v3118 = vadd.f32 0.0, %v3117
  %v3119 = vpop.f32.mrb[0].mxu0
  %3120 = vdwg.mxu0
  %v3121 = vadd.f32 %v3017, %v3118
  %s3122 = scalar_lea.vmem %s7, 1792
  %v3123 = vld [vmem:[%s3122] sm:$0xff]
  %v3124 = vld [vmem:[%s3122 + $0x8] sm:$0xff]
  %v3125 = vld [vmem:[%s3122 + $0x10] sm:$0xff]
  %v3126 = vld [vmem:[%s3122 + $0x18] sm:$0xff]
  %v3127 = vld [vmem:[%s3122 + $0x20] sm:$0xff]
  %v3128 = vld [vmem:[%s3122 + $0x28] sm:$0xff]
  %v3129 = vld [vmem:[%s3122 + $0x30] sm:$0xff]
  %v3130 = vld [vmem:[%s3122 + $0x38] sm:$0xff]
  %v3131 = vld [vmem:[%s3122 + $0x40] sm:$0xff]
  %v3132 = vld [vmem:[%s3122 + $0x48] sm:$0xff]
  %v3133 = vld [vmem:[%s3122 + $0x50] sm:$0xff]
  %v3134 = vld [vmem:[%s3122 + $0x58] sm:$0xff]
  %v3135 = vld [vmem:[%s3122 + $0x60] sm:$0xff]
  %v3136 = vld [vmem:[%s3122 + $0x68] sm:$0xff]
  %v3137 = vld [vmem:[%s3122 + $0x70] sm:$0xff]
  %v3138 = vld [vmem:[%s3122 + $0x78] sm:$0xff]
  %v3139 = vld [vmem:[%s3122 + $0x80] sm:$0xff]
  %v3140 = vld [vmem:[%s3122 + $0x88] sm:$0xff]
  %v3141 = vld [vmem:[%s3122 + $0x90] sm:$0xff]
  %v3142 = vld [vmem:[%s3122 + $0x98] sm:$0xff]
  %v3143 = vld [vmem:[%s3122 + $0xa0] sm:$0xff]
  %v3144 = vld [vmem:[%s3122 + $0xa8] sm:$0xff]
  %v3145 = vld [vmem:[%s3122 + $0xb0] sm:$0xff]
  %v3146 = vld [vmem:[%s3122 + $0xb8] sm:$0xff]
  %v3147 = vld [vmem:[%s3122 + $0xc0] sm:$0xff]
  %v3148 = vld [vmem:[%s3122 + $0xc8] sm:$0xff]
  %v3149 = vld [vmem:[%s3122 + $0xd0] sm:$0xff]
  %v3150 = vld [vmem:[%s3122 + $0xd8] sm:$0xff]
  %v3151 = vld [vmem:[%s3122 + $0xe0] sm:$0xff]
  %v3152 = vld [vmem:[%s3122 + $0xe8] sm:$0xff]
  %v3153 = vld [vmem:[%s3122 + $0xf0] sm:$0xff]
  %v3154 = vld [vmem:[%s3122 + $0xf8] sm:$0xff]
  %3155 = vmatprep.subr.mxu0 0.0
  %3156 = vmatpush1.msra.mxu0 %v3123
  %3157 = vmatprep.subr.mxu0 0.0
  %3158 = vmatpush1.msra.mxu0 %v3124
  %3159 = vmatprep.subr.mxu0 0.0
  %3160 = vmatpush1.msra.mxu0 %v3125
  %3161 = vmatprep.subr.mxu0 0.0
  %3162 = vmatpush1.msra.mxu0 %v3126
  %3163 = vmatprep.subr.mxu0 0.0
  %3164 = vmatpush1.msra.mxu0 %v3127
  %3165 = vmatprep.subr.mxu0 0.0
  %3166 = vmatpush1.msra.mxu0 %v3128
  %3167 = vmatprep.subr.mxu0 0.0
  %3168 = vmatpush1.msra.mxu0 %v3129
  %3169 = vmatprep.subr.mxu0 0.0
  %3170 = vmatpush1.msra.mxu0 %v3130
  %3171 = vmatprep.subr.mxu0 0.0
  %3172 = vmatpush1.msra.mxu0 %v3131
  %3173 = vmatprep.subr.mxu0 0.0
  %3174 = vmatpush1.msra.mxu0 %v3132
  %3175 = vmatprep.subr.mxu0 0.0
  %3176 = vmatpush1.msra.mxu0 %v3133
  %3177 = vmatprep.subr.mxu0 0.0
  %3178 = vmatpush1.msra.mxu0 %v3134
  %3179 = vmatprep.subr.mxu0 0.0
  %3180 = vmatpush1.msra.mxu0 %v3135
  %3181 = vmatprep.subr.mxu0 0.0
  %3182 = vmatpush1.msra.mxu0 %v3136
  %3183 = vmatprep.subr.mxu0 0.0
  %3184 = vmatpush1.msra.mxu0 %v3137
  %3185 = vmatprep.subr.mxu0 0.0
  %3186 = vmatpush1.msra.mxu0 %v3138
  %3187 = vmatprep.subr.mxu0 0.0
  %3188 = vmatpush1.msra.mxu0 %v3139
  %3189 = vmatprep.subr.mxu0 0.0
  %3190 = vmatpush1.msra.mxu0 %v3140
  %3191 = vmatprep.subr.mxu0 0.0
  %3192 = vmatpush1.msra.mxu0 %v3141
  %3193 = vmatprep.subr.mxu0 0.0
  %3194 = vmatpush1.msra.mxu0 %v3142
  %3195 = vmatprep.subr.mxu0 0.0
  %3196 = vmatpush1.msra.mxu0 %v3143
  %3197 = vmatprep.subr.mxu0 0.0
  %3198 = vmatpush1.msra.mxu0 %v3144
  %3199 = vmatprep.subr.mxu0 0.0
  %3200 = vmatpush1.msra.mxu0 %v3145
  %3201 = vmatprep.subr.mxu0 0.0
  %3202 = vmatpush1.msra.mxu0 %v3146
  %3203 = vmatprep.subr.mxu0 0.0
  %3204 = vmatpush1.msra.mxu0 %v3147
  %3205 = vmatprep.subr.mxu0 0.0
  %3206 = vmatpush1.msra.mxu0 %v3148
  %3207 = vmatprep.subr.mxu0 0.0
  %3208 = vmatpush1.msra.mxu0 %v3149
  %3209 = vmatprep.subr.mxu0 0.0
  %3210 = vmatpush1.msra.mxu0 %v3150
  %3211 = vmatprep.subr.mxu0 0.0
  %3212 = vmatpush1.msra.mxu0 %v3151
  %3213 = vmatprep.subr.mxu0 0.0
  %3214 = vmatpush1.msra.mxu0 %v3152
  %3215 = vmatprep.subr.mxu0 0.0
  %3216 = vmatpush1.msra.mxu0 %v3153
  %3217 = vmatprep.subr.mxu0 0.0
  %3218 = vmatpush1.msra.mxu0 %v3154
  %3219 = vmatprep.mubr.f32.mxu0 %v2396
  %3220 = vmatmul.mubr.f32.gmra.mrb[0].mxu0 %v2395
  %v3221 = vpop.f32.mrb[0].mxu0
  %v3222 = vadd.f32 0.0, %v3221
  %v3223 = vpop.f32.mrb[0].mxu0
  %3224 = vdwg.mxu0
  %v3225 = vadd.f32 %v3121, %v3222
  %v3226 = vld [vmem:[%s8] sm:$0x1]
  %v3228 = vlaneseq
  %v3229 = vshrl.u32 %v3228, 7
  %v3230 = vsub.s32 0, %v3229
  %v3231 = vrot.slane %v3226, %v3230
  %v3233 = vadd.f32 %v3225, %v3231
  %3234 = vst [vmem:[%s9] sm:$0xff] %v3233
  // Predicated region
  $region38: #{harbox_cnn_forward.1} parent=0 // pred_check
    _
  $region39: #{harbox_cnn_forward.1} parent=0 // pred_check_branch
    %3236 = sbr.rel (0) target = $region41
  $region40: #{harbox_cnn_forward.1} parent=0 // pred_region
    _
  $region41: #{harbox_cnn_forward.1} parent=0 // pred_fallthru
    _
  // Predicated region
  $region42: #{harbox_cnn_forward.1} parent=0 // pred_check
    _
  $region43: #{harbox_cnn_forward.1} parent=0 // pred_check_branch
    %3238 = sbr.rel (0) target = $region45
  $region44: #{harbox_cnn_forward.1} parent=0 // pred_region
    _
  $region45: #{harbox_cnn_forward.1} parent=0 // pred_fallthru
    _

</llo_original>
